<compile_context>
chip_gen: v6e
topology: v6e:2x2x1
jax: 0.10.0
libtpu: 0.0.40
codegen_flags: <defaults>
</compile_context>

<pallas_src>
import functools

import jax
import jax.numpy as jnp
from jax import lax
from jax.experimental import pallas as pl
from jax.experimental.pallas import tpu as pltpu

DROPOUT_P = 0.2
_LANE = 128     # last block dim should be a multiple of this (lane width)
_SUBLANE = 8    # row-dim granularity


def _round_up(a, b):
    return (a + b - 1) // b * b


def ffwd_kernel(seed_ref, x_ref, w1_ref, b1_ref, w2_ref, b2_ref, o_ref, *,
                apply_dropout: bool, drop_p: float):
    """Fused  relu(x @ W1 + b1) @ W2 + b2  (+ optional inverted dropout).

    x_ref : (TM, EP) f32|bf16   w1_ref: (EP, HP) bf16   b1_ref: (1, HP) f32
    w2_ref: (HP, EP) bf16       b2_ref: (1, EP) f32     o_ref : (TM, EP) f32
    """
    x = x_ref[...]
    if x.dtype != jnp.bfloat16:           # no-op when the producer emits bf16
        x = x.astype(jnp.bfloat16)
    # bf16 operands on the MXU, f32 accumulation; epilogue stays f32.
    h = jnp.dot(x, w1_ref[...], preferred_element_type=jnp.float32)
    h = jnp.maximum(h + b1_ref[...], 0.0)                       # bias + ReLU
    y = jnp.dot(h.astype(jnp.bfloat16), w2_ref[...],
                preferred_element_type=jnp.float32)
    y = y + b2_ref[...]

    if apply_dropout:
        # Training-mode inverted dropout via a portable counter-based hash of
        # (global element index, seed).  Matches the Bernoulli(1-p)
        # distribution (not torch's RNG bit stream).  Pure VPU work -> free
        # filler while the kernel is MXU/DMA bound.
        m, n = y.shape
        rows = lax.broadcasted_iota(jnp.uint32, (m, n), 0)
        cols = lax.broadcasted_iota(jnp.uint32, (m, n), 1)
        base = jnp.uint32(m * n) * pl.program_id(0).astype(jnp.uint32)
        z = rows * jnp.uint32(n) + cols + base          # global element index
        z = z + seed_ref[0].astype(jnp.uint32) * jnp.uint32(0x9E3779B9)
        # 2-round multiply/xorshift finalizer (lowbias32-style avalanche).
        z = z ^ (z >> 16)
        z = z * jnp.uint32(0x21F0AAAD)
        z = z ^ (z >> 15)
        z = z * jnp.uint32(0x735A2D97)
        z = z ^ (z >> 15)
        keep = z >= jnp.uint32(round(drop_p * (2 ** 32)))       # P(drop) = p
        y = jnp.where(keep, y * (1.0 / (1.0 - drop_p)), 0.0)

    o_ref[...] = y.astype(o_ref.dtype)


def init_params(key, n_emb, dtype=jnp.float32):
    """PyTorch-style Linear init: U(-1/sqrt(fan_in), 1/sqrt(fan_in))."""
    hidden = 4 * n_emb
    k1, k2, k3, k4 = jax.random.split(key, 4)
    b1_bound = 1.0 / (n_emb ** 0.5)
    b2_bound = 1.0 / (hidden ** 0.5)
    w1 = jax.random.uniform(k1, (n_emb, hidden), dtype, -b1_bound, b1_bound)
    b1 = jax.random.uniform(k2, (1, hidden), dtype, -b1_bound, b1_bound)
    w2 = jax.random.uniform(k3, (hidden, n_emb), dtype, -b2_bound, b2_bound)
    b2 = jax.random.uniform(k4, (1, n_emb), dtype, -b2_bound, b2_bound)
    return w1, b1, w2, b2


def pack_params(params):
    """ONE-TIME packing (call at init / checkpoint load, never per forward):
    zero-pad feature dims to lane (128) multiples and cast weights to bf16 so
    the per-call wrapper does no weight-side HBM traffic at all."""
    w1, b1, w2, b2 = params
    E, H = w1.shape
    EP, HP = _round_up(E, _LANE), _round_up(H, _LANE)
    w1p = jnp.pad(w1, ((0, EP - E), (0, HP - H))).astype(jnp.bfloat16)
    b1p = jnp.pad(b1.reshape(1, -1), ((0, 0), (0, HP - H))).astype(jnp.float32)
    w2p = jnp.pad(w2, ((0, HP - H), (0, EP - E))).astype(jnp.bfloat16)
    b2p = jnp.pad(b2.reshape(1, -1), ((0, 0), (0, EP - E))).astype(jnp.float32)
    return w1p, b1p, w2p, b2p


@functools.partial(jax.jit, static_argnames=("train", "drop_p", "tile_rows"))
def feed_forward(x, packed_params, *, train=False, seed=0, drop_p=DROPOUT_P,
                 tile_rows=128):
    """Pallas implementation of FeedForward.forward.

    x: (B, T, n_emb), f32 or bf16 (producers should emit bf16 on v6e/v7x to
    halve the activation HBM traffic).  `packed_params` comes from
    pack_params().  Callers must advance `seed` per training step for fresh
    dropout masks."""
    B, T, E = x.shape
    w1p, b1p, w2p, b2p = packed_params
    EP, HP = w1p.shape
    assert E <= EP and w2p.shape == (HP, EP)

    # Batch every token and tile rows; the row axis is fully parallel and
    # shards across TensorCores, with >=2 pipeline steps per core.
    M = B * T
    TM = min(tile_rows, _round_up(M, _SUBLANE))
    MP = _round_up(M, TM)
    grid = (MP // TM,)

    x2 = x.reshape(M, E)
    if (MP, EP) != (M, E):                 # no-op at n_emb=384, M%TM==0
        x2 = jnp.pad(x2, ((0, MP - M), (0, EP - E)))

    seed_arr = jnp.asarray([seed], dtype=jnp.int32)

    # Advisory cost so XLA schedules the surrounding Block ops sensibly.
    bytes_accessed = (x2.size * x2.dtype.itemsize
                      + w1p.size * 2 + w2p.size * 2
                      + b1p.size * 4 + b2p.size * 4
                      + MP * EP * 4)
    cost = pl.CostEstimate(flops=4 * MP * EP * HP, transcendentals=0,
                           bytes_accessed=int(bytes_accessed))

    kernel = functools.partial(ffwd_kernel, apply_dropout=train,
                               drop_p=float(drop_p))
    out = pl.pallas_call(
        kernel,
        out_shape=jax.ShapeDtypeStruct((MP, EP), jnp.float32),
        grid_spec=pltpu.PrefetchScalarGridSpec(
            num_scalar_prefetch=1,                  # dropout seed (SMEM)
            grid=grid,
            in_specs=[
                pl.BlockSpec((TM, EP), lambda i, s: (i, 0)),   # x row tile
                pl.BlockSpec((EP, HP), lambda i, s: (0, 0)),   # W1 (resident)
                pl.BlockSpec((1, HP), lambda i, s: (0, 0)),    # b1
                pl.BlockSpec((HP, EP), lambda i, s: (0, 0)),   # W2 (resident)
                pl.BlockSpec((1, EP), lambda i, s: (0, 0)),    # b2
            ],
            out_specs=pl.BlockSpec((TM, EP), lambda i, s: (i, 0)),
        ),
        compiler_params=pltpu.CompilerParams(
            dimension_semantics=("parallel",)),     # row tiles shard over TCs
        cost_estimate=cost,
    )(seed_arr, x2, w1p, b1p, w2p, b2p)
    return out[:M, :E].reshape(B, T, E)


def feed_forward_ref(x, params):
    """Pure-JAX eval-mode reference with the same bf16-operand/f32-acc math."""
    w1, b1, w2, b2 = params
    h = jnp.dot(x.astype(jnp.bfloat16), w1.astype(jnp.bfloat16),
                preferred_element_type=jnp.float32) + b1[0]
    h = jnp.maximum(h, 0.0)
    return jnp.dot(h.astype(jnp.bfloat16), w2.astype(jnp.bfloat16),
                   preferred_element_type=jnp.float32) + b2[0]


if __name__ == "__main__":
    # Shapes implied by the module: n_embed = 384, block_size = 256.
    B, T, n_emb = 2, 256, 384
    key = jax.random.PRNGKey(0)
    kx, kp = jax.random.split(key)
    x = jax.random.normal(kx, (B, T, n_emb), jnp.float32)
    raw_params = init_params(kp, n_emb)
    packed = pack_params(raw_params)        # one-time pad + bf16 cast

    # Eval mode (dropout identity, like module.eval()).
    y_eval = jax.block_until_ready(feed_forward(x, packed, train=False))
    y_ref = feed_forward_ref(x, raw_params)
    assert y_eval.shape == (B, T, n_emb)
    assert jnp.allclose(y_eval, y_ref, atol=1e-3, rtol=1e-3), "eval-mode mismatch"

    # bf16-producer path (halves activation HBM traffic; kernel skips the cast).
    y_bf16 = jax.block_until_ready(
        feed_forward(x.astype(jnp.bfloat16), packed, train=False))
    assert y_bf16.shape == (B, T, n_emb)
    assert jnp.allclose(y_bf16, y_eval, atol=1e-1, rtol=1e-1), "bf16-x mismatch"

    # Training mode (inverted dropout, p = 0.2).
    y_train = jax.block_until_ready(
        feed_forward(x, packed, train=True, seed=123))
    assert y_train.shape == (B, T, n_emb)
    drop_frac = float(jnp.mean(y_train == 0.0))
    assert 0.15 < drop_frac < 0.25, f"dropout fraction off: {drop_frac:.3f}"
    kept = y_train != 0.0
    assert jnp.allclose(jnp.where(kept, y_train, 0.0),
                        jnp.where(kept, y_eval / (1.0 - DROPOUT_P), 0.0),
                        atol=1e-3, rtol=1e-3), "dropout scaling mismatch"

    print("KERNEL_OK")
</pallas_src>

<mosaic_0001>
module attributes {stable_mosaic.version = 11 : i64} {
  func.func @ffwd_kernel(%arg0: i32, %arg1: memref<1xi32, #tpu.memory_space<smem>>, %arg2: memref<128x384xf32, #tpu.memory_space<vmem>>, %arg3: memref<384x1536xbf16, #tpu.memory_space<vmem>>, %arg4: memref<1x1536xf32, #tpu.memory_space<vmem>>, %arg5: memref<1536x384xbf16, #tpu.memory_space<vmem>>, %arg6: memref<1x384xf32, #tpu.memory_space<vmem>>, %arg7: memref<128x384xf32, #tpu.memory_space<vmem>>) attributes {dimension_semantics = [#tpu.dimension_semantics<parallel>], iteration_bounds = array<i64: 4>, scalar_prefetch = 1 : i64, scratch_operands = 0 : i64, tpu.core_type = #tpu.core_type<tc>, window_params = [{transform_indices = @transform_0, window_bounds = array<i64: 128, 384>}, {pipeline_mode = #tpu.pipeline_mode<synchronous>, transform_indices = @transform_1, window_bounds = array<i64: 384, 1536>}, {pipeline_mode = #tpu.pipeline_mode<synchronous>, transform_indices = @transform_2, window_bounds = array<i64: 1, 1536>}, {pipeline_mode = #tpu.pipeline_mode<synchronous>, transform_indices = @transform_3, window_bounds = array<i64: 1536, 384>}, {pipeline_mode = #tpu.pipeline_mode<synchronous>, transform_indices = @transform_4, window_bounds = array<i64: 1, 384>}, {transform_indices = @transform_5, window_bounds = array<i64: 128, 384>}]} {
    %c0 = arith.constant 0 : index
    %c0_0 = arith.constant 0 : index
    %0 = vector.load %arg2[%c0, %c0_0] : memref<128x384xf32, #tpu.memory_space<vmem>>, vector<128x384xf32>
    %1 = arith.truncf %0 : vector<128x384xf32> to vector<128x384xbf16>
    %c0_1 = arith.constant 0 : index
    %c0_2 = arith.constant 0 : index
    %2 = vector.load %arg3[%c0_1, %c0_2] : memref<384x1536xbf16, #tpu.memory_space<vmem>>, vector<384x1536xbf16>
    %cst = arith.constant dense<0.000000e+00> : vector<128x1536xf32>
    %3 = tpu.matmul %1, %2, %cst {dimension_numbers = #tpu.dot_dimension_numbers<[1], [0], [0], [1], [0, 0, 1, 1], [], []>} : vector<128x384xbf16>, vector<384x1536xbf16>, vector<128x1536xf32> -> vector<128x1536xf32>
    %c0_3 = arith.constant 0 : index
    %c0_4 = arith.constant 0 : index
    %4 = vector.load %arg4[%c0_3, %c0_4] : memref<1x1536xf32, #tpu.memory_space<vmem>>, vector<1x1536xf32>
    %5 = vector.broadcast %4 : vector<1x1536xf32> to vector<128x1536xf32>
    %6 = arith.addf %3, %5 : vector<128x1536xf32>
    %cst_5 = arith.constant 0.000000e+00 : f32
    %7 = vector.broadcast %cst_5 : f32 to vector<128x1536xf32>
    %8 = arith.maximumf %6, %7 : vector<128x1536xf32>
    %9 = arith.truncf %8 : vector<128x1536xf32> to vector<128x1536xbf16>
    %c0_6 = arith.constant 0 : index
    %c0_7 = arith.constant 0 : index
    %10 = vector.load %arg5[%c0_6, %c0_7] : memref<1536x384xbf16, #tpu.memory_space<vmem>>, vector<1536x384xbf16>
    %cst_8 = arith.constant dense<0.000000e+00> : vector<128x384xf32>
    %11 = tpu.matmul %9, %10, %cst_8 {dimension_numbers = #tpu.dot_dimension_numbers<[1], [0], [0], [1], [0, 0, 1, 1], [], []>} : vector<128x1536xbf16>, vector<1536x384xbf16>, vector<128x384xf32> -> vector<128x384xf32>
    %c0_9 = arith.constant 0 : index
    %c0_10 = arith.constant 0 : index
    %12 = vector.load %arg6[%c0_9, %c0_10] : memref<1x384xf32, #tpu.memory_space<vmem>>, vector<1x384xf32>
    %13 = vector.broadcast %12 : vector<1x384xf32> to vector<128x384xf32>
    %14 = arith.addf %11, %13 : vector<128x384xf32>
    %c0_11 = arith.constant 0 : index
    %c0_12 = arith.constant 0 : index
    %15 = vector.load %arg7[%c0_11, %c0_12] : memref<128x384xf32, #tpu.memory_space<vmem>>, vector<128x384xf32>
    tpu.vector_store %arg7[%c0_11, %c0_12], %14 {strides = array<i32>} : memref<128x384xf32, #tpu.memory_space<vmem>>, vector<128x384xf32>,
    return
  }
  func.func @transform_0(%arg0: i32, %arg1: memref<1xi32, #tpu.memory_space<smem>>) -> (i32, i32) {
    %c0_i32 = arith.constant 0 : i32
    %c0_i32_0 = arith.constant 0 : i32
    return %arg0, %c0_i32 : i32, i32
  }
  func.func @transform_1(%arg0: i32, %arg1: memref<1xi32, #tpu.memory_space<smem>>) -> (i32, i32) {
    %c0_i32 = arith.constant 0 : i32
    %c0_i32_0 = arith.constant 0 : i32
    %c0_i32_1 = arith.constant 0 : i32
    return %c0_i32, %c0_i32_0 : i32, i32
  }
  func.func @transform_2(%arg0: i32, %arg1: memref<1xi32, #tpu.memory_space<smem>>) -> (i32, i32) {
    %c0_i32 = arith.constant 0 : i32
    %c0_i32_0 = arith.constant 0 : i32
    %c0_i32_1 = arith.constant 0 : i32
    return %c0_i32, %c0_i32_0 : i32, i32
  }
  func.func @transform_3(%arg0: i32, %arg1: memref<1xi32, #tpu.memory_space<smem>>) -> (i32, i32) {
    %c0_i32 = arith.constant 0 : i32
    %c0_i32_0 = arith.constant 0 : i32
    %c0_i32_1 = arith.constant 0 : i32
    return %c0_i32, %c0_i32_0 : i32, i32
  }
  func.func @transform_4(%arg0: i32, %arg1: memref<1xi32, #tpu.memory_space<smem>>) -> (i32, i32) {
    %c0_i32 = arith.constant 0 : i32
    %c0_i32_0 = arith.constant 0 : i32
    %c0_i32_1 = arith.constant 0 : i32
    return %c0_i32, %c0_i32_0 : i32, i32
  }
  func.func @transform_5(%arg0: i32, %arg1: memref<1xi32, #tpu.memory_space<smem>>) -> (i32, i32) {
    %c0_i32 = arith.constant 0 : i32
    %c0_i32_0 = arith.constant 0 : i32
    return %arg0, %c0_i32 : i32, i32
  }
}

</mosaic_0001>

<llo_original>
// kernel: feed_forward.1
$region0: #{feed_forward.1}
  #allocation0 [shape = 'u32[]', space=smem, size = 0x4, offset = 0x4, fixed_abs, tag = 'smem constant byte address 0x4 - core index']
  #allocation1 [shape = 'u32[144,128]{1,0:T(1,128)}', space=vmem, size = 0x12000, scoped, tag = 'internal scratch']
  #allocation2 [shape = 's32[1]{0}', space=sflag, size = 0x4, scoped, tag = 'scoped memory for feed_forward.1']
  #allocation3 [shape = 's32[1]{0:T(128)S(6)}', space=smem, size = 0x200, scoped, tag = 'prefetched SMEM operand 0']
  %s0 = inlined_call_operand.<no memory space> [shape: s32[1], index: 0, kind: input, shape index: {}]
  %s1 = inlined_call_operand.hbm [shape: f32[512,384], index: 1, kind: input, shape index: {}]
  %s2 = inlined_call_operand.hbm [shape: bf16[384,1536], index: 2, kind: input, shape index: {}]
  %s3 = inlined_call_operand.hbm [shape: f32[1,1536], index: 3, kind: input, shape index: {}]
  %s4 = inlined_call_operand.hbm [shape: bf16[1536,384], index: 4, kind: input, shape index: {}]
  %s5 = inlined_call_operand.hbm [shape: f32[1,384], index: 5, kind: input, shape index: {}]
  %s6 = inlined_call_operand.hbm [shape: f32[512,384], index: 6, kind: output, shape index: {}]
  %s7 = sld [smem:[#allocation0]]
  $region73: #{feed_forward.1} parent=0
    _
  %s9 = ssub.s32 1, %s7
  %s10 = scalar_select 0, %s9, %s7
  %11 = sst [smem:[#allocation3]] %s0
  $region1: #{feed_forward.1} parent=0
    #allocation4 [shape = 'u8[393216]{0}', space=vmem, size = 0x60000, scoped, tag = 'input window, operand 1']
    #allocation5 [shape = 's32[2]{0}', space=sflag, size = 0x8, scoped, tag = 'scoped memory for feed_forward.1']
    #allocation6 [shape = 's32[2]{0}', space=sflag, size = 0x8, scoped, tag = 'scoped memory for feed_forward.1']
    #allocation7 [shape = 'u8[1179648]{0}', space=vmem, size = 0x120000, scoped, tag = 'input window, operand 2, single buffered']
    #allocation8 [shape = 's32[1]{0}', space=sflag, size = 0x4, scoped, tag = 'scoped memory for feed_forward.1']
    #allocation9 [shape = 'u8[6144]{0}', space=vmem, size = 0x1800, scoped, tag = 'input window, operand 3, single buffered']
    #allocation10 [shape = 'u8[1179648]{0}', space=vmem, size = 0x120000, scoped, tag = 'input window, operand 4, single buffered']
    #allocation11 [shape = 's32[1]{0}', space=sflag, size = 0x4, scoped, tag = 'scoped memory for feed_forward.1']
    #allocation12 [shape = 'u8[1536]{0}', space=vmem, size = 0x800, scoped, tag = 'input window, operand 5, single buffered']
    #allocation13 [shape = 'u8[393216]{0}', space=vmem, size = 0x60000, scoped, tag = 'output window, operand 0']
    %12 = vsyncpa [#allocation5], 0
    %s13 = scalar_lea.sflag [#allocation5], 1
    %14 = vsyncpa %s13, 0
    %15 = vsyncpa [#allocation8], 0
    %16 = vsyncpa [#allocation11], 0
    %17 = vsyncpa [#allocation6], 0
    %s18 = scalar_lea.sflag [#allocation6], 1
    %19 = vsyncpa %s18, 0
    loop: start=0, step=1, limit=6
    $region2: #{feed_forward.1} parent=1 // loop_pre_header
      _
    $region3: #{feed_forward.1} parent=1 // loop_header
      %s21 = sphi 0, %s25
      %p22 = scmp.ge.s32.totalorder %s21, 6
      %s31 = sphi 0, %s33
      %s34 = sphi 0, %s31
      %s35 = sphi 0, %s34
      %s51 = sphi 0, %s35
      %s55 = sphi 0, %s55
      %s57 = sphi 0, %s55
      %s58 = sphi 0, %s57
      %s72 = sphi 0, %s58
      %s76 = sphi 0, %s76
      %s78 = sphi 0, %s76
      %s79 = sphi 0, %s78
      %s93 = sphi 0, %s79
      %s97 = sphi 0, %s97
      %s99 = sphi 0, %s97
      %s100 = sphi 0, %s99
      %s114 = sphi 0, %s100
      %s118 = sphi 0, %s118
      %s120 = sphi 0, %s118
      %s121 = sphi 0, %s120
      %s135 = sphi 0, %s121
      %s141 = sphi 0, %s143
      %s144 = sphi 0, %s141
      %s145 = sphi 0, %s144
      %s161 = sphi 0, %s145
    $region4: #{feed_forward.1} parent=1 // loop_header_branch
      %24 = sbr.rel (%p22) target = $region8
    $region5: #{feed_forward.1} parent=1 // loop_body
      %s26 = ssub.s32 %s21, 1
      %s27 = ssub.s32 %s21, 2
      %s28 = sadd.s32 %s21, 1
      %s29 = ssub.s32 %s21, %s28
      %p30 = scmp.eq.s32.totalorder %s29, 0
      %s32 = sadd.s32 %s31, 1
      %s33 = scalar_select %p30, %s31, %s32
      %p36 = pneg %p30
      %p37 = scmp.eq.s32.totalorder %s21, 3
      %p38 = por %p36, %p37
      %p39 = scmp.ne.s32.totalorder %s31, %s34
      %p40 = scmp.eq.s32.totalorder %s21, 0
      %p41 = por %p39, %p40
      %p42 = scmp.ne.s32.totalorder %s31, %s34
      %p43 = scmp.eq.s32.totalorder %s26, 3
      %p44 = por %p42, %p43
      %p45 = scmp.ne.s32.totalorder %s34, %s35
      %p46 = scmp.eq.s32.totalorder %s26, 0
      %p47 = por %p45, %p46
      %p48 = scmp.ne.s32.totalorder %s34, %s35
      %p49 = scmp.eq.s32.totalorder %s27, 3
      %p50 = por %p48, %p49
      %p52 = scmp.ne.s32.totalorder %s35, %s51
      %p53 = scmp.eq.s32.totalorder %s27, 0
      %p54 = por %p52, %p53
      %s56 = sadd.s32 %s55, 1
      %p59 = scmp.eq.s32.totalorder %s21, 3
      %p60 = scmp.ne.s32.totalorder %s55, %s57
      %p61 = scmp.eq.s32.totalorder %s21, 0
      %p62 = por %p60, %p61
      %p63 = scmp.ne.s32.totalorder %s55, %s57
      %p64 = scmp.eq.s32.totalorder %s26, 3
      %p65 = por %p63, %p64
      %p66 = scmp.ne.s32.totalorder %s57, %s58
      %p67 = scmp.eq.s32.totalorder %s26, 0
      %p68 = por %p66, %p67
      %p69 = scmp.ne.s32.totalorder %s57, %s58
      %p70 = scmp.eq.s32.totalorder %s27, 3
      %p71 = por %p69, %p70
      %p73 = scmp.ne.s32.totalorder %s58, %s72
      %p74 = scmp.eq.s32.totalorder %s27, 0
      %p75 = por %p73, %p74
      %s77 = sadd.s32 %s76, 1
      %p80 = scmp.eq.s32.totalorder %s21, 3
      %p81 = scmp.ne.s32.totalorder %s76, %s78
      %p82 = scmp.eq.s32.totalorder %s21, 0
      %p83 = por %p81, %p82
      %p84 = scmp.ne.s32.totalorder %s76, %s78
      %p85 = scmp.eq.s32.totalorder %s26, 3
      %p86 = por %p84, %p85
      %p87 = scmp.ne.s32.totalorder %s78, %s79
      %p88 = scmp.eq.s32.totalorder %s26, 0
      %p89 = por %p87, %p88
      %p90 = scmp.ne.s32.totalorder %s78, %s79
      %p91 = scmp.eq.s32.totalorder %s27, 3
      %p92 = por %p90, %p91
      %p94 = scmp.ne.s32.totalorder %s79, %s93
      %p95 = scmp.eq.s32.totalorder %s27, 0
      %p96 = por %p94, %p95
      %s98 = sadd.s32 %s97, 1
      %p101 = scmp.eq.s32.totalorder %s21, 3
      %p102 = scmp.ne.s32.totalorder %s97, %s99
      %p103 = scmp.eq.s32.totalorder %s21, 0
      %p104 = por %p102, %p103
      %p105 = scmp.ne.s32.totalorder %s97, %s99
      %p106 = scmp.eq.s32.totalorder %s26, 3
      %p107 = por %p105, %p106
      %p108 = scmp.ne.s32.totalorder %s99, %s100
      %p109 = scmp.eq.s32.totalorder %s26, 0
      %p110 = por %p108, %p109
      %p111 = scmp.ne.s32.totalorder %s99, %s100
      %p112 = scmp.eq.s32.totalorder %s27, 3
      %p113 = por %p111, %p112
      %p115 = scmp.ne.s32.totalorder %s100, %s114
      %p116 = scmp.eq.s32.totalorder %s27, 0
      %p117 = por %p115, %p116
      %s119 = sadd.s32 %s118, 1
      %p122 = scmp.eq.s32.totalorder %s21, 3
      %p123 = scmp.ne.s32.totalorder %s118, %s120
      %p124 = scmp.eq.s32.totalorder %s21, 0
      %p125 = por %p123, %p124
      %p126 = scmp.ne.s32.totalorder %s118, %s120
      %p127 = scmp.eq.s32.totalorder %s26, 3
      %p128 = por %p126, %p127
      %p129 = scmp.ne.s32.totalorder %s120, %s121
      %p130 = scmp.eq.s32.totalorder %s26, 0
      %p131 = por %p129, %p130
      %p132 = scmp.ne.s32.totalorder %s120, %s121
      %p133 = scmp.eq.s32.totalorder %s27, 3
      %p134 = por %p132, %p133
      %p136 = scmp.ne.s32.totalorder %s121, %s135
      %p137 = scmp.eq.s32.totalorder %s27, 0
      %p138 = por %p136, %p137
      %s139 = ssub.s32 %s21, %s28
      %p140 = scmp.eq.s32.totalorder %s139, 0
      %s142 = sadd.s32 %s141, 1
      %s143 = scalar_select %p140, %s141, %s142
      %p146 = pneg %p140
      %p147 = scmp.eq.s32.totalorder %s21, 3
      %p148 = por %p146, %p147
      %p149 = scmp.ne.s32.totalorder %s141, %s144
      %p150 = scmp.eq.s32.totalorder %s21, 0
      %p151 = por %p149, %p150
      %p152 = scmp.ne.s32.totalorder %s141, %s144
      %p153 = scmp.eq.s32.totalorder %s26, 3
      %p154 = por %p152, %p153
      %p155 = scmp.ne.s32.totalorder %s144, %s145
      %p156 = scmp.eq.s32.totalorder %s26, 0
      %p157 = por %p155, %p156
      %p158 = scmp.ne.s32.totalorder %s144, %s145
      %p159 = scmp.eq.s32.totalorder %s27, 3
      %p160 = por %p158, %p159
      %p162 = scmp.ne.s32.totalorder %s145, %s161
      %p163 = scmp.eq.s32.totalorder %s27, 0
      %p164 = por %p162, %p163
      %p165 = scmp.le.s32.totalorder 1, %s21
      %p166 = scmp.lt.s32.totalorder %s21, 5
      %p167 = pnand %p165, %p166
      %p168 = pneg %p167
      // Predicated region
      $region9: #{feed_forward.1} parent=5 // pred_check
        _
      $region10: #{feed_forward.1} parent=5 // pred_check_branch
        %170 = sbr.rel (%p167) target = $region12
      $region11: #{feed_forward.1} parent=5 // pred_region
        %s171 = ssub.s32 %s21, 1
        // Predicated region
        $region13: #{feed_forward.1} parent=11 // pred_check
          %p172 = pneg %p68
        $region14: #{feed_forward.1} parent=11 // pred_check_branch
          %174 = sbr.rel (%p172) target = $region16
        $region15: #{feed_forward.1} parent=11 // pred_region
          %s176 = ssub.s32 36864, 36864
          %177 = vsyncadd [#allocation8], %s176
          %s178 = sshll.u32 [#allocation7], 4
          %s179 = int_to_ptr.vmem [resolvable:$true] %s178
          %184 = dma.hbm_to_vmem [thread:$0]  %s2, 36864, %s179, [#allocation8], 768, 768, 48
        $region16: #{feed_forward.1} parent=11 // pred_fallthru
          _
        // Predicated region
        $region17: #{feed_forward.1} parent=11 // pred_check
          %p185 = pneg %p89
        $region18: #{feed_forward.1} parent=11 // pred_check_branch
          %187 = sbr.rel (%p185) target = $region20
        $region19: #{feed_forward.1} parent=11 // pred_region
          %s189 = ssub.s32 192, 192
          %190 = vsyncadd [#allocation8], %s189
          %s192 = sshll.u32 [#allocation9], 4
          %s193 = int_to_ptr.vmem [resolvable:$true] %s192
          %195 = dma.hbm_to_vmem [thread:$0]  %s3, 192, %s193, [#allocation8]
        $region20: #{feed_forward.1} parent=11 // pred_fallthru
          _
        // Predicated region
        $region21: #{feed_forward.1} parent=11 // pred_check
          %p196 = pneg %p110
        $region22: #{feed_forward.1} parent=11 // pred_check_branch
          %198 = sbr.rel (%p196) target = $region24
        $region23: #{feed_forward.1} parent=11 // pred_region
          %s200 = ssub.s32 36864, 36864
          %201 = vsyncadd [#allocation11], %s200
          %s202 = sshll.u32 [#allocation10], 4
          %s203 = int_to_ptr.vmem [resolvable:$true] %s202
          %208 = dma.hbm_to_vmem [thread:$0]  %s4, 36864, %s203, [#allocation11], 192, 192, 12
        $region24: #{feed_forward.1} parent=11 // pred_fallthru
          _
        // Predicated region
        $region25: #{feed_forward.1} parent=11 // pred_check
          %p209 = pneg %p131
        $region26: #{feed_forward.1} parent=11 // pred_check_branch
          %211 = sbr.rel (%p209) target = $region28
        $region27: #{feed_forward.1} parent=11 // pred_region
          %s213 = ssub.s32 48, 48
          %214 = vsyncadd [#allocation11], %s213
          %s216 = sshll.u32 [#allocation12], 4
          %s217 = int_to_ptr.vmem [resolvable:$true] %s216
          %219 = dma.hbm_to_vmem [thread:$0]  %s5, 48, %s217, [#allocation11]
        $region28: #{feed_forward.1} parent=11 // pred_fallthru
          _
      $region12: #{feed_forward.1} parent=5 // pred_fallthru
        _
      %p220 = scmp.lt.s32.totalorder %s21, 4
      // Predicated region
      $region29: #{feed_forward.1} parent=5 // pred_check
        %p221 = pneg %p220
      $region30: #{feed_forward.1} parent=5 // pred_check_branch
        %223 = sbr.rel (%p221) target = $region32
      $region31: #{feed_forward.1} parent=5 // pred_region
        // Predicated region
        $region33: #{feed_forward.1} parent=31 // pred_check
          %p224 = pneg %p41
        $region34: #{feed_forward.1} parent=31 // pred_check_branch
          %226 = sbr.rel (%p224) target = $region36
        $region35: #{feed_forward.1} parent=31 // pred_region
          %s227 = sand.u32 %s31, 1
          %s228 = scalar_lea.sflag [#allocation5], %s227
          %s229 = sand.u32 %s31, 1
          %s230 = smul.addr %s229, 384
          %s231 = scalar_lea.vmem [#allocation4], %s230
          %s232 = smul.u32 16, %s21
          %s234 = ssub.s32 6144, 6144
          %235 = vsyncadd %s228, %s234
          %s236 = smul.addr %s232, 3
          %s237 = smul.addr %s236, 128
          %s238 = scalar_lea.hbm %s1, %s237
          %s239 = sshll.u32 %s231, 4
          %s240 = int_to_ptr.vmem [resolvable:$true] %s239
          %245 = dma.hbm_to_vmem [thread:$0]  %s238, 6144, %s240, %s228, 384, 384, 24
        $region36: #{feed_forward.1} parent=31 // pred_fallthru
          _
      $region32: #{feed_forward.1} parent=5 // pred_fallthru
        _
      %p246 = scmp.le.s32.totalorder 1, %s21
      %p247 = scmp.lt.s32.totalorder %s21, 5
      %p248 = pnand %p246, %p247
      %p249 = pneg %p248
      // Predicated region
      $region37: #{feed_forward.1} parent=5 // pred_check
        _
      $region38: #{feed_forward.1} parent=5 // pred_check_branch
        %251 = sbr.rel (%p248) target = $region40
      $region39: #{feed_forward.1} parent=5 // pred_region
        %s252 = ssub.s32 %s21, 1
        %s253 = sand.u32 %s34, 1
        %s254 = scalar_lea.sflag [#allocation5], %s253
        %s255 = sand.u32 %s34, 1
        %s256 = smul.addr %s255, 384
        %s257 = scalar_lea.vmem [#allocation4], %s256
        // Predicated region
        $region41: #{feed_forward.1} parent=39 // pred_check
          %p258 = pneg %p47
        $region42: #{feed_forward.1} parent=39 // pred_check_branch
          %260 = sbr.rel (%p258) target = $region44
        $region43: #{feed_forward.1} parent=39 // pred_region
          %261 = dma.done %s254, 6144
        $region44: #{feed_forward.1} parent=39 // pred_fallthru
          _
        // Predicated region
        $region45: #{feed_forward.1} parent=39 // pred_check
          %p262 = pneg %p68
        $region46: #{feed_forward.1} parent=39 // pred_check_branch
          %264 = sbr.rel (%p262) target = $region48
        $region47: #{feed_forward.1} parent=39 // pred_region
          %265 = dma.done [#allocation8], 36864
        $region48: #{feed_forward.1} parent=39 // pred_fallthru
          _
        // Predicated region
        $region49: #{feed_forward.1} parent=39 // pred_check
          %p266 = pneg %p89
        $region50: #{feed_forward.1} parent=39 // pred_check_branch
          %268 = sbr.rel (%p266) target = $region52
        $region51: #{feed_forward.1} parent=39 // pred_region
          %269 = dma.done [#allocation8], 192
        $region52: #{feed_forward.1} parent=39 // pred_fallthru
          _
        // Predicated region
        $region53: #{feed_forward.1} parent=39 // pred_check
          %p270 = pneg %p110
        $region54: #{feed_forward.1} parent=39 // pred_check_branch
          %272 = sbr.rel (%p270) target = $region56
        $region55: #{feed_forward.1} parent=39 // pred_region
          %273 = dma.done [#allocation11], 36864
        $region56: #{feed_forward.1} parent=39 // pred_fallthru
          _
        // Predicated region
        $region57: #{feed_forward.1} parent=39 // pred_check
          %p274 = pneg %p131
        $region58: #{feed_forward.1} parent=39 // pred_check_branch
          %276 = sbr.rel (%p274) target = $region60
        $region59: #{feed_forward.1} parent=39 // pred_region
          %277 = dma.done [#allocation11], 48
        $region60: #{feed_forward.1} parent=39 // pred_fallthru
          _
        %s278 = sand.u32 %s34, 1
        %s279 = scalar_lea.sflag [#allocation5], %s278
        %s280 = sand.u32 %s34, 1
        %s281 = smul.addr %s280, 384
        %s282 = scalar_lea.vmem [#allocation4], %s281
        %p283 = pneg %p47
        %p284 = pneg %p44
        %p285 = pneg %p68
        %p286 = pneg %p65
        %p287 = pneg %p89
        %p288 = pneg %p86
        %p289 = pneg %p110
        %p290 = pneg %p107
        %p291 = pneg %p131
        %p292 = pneg %p128
        %p293 = pneg %p157
        %p294 = pneg %p154
        %s295 = sand.u32 %s144, 1
        %s296 = scalar_lea.sflag [#allocation6], %s295
        %s297 = sand.u32 %s144, 1
        %s298 = smul.addr %s297, 384
        %s299 = scalar_lea.vmem [#allocation13], %s298
        %s300 = smul.u32 16, %s26
        %s301 = smul.u32 16, %s26
        %v303 = vld [vmem:[%s257] sm:$0xff]
        %v304 = vld [vmem:[%s257 + $0x8] sm:$0xff]
        %v305 = vld [vmem:[%s257 + $0x10] sm:$0xff]
        %v306 = vld [vmem:[%s257 + $0x18] sm:$0xff]
        %v307 = vld [vmem:[%s257 + $0x20] sm:$0xff]
        %v308 = vld [vmem:[%s257 + $0x28] sm:$0xff]
        %v309 = vld [vmem:[%s257 + $0x30] sm:$0xff]
        %v310 = vld [vmem:[%s257 + $0x38] sm:$0xff]
        %v311 = vld [vmem:[%s257 + $0x40] sm:$0xff]
        %v312 = vld [vmem:[%s257 + $0x48] sm:$0xff]
        %v313 = vld [vmem:[%s257 + $0x50] sm:$0xff]
        %v314 = vld [vmem:[%s257 + $0x58] sm:$0xff]
        %v315 = vld [vmem:[%s257 + $0x60] sm:$0xff]
        %v316 = vld [vmem:[%s257 + $0x68] sm:$0xff]
        %v317 = vld [vmem:[%s257 + $0x70] sm:$0xff]
        %v318 = vld [vmem:[%s257 + $0x78] sm:$0xff]
        %v319 = vld [vmem:[%s257 + $0x80] sm:$0xff]
        %v320 = vld [vmem:[%s257 + $0x88] sm:$0xff]
        %v321 = vld [vmem:[%s257 + $0x90] sm:$0xff]
        %v322 = vld [vmem:[%s257 + $0x98] sm:$0xff]
        %v323 = vld [vmem:[%s257 + $0xa0] sm:$0xff]
        %v324 = vld [vmem:[%s257 + $0xa8] sm:$0xff]
        %v325 = vld [vmem:[%s257 + $0xb0] sm:$0xff]
        %v326 = vld [vmem:[%s257 + $0xb8] sm:$0xff]
        %v327 = vld [vmem:[%s257 + $0xc0] sm:$0xff]
        %v328 = vld [vmem:[%s257 + $0xc8] sm:$0xff]
        %v329 = vld [vmem:[%s257 + $0xd0] sm:$0xff]
        %v330 = vld [vmem:[%s257 + $0xd8] sm:$0xff]
        %v331 = vld [vmem:[%s257 + $0xe0] sm:$0xff]
        %v332 = vld [vmem:[%s257 + $0xe8] sm:$0xff]
        %v333 = vld [vmem:[%s257 + $0xf0] sm:$0xff]
        %v334 = vld [vmem:[%s257 + $0xf8] sm:$0xff]
        %v335 = vld [vmem:[%s257 + $0x100] sm:$0xff]
        %v336 = vld [vmem:[%s257 + $0x108] sm:$0xff]
        %v337 = vld [vmem:[%s257 + $0x110] sm:$0xff]
        %v338 = vld [vmem:[%s257 + $0x118] sm:$0xff]
        %v339 = vld [vmem:[%s257 + $0x120] sm:$0xff]
        %v340 = vld [vmem:[%s257 + $0x128] sm:$0xff]
        %v341 = vld [vmem:[%s257 + $0x130] sm:$0xff]
        %v342 = vld [vmem:[%s257 + $0x138] sm:$0xff]
        %v343 = vld [vmem:[%s257 + $0x140] sm:$0xff]
        %v344 = vld [vmem:[%s257 + $0x148] sm:$0xff]
        %v345 = vld [vmem:[%s257 + $0x150] sm:$0xff]
        %v346 = vld [vmem:[%s257 + $0x158] sm:$0xff]
        %v347 = vld [vmem:[%s257 + $0x160] sm:$0xff]
        %v348 = vld [vmem:[%s257 + $0x168] sm:$0xff]
        %v349 = vld [vmem:[%s257 + $0x170] sm:$0xff]
        %v350 = vld [vmem:[%s257 + $0x178] sm:$0xff]
        %v351 = vpack.c.bf16 %v306, %v303
        %v352 = vpack.c.bf16 %v307, %v304
        %v353 = vpack.c.bf16 %v308, %v305
        %v354 = vpack.c.bf16 %v312, %v309
        %v355 = vpack.c.bf16 %v313, %v310
        %v356 = vpack.c.bf16 %v314, %v311
        %v357 = vpack.c.bf16 %v318, %v315
        %v358 = vpack.c.bf16 %v319, %v316
        %v359 = vpack.c.bf16 %v320, %v317
        %v360 = vpack.c.bf16 %v324, %v321
        %v361 = vpack.c.bf16 %v325, %v322
        %v362 = vpack.c.bf16 %v326, %v323
        %v363 = vpack.c.bf16 %v330, %v327
        %v364 = vpack.c.bf16 %v331, %v328
        %v365 = vpack.c.bf16 %v332, %v329
        %v366 = vpack.c.bf16 %v336, %v333
        %v367 = vpack.c.bf16 %v337, %v334
        %v368 = vpack.c.bf16 %v338, %v335
        %v369 = vpack.c.bf16 %v342, %v339
        %v370 = vpack.c.bf16 %v343, %v340
        %v371 = vpack.c.bf16 %v344, %v341
        %v372 = vpack.c.bf16 %v348, %v345
        %v373 = vpack.c.bf16 %v349, %v346
        %v374 = vpack.c.bf16 %v350, %v347
        %v375 = vld [vmem:[#allocation7] sm:$0xff]
        %v376 = vld [vmem:[#allocation7 + $0x8] sm:$0xff]
        %v377 = vld [vmem:[#allocation7 + $0x10] sm:$0xff]
        %v378 = vld [vmem:[#allocation7 + $0x18] sm:$0xff]
        %v379 = vld [vmem:[#allocation7 + $0x20] sm:$0xff]
        %v380 = vld [vmem:[#allocation7 + $0x28] sm:$0xff]
        %v381 = vld [vmem:[#allocation7 + $0x30] sm:$0xff]
        %v382 = vld [vmem:[#allocation7 + $0x38] sm:$0xff]
        %v383 = vld [vmem:[#allocation7 + $0x40] sm:$0xff]
        %v384 = vld [vmem:[#allocation7 + $0x48] sm:$0xff]
        %v385 = vld [vmem:[#allocation7 + $0x50] sm:$0xff]
        %v386 = vld [vmem:[#allocation7 + $0x58] sm:$0xff]
        %v387 = vld [vmem:[#allocation7 + $0x60] sm:$0xff]
        %v388 = vld [vmem:[#allocation7 + $0x68] sm:$0xff]
        %v389 = vld [vmem:[#allocation7 + $0x70] sm:$0xff]
        %v390 = vld [vmem:[#allocation7 + $0x78] sm:$0xff]
        %v391 = vld [vmem:[#allocation7 + $0x80] sm:$0xff]
        %v392 = vld [vmem:[#allocation7 + $0x88] sm:$0xff]
        %v393 = vld [vmem:[#allocation7 + $0x90] sm:$0xff]
        %v394 = vld [vmem:[#allocation7 + $0x98] sm:$0xff]
        %v395 = vld [vmem:[#allocation7 + $0xa0] sm:$0xff]
        %v396 = vld [vmem:[#allocation7 + $0xa8] sm:$0xff]
        %v397 = vld [vmem:[#allocation7 + $0xb0] sm:$0xff]
        %v398 = vld [vmem:[#allocation7 + $0xb8] sm:$0xff]
        %v399 = vld [vmem:[#allocation7 + $0xc0] sm:$0xff]
        %v400 = vld [vmem:[#allocation7 + $0xc8] sm:$0xff]
        %v401 = vld [vmem:[#allocation7 + $0xd0] sm:$0xff]
        %v402 = vld [vmem:[#allocation7 + $0xd8] sm:$0xff]
        %v403 = vld [vmem:[#allocation7 + $0xe0] sm:$0xff]
        %v404 = vld [vmem:[#allocation7 + $0xe8] sm:$0xff]
        %v405 = vld [vmem:[#allocation7 + $0xf0] sm:$0xff]
        %v406 = vld [vmem:[#allocation7 + $0xf8] sm:$0xff]
        %v407 = vld [vmem:[#allocation7 + $0x100] sm:$0xff]
        %v408 = vld [vmem:[#allocation7 + $0x108] sm:$0xff]
        %v409 = vld [vmem:[#allocation7 + $0x110] sm:$0xff]
        %v410 = vld [vmem:[#allocation7 + $0x118] sm:$0xff]
        %v411 = vld [vmem:[#allocation7 + $0x120] sm:$0xff]
        %v412 = vld [vmem:[#allocation7 + $0x128] sm:$0xff]
        %v413 = vld [vmem:[#allocation7 + $0x130] sm:$0xff]
        %v414 = vld [vmem:[#allocation7 + $0x138] sm:$0xff]
        %v415 = vld [vmem:[#allocation7 + $0x140] sm:$0xff]
        %v416 = vld [vmem:[#allocation7 + $0x148] sm:$0xff]
        %v417 = vld [vmem:[#allocation7 + $0x150] sm:$0xff]
        %v418 = vld [vmem:[#allocation7 + $0x158] sm:$0xff]
        %v419 = vld [vmem:[#allocation7 + $0x160] sm:$0xff]
        %v420 = vld [vmem:[#allocation7 + $0x168] sm:$0xff]
        %v421 = vld [vmem:[#allocation7 + $0x170] sm:$0xff]
        %v422 = vld [vmem:[#allocation7 + $0x178] sm:$0xff]
        %v423 = vld [vmem:[#allocation7 + $0x180] sm:$0xff]
        %v424 = vld [vmem:[#allocation7 + $0x188] sm:$0xff]
        %v425 = vld [vmem:[#allocation7 + $0x190] sm:$0xff]
        %v426 = vld [vmem:[#allocation7 + $0x198] sm:$0xff]
        %v427 = vld [vmem:[#allocation7 + $0x1a0] sm:$0xff]
        %v428 = vld [vmem:[#allocation7 + $0x1a8] sm:$0xff]
        %v429 = vld [vmem:[#allocation7 + $0x1b0] sm:$0xff]
        %v430 = vld [vmem:[#allocation7 + $0x1b8] sm:$0xff]
        %v431 = vld [vmem:[#allocation7 + $0x1c0] sm:$0xff]
        %v432 = vld [vmem:[#allocation7 + $0x1c8] sm:$0xff]
        %v433 = vld [vmem:[#allocation7 + $0x1d0] sm:$0xff]
        %v434 = vld [vmem:[#allocation7 + $0x1d8] sm:$0xff]
        %v435 = vld [vmem:[#allocation7 + $0x1e0] sm:$0xff]
        %v436 = vld [vmem:[#allocation7 + $0x1e8] sm:$0xff]
        %v437 = vld [vmem:[#allocation7 + $0x1f0] sm:$0xff]
        %v438 = vld [vmem:[#allocation7 + $0x1f8] sm:$0xff]
        %v439 = vld [vmem:[#allocation7 + $0x200] sm:$0xff]
        %v440 = vld [vmem:[#allocation7 + $0x208] sm:$0xff]
        %v441 = vld [vmem:[#allocation7 + $0x210] sm:$0xff]
        %v442 = vld [vmem:[#allocation7 + $0x218] sm:$0xff]
        %v443 = vld [vmem:[#allocation7 + $0x220] sm:$0xff]
        %v444 = vld [vmem:[#allocation7 + $0x228] sm:$0xff]
        %v445 = vld [vmem:[#allocation7 + $0x230] sm:$0xff]
        %v446 = vld [vmem:[#allocation7 + $0x238] sm:$0xff]
        %v447 = vld [vmem:[#allocation7 + $0x240] sm:$0xff]
        %v448 = vld [vmem:[#allocation7 + $0x248] sm:$0xff]
        %v449 = vld [vmem:[#allocation7 + $0x250] sm:$0xff]
        %v450 = vld [vmem:[#allocation7 + $0x258] sm:$0xff]
        %v451 = vld [vmem:[#allocation7 + $0x260] sm:$0xff]
        %v452 = vld [vmem:[#allocation7 + $0x268] sm:$0xff]
        %v453 = vld [vmem:[#allocation7 + $0x270] sm:$0xff]
        %v454 = vld [vmem:[#allocation7 + $0x278] sm:$0xff]
        %v455 = vld [vmem:[#allocation7 + $0x280] sm:$0xff]
        %v456 = vld [vmem:[#allocation7 + $0x288] sm:$0xff]
        %v457 = vld [vmem:[#allocation7 + $0x290] sm:$0xff]
        %v458 = vld [vmem:[#allocation7 + $0x298] sm:$0xff]
        %v459 = vld [vmem:[#allocation7 + $0x2a0] sm:$0xff]
        %v460 = vld [vmem:[#allocation7 + $0x2a8] sm:$0xff]
        %v461 = vld [vmem:[#allocation7 + $0x2b0] sm:$0xff]
        %v462 = vld [vmem:[#allocation7 + $0x2b8] sm:$0xff]
        %v463 = vld [vmem:[#allocation7 + $0x2c0] sm:$0xff]
        %v464 = vld [vmem:[#allocation7 + $0x2c8] sm:$0xff]
        %v465 = vld [vmem:[#allocation7 + $0x2d0] sm:$0xff]
        %v466 = vld [vmem:[#allocation7 + $0x2d8] sm:$0xff]
        %v467 = vld [vmem:[#allocation7 + $0x2e0] sm:$0xff]
        %v468 = vld [vmem:[#allocation7 + $0x2e8] sm:$0xff]
        %v469 = vld [vmem:[#allocation7 + $0x2f0] sm:$0xff]
        %v470 = vld [vmem:[#allocation7 + $0x2f8] sm:$0xff]
        %v471 = vld [vmem:[#allocation7 + $0x300] sm:$0xff]
        %v472 = vld [vmem:[#allocation7 + $0x308] sm:$0xff]
        %v473 = vld [vmem:[#allocation7 + $0x310] sm:$0xff]
        %v474 = vld [vmem:[#allocation7 + $0x318] sm:$0xff]
        %v475 = vld [vmem:[#allocation7 + $0x320] sm:$0xff]
        %v476 = vld [vmem:[#allocation7 + $0x328] sm:$0xff]
        %v477 = vld [vmem:[#allocation7 + $0x330] sm:$0xff]
        %v478 = vld [vmem:[#allocation7 + $0x338] sm:$0xff]
        %v479 = vld [vmem:[#allocation7 + $0x340] sm:$0xff]
        %v480 = vld [vmem:[#allocation7 + $0x348] sm:$0xff]
        %v481 = vld [vmem:[#allocation7 + $0x350] sm:$0xff]
        %v482 = vld [vmem:[#allocation7 + $0x358] sm:$0xff]
        %v483 = vld [vmem:[#allocation7 + $0x360] sm:$0xff]
        %v484 = vld [vmem:[#allocation7 + $0x368] sm:$0xff]
        %v485 = vld [vmem:[#allocation7 + $0x370] sm:$0xff]
        %v486 = vld [vmem:[#allocation7 + $0x378] sm:$0xff]
        %v487 = vld [vmem:[#allocation7 + $0x380] sm:$0xff]
        %v488 = vld [vmem:[#allocation7 + $0x388] sm:$0xff]
        %v489 = vld [vmem:[#allocation7 + $0x390] sm:$0xff]
        %v490 = vld [vmem:[#allocation7 + $0x398] sm:$0xff]
        %v491 = vld [vmem:[#allocation7 + $0x3a0] sm:$0xff]
        %v492 = vld [vmem:[#allocation7 + $0x3a8] sm:$0xff]
        %v493 = vld [vmem:[#allocation7 + $0x3b0] sm:$0xff]
        %v494 = vld [vmem:[#allocation7 + $0x3b8] sm:$0xff]
        %v495 = vld [vmem:[#allocation7 + $0x3c0] sm:$0xff]
        %v496 = vld [vmem:[#allocation7 + $0x3c8] sm:$0xff]
        %v497 = vld [vmem:[#allocation7 + $0x3d0] sm:$0xff]
        %v498 = vld [vmem:[#allocation7 + $0x3d8] sm:$0xff]
        %v499 = vld [vmem:[#allocation7 + $0x3e0] sm:$0xff]
        %v500 = vld [vmem:[#allocation7 + $0x3e8] sm:$0xff]
        %v501 = vld [vmem:[#allocation7 + $0x3f0] sm:$0xff]
        %v502 = vld [vmem:[#allocation7 + $0x3f8] sm:$0xff]
        %v503 = vld [vmem:[#allocation7 + $0x400] sm:$0xff]
        %v504 = vld [vmem:[#allocation7 + $0x408] sm:$0xff]
        %v505 = vld [vmem:[#allocation7 + $0x410] sm:$0xff]
        %v506 = vld [vmem:[#allocation7 + $0x418] sm:$0xff]
        %v507 = vld [vmem:[#allocation7 + $0x420] sm:$0xff]
        %v508 = vld [vmem:[#allocation7 + $0x428] sm:$0xff]
        %v509 = vld [vmem:[#allocation7 + $0x430] sm:$0xff]
        %v510 = vld [vmem:[#allocation7 + $0x438] sm:$0xff]
        %v511 = vld [vmem:[#allocation7 + $0x440] sm:$0xff]
        %v512 = vld [vmem:[#allocation7 + $0x448] sm:$0xff]
        %v513 = vld [vmem:[#allocation7 + $0x450] sm:$0xff]
        %v514 = vld [vmem:[#allocation7 + $0x458] sm:$0xff]
        %v515 = vld [vmem:[#allocation7 + $0x460] sm:$0xff]
        %v516 = vld [vmem:[#allocation7 + $0x468] sm:$0xff]
        %v517 = vld [vmem:[#allocation7 + $0x470] sm:$0xff]
        %v518 = vld [vmem:[#allocation7 + $0x478] sm:$0xff]
        %v519 = vld [vmem:[#allocation7 + $0x480] sm:$0xff]
        %v520 = vld [vmem:[#allocation7 + $0x488] sm:$0xff]
        %v521 = vld [vmem:[#allocation7 + $0x490] sm:$0xff]
        %v522 = vld [vmem:[#allocation7 + $0x498] sm:$0xff]
        %v523 = vld [vmem:[#allocation7 + $0x4a0] sm:$0xff]
        %v524 = vld [vmem:[#allocation7 + $0x4a8] sm:$0xff]
        %v525 = vld [vmem:[#allocation7 + $0x4b0] sm:$0xff]
        %v526 = vld [vmem:[#allocation7 + $0x4b8] sm:$0xff]
        %v527 = vld [vmem:[#allocation7 + $0x4c0] sm:$0xff]
        %v528 = vld [vmem:[#allocation7 + $0x4c8] sm:$0xff]
        %v529 = vld [vmem:[#allocation7 + $0x4d0] sm:$0xff]
        %v530 = vld [vmem:[#allocation7 + $0x4d8] sm:$0xff]
        %v531 = vld [vmem:[#allocation7 + $0x4e0] sm:$0xff]
        %v532 = vld [vmem:[#allocation7 + $0x4e8] sm:$0xff]
        %v533 = vld [vmem:[#allocation7 + $0x4f0] sm:$0xff]
        %v534 = vld [vmem:[#allocation7 + $0x4f8] sm:$0xff]
        %v535 = vld [vmem:[#allocation7 + $0x500] sm:$0xff]
        %v536 = vld [vmem:[#allocation7 + $0x508] sm:$0xff]
        %v537 = vld [vmem:[#allocation7 + $0x510] sm:$0xff]
        %v538 = vld [vmem:[#allocation7 + $0x518] sm:$0xff]
        %v539 = vld [vmem:[#allocation7 + $0x520] sm:$0xff]
        %v540 = vld [vmem:[#allocation7 + $0x528] sm:$0xff]
        %v541 = vld [vmem:[#allocation7 + $0x530] sm:$0xff]
        %v542 = vld [vmem:[#allocation7 + $0x538] sm:$0xff]
        %v543 = vld [vmem:[#allocation7 + $0x540] sm:$0xff]
        %v544 = vld [vmem:[#allocation7 + $0x548] sm:$0xff]
        %v545 = vld [vmem:[#allocation7 + $0x550] sm:$0xff]
        %v546 = vld [vmem:[#allocation7 + $0x558] sm:$0xff]
        %v547 = vld [vmem:[#allocation7 + $0x560] sm:$0xff]
        %v548 = vld [vmem:[#allocation7 + $0x568] sm:$0xff]
        %v549 = vld [vmem:[#allocation7 + $0x570] sm:$0xff]
        %v550 = vld [vmem:[#allocation7 + $0x578] sm:$0xff]
        %v551 = vld [vmem:[#allocation7 + $0x580] sm:$0xff]
        %v552 = vld [vmem:[#allocation7 + $0x588] sm:$0xff]
        %v553 = vld [vmem:[#allocation7 + $0x590] sm:$0xff]
        %v554 = vld [vmem:[#allocation7 + $0x598] sm:$0xff]
        %v555 = vld [vmem:[#allocation7 + $0x5a0] sm:$0xff]
        %v556 = vld [vmem:[#allocation7 + $0x5a8] sm:$0xff]
        %v557 = vld [vmem:[#allocation7 + $0x5b0] sm:$0xff]
        %v558 = vld [vmem:[#allocation7 + $0x5b8] sm:$0xff]
        %v559 = vld [vmem:[#allocation7 + $0x5c0] sm:$0xff]
        %v560 = vld [vmem:[#allocation7 + $0x5c8] sm:$0xff]
        %v561 = vld [vmem:[#allocation7 + $0x5d0] sm:$0xff]
        %v562 = vld [vmem:[#allocation7 + $0x5d8] sm:$0xff]
        %v563 = vld [vmem:[#allocation7 + $0x5e0] sm:$0xff]
        %v564 = vld [vmem:[#allocation7 + $0x5e8] sm:$0xff]
        %v565 = vld [vmem:[#allocation7 + $0x5f0] sm:$0xff]
        %v566 = vld [vmem:[#allocation7 + $0x5f8] sm:$0xff]
        %v567 = vld [vmem:[#allocation7 + $0x600] sm:$0xff]
        %v568 = vld [vmem:[#allocation7 + $0x608] sm:$0xff]
        %v569 = vld [vmem:[#allocation7 + $0x610] sm:$0xff]
        %v570 = vld [vmem:[#allocation7 + $0x618] sm:$0xff]
        %v571 = vld [vmem:[#allocation7 + $0x620] sm:$0xff]
        %v572 = vld [vmem:[#allocation7 + $0x628] sm:$0xff]
        %v573 = vld [vmem:[#allocation7 + $0x630] sm:$0xff]
        %v574 = vld [vmem:[#allocation7 + $0x638] sm:$0xff]
        %v575 = vld [vmem:[#allocation7 + $0x640] sm:$0xff]
        %v576 = vld [vmem:[#allocation7 + $0x648] sm:$0xff]
        %v577 = vld [vmem:[#allocation7 + $0x650] sm:$0xff]
        %v578 = vld [vmem:[#allocation7 + $0x658] sm:$0xff]
        %v579 = vld [vmem:[#allocation7 + $0x660] sm:$0xff]
        %v580 = vld [vmem:[#allocation7 + $0x668] sm:$0xff]
        %v581 = vld [vmem:[#allocation7 + $0x670] sm:$0xff]
        %v582 = vld [vmem:[#allocation7 + $0x678] sm:$0xff]
        %v583 = vld [vmem:[#allocation7 + $0x680] sm:$0xff]
        %v584 = vld [vmem:[#allocation7 + $0x688] sm:$0xff]
        %v585 = vld [vmem:[#allocation7 + $0x690] sm:$0xff]
        %v586 = vld [vmem:[#allocation7 + $0x698] sm:$0xff]
        %v587 = vld [vmem:[#allocation7 + $0x6a0] sm:$0xff]
        %v588 = vld [vmem:[#allocation7 + $0x6a8] sm:$0xff]
        %v589 = vld [vmem:[#allocation7 + $0x6b0] sm:$0xff]
        %v590 = vld [vmem:[#allocation7 + $0x6b8] sm:$0xff]
        %v591 = vld [vmem:[#allocation7 + $0x6c0] sm:$0xff]
        %v592 = vld [vmem:[#allocation7 + $0x6c8] sm:$0xff]
        %v593 = vld [vmem:[#allocation7 + $0x6d0] sm:$0xff]
        %v594 = vld [vmem:[#allocation7 + $0x6d8] sm:$0xff]
        %v595 = vld [vmem:[#allocation7 + $0x6e0] sm:$0xff]
        %v596 = vld [vmem:[#allocation7 + $0x6e8] sm:$0xff]
        %v597 = vld [vmem:[#allocation7 + $0x6f0] sm:$0xff]
        %v598 = vld [vmem:[#allocation7 + $0x6f8] sm:$0xff]
        %v599 = vld [vmem:[#allocation7 + $0x700] sm:$0xff]
        %v600 = vld [vmem:[#allocation7 + $0x708] sm:$0xff]
        %v601 = vld [vmem:[#allocation7 + $0x710] sm:$0xff]
        %v602 = vld [vmem:[#allocation7 + $0x718] sm:$0xff]
        %v603 = vld [vmem:[#allocation7 + $0x720] sm:$0xff]
        %v604 = vld [vmem:[#allocation7 + $0x728] sm:$0xff]
        %v605 = vld [vmem:[#allocation7 + $0x730] sm:$0xff]
        %v606 = vld [vmem:[#allocation7 + $0x738] sm:$0xff]
        %v607 = vld [vmem:[#allocation7 + $0x740] sm:$0xff]
        %v608 = vld [vmem:[#allocation7 + $0x748] sm:$0xff]
        %v609 = vld [vmem:[#allocation7 + $0x750] sm:$0xff]
        %v610 = vld [vmem:[#allocation7 + $0x758] sm:$0xff]
        %v611 = vld [vmem:[#allocation7 + $0x760] sm:$0xff]
        %v612 = vld [vmem:[#allocation7 + $0x768] sm:$0xff]
        %v613 = vld [vmem:[#allocation7 + $0x770] sm:$0xff]
        %v614 = vld [vmem:[#allocation7 + $0x778] sm:$0xff]
        %v615 = vld [vmem:[#allocation7 + $0x780] sm:$0xff]
        %v616 = vld [vmem:[#allocation7 + $0x788] sm:$0xff]
        %v617 = vld [vmem:[#allocation7 + $0x790] sm:$0xff]
        %v618 = vld [vmem:[#allocation7 + $0x798] sm:$0xff]
        %v619 = vld [vmem:[#allocation7 + $0x7a0] sm:$0xff]
        %v620 = vld [vmem:[#allocation7 + $0x7a8] sm:$0xff]
        %v621 = vld [vmem:[#allocation7 + $0x7b0] sm:$0xff]
        %v622 = vld [vmem:[#allocation7 + $0x7b8] sm:$0xff]
        %v623 = vld [vmem:[#allocation7 + $0x7c0] sm:$0xff]
        %v624 = vld [vmem:[#allocation7 + $0x7c8] sm:$0xff]
        %v625 = vld [vmem:[#allocation7 + $0x7d0] sm:$0xff]
        %v626 = vld [vmem:[#allocation7 + $0x7d8] sm:$0xff]
        %v627 = vld [vmem:[#allocation7 + $0x7e0] sm:$0xff]
        %v628 = vld [vmem:[#allocation7 + $0x7e8] sm:$0xff]
        %v629 = vld [vmem:[#allocation7 + $0x7f0] sm:$0xff]
        %v630 = vld [vmem:[#allocation7 + $0x7f8] sm:$0xff]
        %v631 = vld [vmem:[#allocation7 + $0x800] sm:$0xff]
        %v632 = vld [vmem:[#allocation7 + $0x808] sm:$0xff]
        %v633 = vld [vmem:[#allocation7 + $0x810] sm:$0xff]
        %v634 = vld [vmem:[#allocation7 + $0x818] sm:$0xff]
        %v635 = vld [vmem:[#allocation7 + $0x820] sm:$0xff]
        %v636 = vld [vmem:[#allocation7 + $0x828] sm:$0xff]
        %v637 = vld [vmem:[#allocation7 + $0x830] sm:$0xff]
        %v638 = vld [vmem:[#allocation7 + $0x838] sm:$0xff]
        %v639 = vld [vmem:[#allocation7 + $0x840] sm:$0xff]
        %v640 = vld [vmem:[#allocation7 + $0x848] sm:$0xff]
        %v641 = vld [vmem:[#allocation7 + $0x850] sm:$0xff]
        %v642 = vld [vmem:[#allocation7 + $0x858] sm:$0xff]
        %v643 = vld [vmem:[#allocation7 + $0x860] sm:$0xff]
        %v644 = vld [vmem:[#allocation7 + $0x868] sm:$0xff]
        %v645 = vld [vmem:[#allocation7 + $0x870] sm:$0xff]
        %v646 = vld [vmem:[#allocation7 + $0x878] sm:$0xff]
        %v647 = vld [vmem:[#allocation7 + $0x880] sm:$0xff]
        %v648 = vld [vmem:[#allocation7 + $0x888] sm:$0xff]
        %v649 = vld [vmem:[#allocation7 + $0x890] sm:$0xff]
        %v650 = vld [vmem:[#allocation7 + $0x898] sm:$0xff]
        %v651 = vld [vmem:[#allocation7 + $0x8a0] sm:$0xff]
        %v652 = vld [vmem:[#allocation7 + $0x8a8] sm:$0xff]
        %v653 = vld [vmem:[#allocation7 + $0x8b0] sm:$0xff]
        %v654 = vld [vmem:[#allocation7 + $0x8b8] sm:$0xff]
        %v655 = vld [vmem:[#allocation7 + $0x8c0] sm:$0xff]
        %v656 = vld [vmem:[#allocation7 + $0x8c8] sm:$0xff]
        %v657 = vld [vmem:[#allocation7 + $0x8d0] sm:$0xff]
        %v658 = vld [vmem:[#allocation7 + $0x8d8] sm:$0xff]
        %v659 = vld [vmem:[#allocation7 + $0x8e0] sm:$0xff]
        %v660 = vld [vmem:[#allocation7 + $0x8e8] sm:$0xff]
        %v661 = vld [vmem:[#allocation7 + $0x8f0] sm:$0xff]
        %v662 = vld [vmem:[#allocation7 + $0x8f8] sm:$0xff]
        %v663 = vld [vmem:[#allocation9] sm:$0xff]
        %v664 = vld [vmem:[#allocation9 + $0x8] sm:$0xf]
        %v667 = vlaneseq
        %v668 = vshrl.u32 %v667, 7
        %v669 = vsub.s32 0, %v668
        %v670 = vrot.slane %v663, %v669
        %v671 = vlaneseq
        %v672 = vshrl.u32 %v671, 7
        %v673 = vsub.s32 1, %v672
        %v674 = vrot.slane %v663, %v673
        %v675 = vlaneseq
        %v676 = vshrl.u32 %v675, 7
        %v677 = vsub.s32 2, %v676
        %v678 = vrot.slane %v663, %v677
        %v679 = vlaneseq
        %v680 = vshrl.u32 %v679, 7
        %v681 = vsub.s32 3, %v680
        %v682 = vrot.slane %v663, %v681
        %v683 = vlaneseq
        %v684 = vshrl.u32 %v683, 7
        %v685 = vsub.s32 4, %v684
        %v686 = vrot.slane %v663, %v685
        %v687 = vlaneseq
        %v688 = vshrl.u32 %v687, 7
        %v689 = vsub.s32 5, %v688
        %v690 = vrot.slane %v663, %v689
        %v691 = vlaneseq
        %v692 = vshrl.u32 %v691, 7
        %v693 = vsub.s32 6, %v692
        %v694 = vrot.slane %v663, %v693
        %v695 = vlaneseq
        %v696 = vshrl.u32 %v695, 7
        %v697 = vsub.s32 7, %v696
        %v698 = vrot.slane %v663, %v697
        %v699 = vlaneseq
        %v700 = vshrl.u32 %v699, 7
        %v701 = vsub.s32 0, %v700
        %v702 = vrot.slane %v664, %v701
        %v703 = vlaneseq
        %v704 = vshrl.u32 %v703, 7
        %v705 = vsub.s32 1, %v704
        %v706 = vrot.slane %v664, %v705
        %v707 = vlaneseq
        %v708 = vshrl.u32 %v707, 7
        %v709 = vsub.s32 2, %v708
        %v710 = vrot.slane %v664, %v709
        %v711 = vlaneseq
        %v712 = vshrl.u32 %v711, 7
        %v713 = vsub.s32 3, %v712
        %v714 = vrot.slane %v664, %v713
        %v1015 = vunpack.c.l.b16 %v375
        %v1016 = vunpack.c.h.b16 %v375
        %v1017 = vunpack.c.l.b16 %v376
        %v1018 = vunpack.c.h.b16 %v376
        %v1019 = vunpack.c.l.b16 %v377
        %v1020 = vunpack.c.h.b16 %v377
        %v1021 = vunpack.c.l.b16 %v378
        %v1022 = vunpack.c.h.b16 %v378
        %v1023 = vunpack.c.l.b16 %v379
        %v1024 = vunpack.c.h.b16 %v379
        %v1025 = vunpack.c.l.b16 %v380
        %v1026 = vunpack.c.h.b16 %v380
        %v1027 = vunpack.c.l.b16 %v381
        %v1028 = vunpack.c.h.b16 %v381
        %v1029 = vunpack.c.l.b16 %v382
        %v1030 = vunpack.c.h.b16 %v382
        %v1031 = vunpack.c.l.b16 %v383
        %v1032 = vunpack.c.h.b16 %v383
        %v1033 = vunpack.c.l.b16 %v384
        %v1034 = vunpack.c.h.b16 %v384
        %v1035 = vunpack.c.l.b16 %v385
        %v1036 = vunpack.c.h.b16 %v385
        %v1037 = vunpack.c.l.b16 %v386
        %v1038 = vunpack.c.h.b16 %v386
        %v1039 = vunpack.c.l.b16 %v387
        %v1040 = vunpack.c.h.b16 %v387
        %v1041 = vunpack.c.l.b16 %v388
        %v1042 = vunpack.c.h.b16 %v388
        %v1043 = vunpack.c.l.b16 %v389
        %v1044 = vunpack.c.h.b16 %v389
        %v1045 = vunpack.c.l.b16 %v390
        %v1046 = vunpack.c.h.b16 %v390
        %v1047 = vunpack.c.l.b16 %v391
        %v1048 = vunpack.c.h.b16 %v391
        %v1049 = vunpack.c.l.b16 %v392
        %v1050 = vunpack.c.h.b16 %v392
        %v1051 = vunpack.c.l.b16 %v393
        %v1052 = vunpack.c.h.b16 %v393
        %v1053 = vunpack.c.l.b16 %v394
        %v1054 = vunpack.c.h.b16 %v394
        %v1055 = vunpack.c.l.b16 %v395
        %v1056 = vunpack.c.h.b16 %v395
        %v1057 = vunpack.c.l.b16 %v396
        %v1058 = vunpack.c.h.b16 %v396
        %v1059 = vunpack.c.l.b16 %v397
        %v1060 = vunpack.c.h.b16 %v397
        %v1061 = vunpack.c.l.b16 %v398
        %v1062 = vunpack.c.h.b16 %v398
        %v1063 = vunpack.c.l.b16 %v399
        %v1064 = vunpack.c.h.b16 %v399
        %v1065 = vunpack.c.l.b16 %v400
        %v1066 = vunpack.c.h.b16 %v400
        %v1067 = vunpack.c.l.b16 %v401
        %v1068 = vunpack.c.h.b16 %v401
        %v1069 = vunpack.c.l.b16 %v402
        %v1070 = vunpack.c.h.b16 %v402
        %v1071 = vunpack.c.l.b16 %v403
        %v1072 = vunpack.c.h.b16 %v403
        %v1073 = vunpack.c.l.b16 %v404
        %v1074 = vunpack.c.h.b16 %v404
        %v1075 = vunpack.c.l.b16 %v405
        %v1076 = vunpack.c.h.b16 %v405
        %v1077 = vunpack.c.l.b16 %v406
        %v1078 = vunpack.c.h.b16 %v406
        %v1079 = vunpack.c.l.b16 %v407
        %v1080 = vunpack.c.h.b16 %v407
        %v1081 = vunpack.c.l.b16 %v408
        %v1082 = vunpack.c.h.b16 %v408
        %v1083 = vunpack.c.l.b16 %v409
        %v1084 = vunpack.c.h.b16 %v409
        %v1085 = vunpack.c.l.b16 %v410
        %v1086 = vunpack.c.h.b16 %v410
        %v1087 = vunpack.c.l.b16 %v411
        %v1088 = vunpack.c.h.b16 %v411
        %v1089 = vunpack.c.l.b16 %v412
        %v1090 = vunpack.c.h.b16 %v412
        %v1091 = vunpack.c.l.b16 %v413
        %v1092 = vunpack.c.h.b16 %v413
        %v1093 = vunpack.c.l.b16 %v414
        %v1094 = vunpack.c.h.b16 %v414
        %v1095 = vunpack.c.l.b16 %v415
        %v1096 = vunpack.c.h.b16 %v415
        %v1097 = vunpack.c.l.b16 %v416
        %v1098 = vunpack.c.h.b16 %v416
        %v1099 = vunpack.c.l.b16 %v417
        %v1100 = vunpack.c.h.b16 %v417
        %v1101 = vunpack.c.l.b16 %v418
        %v1102 = vunpack.c.h.b16 %v418
        %v1103 = vunpack.c.l.b16 %v419
        %v1104 = vunpack.c.h.b16 %v419
        %v1105 = vunpack.c.l.b16 %v420
        %v1106 = vunpack.c.h.b16 %v420
        %v1107 = vunpack.c.l.b16 %v421
        %v1108 = vunpack.c.h.b16 %v421
        %v1109 = vunpack.c.l.b16 %v422
        %v1110 = vunpack.c.h.b16 %v422
        %v1111 = vunpack.c.l.b16 %v423
        %v1112 = vunpack.c.h.b16 %v423
        %v1113 = vunpack.c.l.b16 %v424
        %v1114 = vunpack.c.h.b16 %v424
        %v1115 = vunpack.c.l.b16 %v425
        %v1116 = vunpack.c.h.b16 %v425
        %v1117 = vunpack.c.l.b16 %v426
        %v1118 = vunpack.c.h.b16 %v426
        %v1119 = vunpack.c.l.b16 %v427
        %v1120 = vunpack.c.h.b16 %v427
        %v1121 = vunpack.c.l.b16 %v428
        %v1122 = vunpack.c.h.b16 %v428
        %v1123 = vunpack.c.l.b16 %v429
        %v1124 = vunpack.c.h.b16 %v429
        %v1125 = vunpack.c.l.b16 %v430
        %v1126 = vunpack.c.h.b16 %v430
        %v1127 = vunpack.c.l.b16 %v431
        %v1128 = vunpack.c.h.b16 %v431
        %v1129 = vunpack.c.l.b16 %v432
        %v1130 = vunpack.c.h.b16 %v432
        %v1131 = vunpack.c.l.b16 %v433
        %v1132 = vunpack.c.h.b16 %v433
        %v1133 = vunpack.c.l.b16 %v434
        %v1134 = vunpack.c.h.b16 %v434
        %v1135 = vunpack.c.l.b16 %v435
        %v1136 = vunpack.c.h.b16 %v435
        %v1137 = vunpack.c.l.b16 %v436
        %v1138 = vunpack.c.h.b16 %v436
        %v1139 = vunpack.c.l.b16 %v437
        %v1140 = vunpack.c.h.b16 %v437
        %v1141 = vunpack.c.l.b16 %v438
        %v1142 = vunpack.c.h.b16 %v438
        %v1143 = vunpack.c.l.b16 %v439
        %v1144 = vunpack.c.h.b16 %v439
        %v1145 = vunpack.c.l.b16 %v440
        %v1146 = vunpack.c.h.b16 %v440
        %v1147 = vunpack.c.l.b16 %v441
        %v1148 = vunpack.c.h.b16 %v441
        %v1149 = vunpack.c.l.b16 %v442
        %v1150 = vunpack.c.h.b16 %v442
        %v1151 = vunpack.c.l.b16 %v443
        %v1152 = vunpack.c.h.b16 %v443
        %v1153 = vunpack.c.l.b16 %v444
        %v1154 = vunpack.c.h.b16 %v444
        %v1155 = vunpack.c.l.b16 %v445
        %v1156 = vunpack.c.h.b16 %v445
        %v1157 = vunpack.c.l.b16 %v446
        %v1158 = vunpack.c.h.b16 %v446
        %v1159 = vunpack.c.l.b16 %v447
        %v1160 = vunpack.c.h.b16 %v447
        %v1161 = vunpack.c.l.b16 %v448
        %v1162 = vunpack.c.h.b16 %v448
        %v1163 = vunpack.c.l.b16 %v449
        %v1164 = vunpack.c.h.b16 %v449
        %v1165 = vunpack.c.l.b16 %v450
        %v1166 = vunpack.c.h.b16 %v450
        %v1167 = vunpack.c.l.b16 %v451
        %v1168 = vunpack.c.h.b16 %v451
        %v1169 = vunpack.c.l.b16 %v452
        %v1170 = vunpack.c.h.b16 %v452
        %v1171 = vunpack.c.l.b16 %v453
        %v1172 = vunpack.c.h.b16 %v453
        %v1173 = vunpack.c.l.b16 %v454
        %v1174 = vunpack.c.h.b16 %v454
        %v1175 = vunpack.c.l.b16 %v455
        %v1176 = vunpack.c.h.b16 %v455
        %v1177 = vunpack.c.l.b16 %v456
        %v1178 = vunpack.c.h.b16 %v456
        %v1179 = vunpack.c.l.b16 %v457
        %v1180 = vunpack.c.h.b16 %v457
        %v1181 = vunpack.c.l.b16 %v458
        %v1182 = vunpack.c.h.b16 %v458
        %v1183 = vunpack.c.l.b16 %v459
        %v1184 = vunpack.c.h.b16 %v459
        %v1185 = vunpack.c.l.b16 %v460
        %v1186 = vunpack.c.h.b16 %v460
        %v1187 = vunpack.c.l.b16 %v461
        %v1188 = vunpack.c.h.b16 %v461
        %v1189 = vunpack.c.l.b16 %v462
        %v1190 = vunpack.c.h.b16 %v462
        %v1191 = vunpack.c.l.b16 %v463
        %v1192 = vunpack.c.h.b16 %v463
        %v1193 = vunpack.c.l.b16 %v464
        %v1194 = vunpack.c.h.b16 %v464
        %v1195 = vunpack.c.l.b16 %v465
        %v1196 = vunpack.c.h.b16 %v465
        %v1197 = vunpack.c.l.b16 %v466
        %v1198 = vunpack.c.h.b16 %v466
        %v1199 = vunpack.c.l.b16 %v467
        %v1200 = vunpack.c.h.b16 %v467
        %v1201 = vunpack.c.l.b16 %v468
        %v1202 = vunpack.c.h.b16 %v468
        %v1203 = vunpack.c.l.b16 %v469
        %v1204 = vunpack.c.h.b16 %v469
        %v1205 = vunpack.c.l.b16 %v470
        %v1206 = vunpack.c.h.b16 %v470
        %v1207 = vunpack.c.l.b16 %v471
        %v1208 = vunpack.c.h.b16 %v471
        %v1209 = vunpack.c.l.b16 %v472
        %v1210 = vunpack.c.h.b16 %v472
        %v1211 = vunpack.c.l.b16 %v473
        %v1212 = vunpack.c.h.b16 %v473
        %v1213 = vunpack.c.l.b16 %v474
        %v1214 = vunpack.c.h.b16 %v474
        %v1215 = vunpack.c.l.b16 %v475
        %v1216 = vunpack.c.h.b16 %v475
        %v1217 = vunpack.c.l.b16 %v476
        %v1218 = vunpack.c.h.b16 %v476
        %v1219 = vunpack.c.l.b16 %v477
        %v1220 = vunpack.c.h.b16 %v477
        %v1221 = vunpack.c.l.b16 %v478
        %v1222 = vunpack.c.h.b16 %v478
        %v1223 = vunpack.c.l.b16 %v479
        %v1224 = vunpack.c.h.b16 %v479
        %v1225 = vunpack.c.l.b16 %v480
        %v1226 = vunpack.c.h.b16 %v480
        %v1227 = vunpack.c.l.b16 %v481
        %v1228 = vunpack.c.h.b16 %v481
        %v1229 = vunpack.c.l.b16 %v482
        %v1230 = vunpack.c.h.b16 %v482
        %v1231 = vunpack.c.l.b16 %v483
        %v1232 = vunpack.c.h.b16 %v483
        %v1233 = vunpack.c.l.b16 %v484
        %v1234 = vunpack.c.h.b16 %v484
        %v1235 = vunpack.c.l.b16 %v485
        %v1236 = vunpack.c.h.b16 %v485
        %v1237 = vunpack.c.l.b16 %v486
        %v1238 = vunpack.c.h.b16 %v486
        %v1239 = vunpack.c.l.b16 %v487
        %v1240 = vunpack.c.h.b16 %v487
        %v1241 = vunpack.c.l.b16 %v488
        %v1242 = vunpack.c.h.b16 %v488
        %v1243 = vunpack.c.l.b16 %v489
        %v1244 = vunpack.c.h.b16 %v489
        %v1245 = vunpack.c.l.b16 %v490
        %v1246 = vunpack.c.h.b16 %v490
        %v1247 = vunpack.c.l.b16 %v491
        %v1248 = vunpack.c.h.b16 %v491
        %v1249 = vunpack.c.l.b16 %v492
        %v1250 = vunpack.c.h.b16 %v492
        %v1251 = vunpack.c.l.b16 %v493
        %v1252 = vunpack.c.h.b16 %v493
        %v1253 = vunpack.c.l.b16 %v494
        %v1254 = vunpack.c.h.b16 %v494
        %v1255 = vunpack.c.l.b16 %v495
        %v1256 = vunpack.c.h.b16 %v495
        %v1257 = vunpack.c.l.b16 %v496
        %v1258 = vunpack.c.h.b16 %v496
        %v1259 = vunpack.c.l.b16 %v497
        %v1260 = vunpack.c.h.b16 %v497
        %v1261 = vunpack.c.l.b16 %v498
        %v1262 = vunpack.c.h.b16 %v498
        %v1263 = vunpack.c.l.b16 %v499
        %v1264 = vunpack.c.h.b16 %v499
        %v1265 = vunpack.c.l.b16 %v500
        %v1266 = vunpack.c.h.b16 %v500
        %v1267 = vunpack.c.l.b16 %v501
        %v1268 = vunpack.c.h.b16 %v501
        %v1269 = vunpack.c.l.b16 %v502
        %v1270 = vunpack.c.h.b16 %v502
        %v1271 = vunpack.c.l.b16 %v503
        %v1272 = vunpack.c.h.b16 %v503
        %v1273 = vunpack.c.l.b16 %v504
        %v1274 = vunpack.c.h.b16 %v504
        %v1275 = vunpack.c.l.b16 %v505
        %v1276 = vunpack.c.h.b16 %v505
        %v1277 = vunpack.c.l.b16 %v506
        %v1278 = vunpack.c.h.b16 %v506
        %v1279 = vunpack.c.l.b16 %v507
        %v1280 = vunpack.c.h.b16 %v507
        %v1281 = vunpack.c.l.b16 %v508
        %v1282 = vunpack.c.h.b16 %v508
        %v1283 = vunpack.c.l.b16 %v509
        %v1284 = vunpack.c.h.b16 %v509
        %v1285 = vunpack.c.l.b16 %v510
        %v1286 = vunpack.c.h.b16 %v510
        %v1287 = vunpack.c.l.b16 %v511
        %v1288 = vunpack.c.h.b16 %v511
        %v1289 = vunpack.c.l.b16 %v512
        %v1290 = vunpack.c.h.b16 %v512
        %v1291 = vunpack.c.l.b16 %v513
        %v1292 = vunpack.c.h.b16 %v513
        %v1293 = vunpack.c.l.b16 %v514
        %v1294 = vunpack.c.h.b16 %v514
        %v1295 = vunpack.c.l.b16 %v515
        %v1296 = vunpack.c.h.b16 %v515
        %v1297 = vunpack.c.l.b16 %v516
        %v1298 = vunpack.c.h.b16 %v516
        %v1299 = vunpack.c.l.b16 %v517
        %v1300 = vunpack.c.h.b16 %v517
        %v1301 = vunpack.c.l.b16 %v518
        %v1302 = vunpack.c.h.b16 %v518
        %v1303 = vunpack.c.l.b16 %v519
        %v1304 = vunpack.c.h.b16 %v519
        %v1305 = vunpack.c.l.b16 %v520
        %v1306 = vunpack.c.h.b16 %v520
        %v1307 = vunpack.c.l.b16 %v521
        %v1308 = vunpack.c.h.b16 %v521
        %v1309 = vunpack.c.l.b16 %v522
        %v1310 = vunpack.c.h.b16 %v522
        %v1311 = vunpack.c.l.b16 %v523
        %v1312 = vunpack.c.h.b16 %v523
        %v1313 = vunpack.c.l.b16 %v524
        %v1314 = vunpack.c.h.b16 %v524
        %v1315 = vunpack.c.l.b16 %v525
        %v1316 = vunpack.c.h.b16 %v525
        %v1317 = vunpack.c.l.b16 %v526
        %v1318 = vunpack.c.h.b16 %v526
        %v1319 = vunpack.c.l.b16 %v527
        %v1320 = vunpack.c.h.b16 %v527
        %v1321 = vunpack.c.l.b16 %v528
        %v1322 = vunpack.c.h.b16 %v528
        %v1323 = vunpack.c.l.b16 %v529
        %v1324 = vunpack.c.h.b16 %v529
        %v1325 = vunpack.c.l.b16 %v530
        %v1326 = vunpack.c.h.b16 %v530
        %v1327 = vunpack.c.l.b16 %v531
        %v1328 = vunpack.c.h.b16 %v531
        %v1329 = vunpack.c.l.b16 %v532
        %v1330 = vunpack.c.h.b16 %v532
        %v1331 = vunpack.c.l.b16 %v533
        %v1332 = vunpack.c.h.b16 %v533
        %v1333 = vunpack.c.l.b16 %v534
        %v1334 = vunpack.c.h.b16 %v534
        %v1335 = vunpack.c.l.b16 %v535
        %v1336 = vunpack.c.h.b16 %v535
        %v1337 = vunpack.c.l.b16 %v536
        %v1338 = vunpack.c.h.b16 %v536
        %v1339 = vunpack.c.l.b16 %v537
        %v1340 = vunpack.c.h.b16 %v537
        %v1341 = vunpack.c.l.b16 %v538
        %v1342 = vunpack.c.h.b16 %v538
        %v1343 = vunpack.c.l.b16 %v539
        %v1344 = vunpack.c.h.b16 %v539
        %v1345 = vunpack.c.l.b16 %v540
        %v1346 = vunpack.c.h.b16 %v540
        %v1347 = vunpack.c.l.b16 %v541
        %v1348 = vunpack.c.h.b16 %v541
        %v1349 = vunpack.c.l.b16 %v542
        %v1350 = vunpack.c.h.b16 %v542
        %v1351 = vunpack.c.l.b16 %v543
        %v1352 = vunpack.c.h.b16 %v543
        %v1353 = vunpack.c.l.b16 %v544
        %v1354 = vunpack.c.h.b16 %v544
        %v1355 = vunpack.c.l.b16 %v545
        %v1356 = vunpack.c.h.b16 %v545
        %v1357 = vunpack.c.l.b16 %v546
        %v1358 = vunpack.c.h.b16 %v546
        %v1359 = vunpack.c.l.b16 %v547
        %v1360 = vunpack.c.h.b16 %v547
        %v1361 = vunpack.c.l.b16 %v548
        %v1362 = vunpack.c.h.b16 %v548
        %v1363 = vunpack.c.l.b16 %v549
        %v1364 = vunpack.c.h.b16 %v549
        %v1365 = vunpack.c.l.b16 %v550
        %v1366 = vunpack.c.h.b16 %v550
        %v1367 = vunpack.c.l.b16 %v551
        %v1368 = vunpack.c.h.b16 %v551
        %v1369 = vunpack.c.l.b16 %v552
        %v1370 = vunpack.c.h.b16 %v552
        %v1371 = vunpack.c.l.b16 %v553
        %v1372 = vunpack.c.h.b16 %v553
        %v1373 = vunpack.c.l.b16 %v554
        %v1374 = vunpack.c.h.b16 %v554
        %v1375 = vunpack.c.l.b16 %v555
        %v1376 = vunpack.c.h.b16 %v555
        %v1377 = vunpack.c.l.b16 %v556
        %v1378 = vunpack.c.h.b16 %v556
        %v1379 = vunpack.c.l.b16 %v557
        %v1380 = vunpack.c.h.b16 %v557
        %v1381 = vunpack.c.l.b16 %v558
        %v1382 = vunpack.c.h.b16 %v558
        %v1383 = vunpack.c.l.b16 %v559
        %v1384 = vunpack.c.h.b16 %v559
        %v1385 = vunpack.c.l.b16 %v560
        %v1386 = vunpack.c.h.b16 %v560
        %v1387 = vunpack.c.l.b16 %v561
        %v1388 = vunpack.c.h.b16 %v561
        %v1389 = vunpack.c.l.b16 %v562
        %v1390 = vunpack.c.h.b16 %v562
        %v1391 = vunpack.c.l.b16 %v563
        %v1392 = vunpack.c.h.b16 %v563
        %v1393 = vunpack.c.l.b16 %v564
        %v1394 = vunpack.c.h.b16 %v564
        %v1395 = vunpack.c.l.b16 %v565
        %v1396 = vunpack.c.h.b16 %v565
        %v1397 = vunpack.c.l.b16 %v566
        %v1398 = vunpack.c.h.b16 %v566
        %v1399 = vunpack.c.l.b16 %v567
        %v1400 = vunpack.c.h.b16 %v567
        %v1401 = vunpack.c.l.b16 %v568
        %v1402 = vunpack.c.h.b16 %v568
        %v1403 = vunpack.c.l.b16 %v569
        %v1404 = vunpack.c.h.b16 %v569
        %v1405 = vunpack.c.l.b16 %v570
        %v1406 = vunpack.c.h.b16 %v570
        %v1407 = vunpack.c.l.b16 %v571
        %v1408 = vunpack.c.h.b16 %v571
        %v1409 = vunpack.c.l.b16 %v572
        %v1410 = vunpack.c.h.b16 %v572
        %v1411 = vunpack.c.l.b16 %v573
        %v1412 = vunpack.c.h.b16 %v573
        %v1413 = vunpack.c.l.b16 %v574
        %v1414 = vunpack.c.h.b16 %v574
        %v1415 = vunpack.c.l.b16 %v575
        %v1416 = vunpack.c.h.b16 %v575
        %v1417 = vunpack.c.l.b16 %v576
        %v1418 = vunpack.c.h.b16 %v576
        %v1419 = vunpack.c.l.b16 %v577
        %v1420 = vunpack.c.h.b16 %v577
        %v1421 = vunpack.c.l.b16 %v578
        %v1422 = vunpack.c.h.b16 %v578
        %v1423 = vunpack.c.l.b16 %v579
        %v1424 = vunpack.c.h.b16 %v579
        %v1425 = vunpack.c.l.b16 %v580
        %v1426 = vunpack.c.h.b16 %v580
        %v1427 = vunpack.c.l.b16 %v581
        %v1428 = vunpack.c.h.b16 %v581
        %v1429 = vunpack.c.l.b16 %v582
        %v1430 = vunpack.c.h.b16 %v582
        %v1431 = vunpack.c.l.b16 %v583
        %v1432 = vunpack.c.h.b16 %v583
        %v1433 = vunpack.c.l.b16 %v584
        %v1434 = vunpack.c.h.b16 %v584
        %v1435 = vunpack.c.l.b16 %v585
        %v1436 = vunpack.c.h.b16 %v585
        %v1437 = vunpack.c.l.b16 %v586
        %v1438 = vunpack.c.h.b16 %v586
        %v1439 = vunpack.c.l.b16 %v587
        %v1440 = vunpack.c.h.b16 %v587
        %v1441 = vunpack.c.l.b16 %v588
        %v1442 = vunpack.c.h.b16 %v588
        %v1443 = vunpack.c.l.b16 %v589
        %v1444 = vunpack.c.h.b16 %v589
        %v1445 = vunpack.c.l.b16 %v590
        %v1446 = vunpack.c.h.b16 %v590
        %v1447 = vunpack.c.l.b16 %v591
        %v1448 = vunpack.c.h.b16 %v591
        %v1449 = vunpack.c.l.b16 %v592
        %v1450 = vunpack.c.h.b16 %v592
        %v1451 = vunpack.c.l.b16 %v593
        %v1452 = vunpack.c.h.b16 %v593
        %v1453 = vunpack.c.l.b16 %v594
        %v1454 = vunpack.c.h.b16 %v594
        %v1455 = vunpack.c.l.b16 %v595
        %v1456 = vunpack.c.h.b16 %v595
        %v1457 = vunpack.c.l.b16 %v596
        %v1458 = vunpack.c.h.b16 %v596
        %v1459 = vunpack.c.l.b16 %v597
        %v1460 = vunpack.c.h.b16 %v597
        %v1461 = vunpack.c.l.b16 %v598
        %v1462 = vunpack.c.h.b16 %v598
        %v1463 = vunpack.c.l.b16 %v599
        %v1464 = vunpack.c.h.b16 %v599
        %v1465 = vunpack.c.l.b16 %v600
        %v1466 = vunpack.c.h.b16 %v600
        %v1467 = vunpack.c.l.b16 %v601
        %v1468 = vunpack.c.h.b16 %v601
        %v1469 = vunpack.c.l.b16 %v602
        %v1470 = vunpack.c.h.b16 %v602
        %v1471 = vunpack.c.l.b16 %v603
        %v1472 = vunpack.c.h.b16 %v603
        %v1473 = vunpack.c.l.b16 %v604
        %v1474 = vunpack.c.h.b16 %v604
        %v1475 = vunpack.c.l.b16 %v605
        %v1476 = vunpack.c.h.b16 %v605
        %v1477 = vunpack.c.l.b16 %v606
        %v1478 = vunpack.c.h.b16 %v606
        %v1479 = vunpack.c.l.b16 %v607
        %v1480 = vunpack.c.h.b16 %v607
        %v1481 = vunpack.c.l.b16 %v608
        %v1482 = vunpack.c.h.b16 %v608
        %v1483 = vunpack.c.l.b16 %v609
        %v1484 = vunpack.c.h.b16 %v609
        %v1485 = vunpack.c.l.b16 %v610
        %v1486 = vunpack.c.h.b16 %v610
        %v1487 = vunpack.c.l.b16 %v611
        %v1488 = vunpack.c.h.b16 %v611
        %v1489 = vunpack.c.l.b16 %v612
        %v1490 = vunpack.c.h.b16 %v612
        %v1491 = vunpack.c.l.b16 %v613
        %v1492 = vunpack.c.h.b16 %v613
        %v1493 = vunpack.c.l.b16 %v614
        %v1494 = vunpack.c.h.b16 %v614
        %v1495 = vunpack.c.l.b16 %v615
        %v1496 = vunpack.c.h.b16 %v615
        %v1497 = vunpack.c.l.b16 %v616
        %v1498 = vunpack.c.h.b16 %v616
        %v1499 = vunpack.c.l.b16 %v617
        %v1500 = vunpack.c.h.b16 %v617
        %v1501 = vunpack.c.l.b16 %v618
        %v1502 = vunpack.c.h.b16 %v618
        %v1503 = vunpack.c.l.b16 %v619
        %v1504 = vunpack.c.h.b16 %v619
        %v1505 = vunpack.c.l.b16 %v620
        %v1506 = vunpack.c.h.b16 %v620
        %v1507 = vunpack.c.l.b16 %v621
        %v1508 = vunpack.c.h.b16 %v621
        %v1509 = vunpack.c.l.b16 %v622
        %v1510 = vunpack.c.h.b16 %v622
        %v1511 = vunpack.c.l.b16 %v623
        %v1512 = vunpack.c.h.b16 %v623
        %v1513 = vunpack.c.l.b16 %v624
        %v1514 = vunpack.c.h.b16 %v624
        %v1515 = vunpack.c.l.b16 %v625
        %v1516 = vunpack.c.h.b16 %v625
        %v1517 = vunpack.c.l.b16 %v626
        %v1518 = vunpack.c.h.b16 %v626
        %v1519 = vunpack.c.l.b16 %v627
        %v1520 = vunpack.c.h.b16 %v627
        %v1521 = vunpack.c.l.b16 %v628
        %v1522 = vunpack.c.h.b16 %v628
        %v1523 = vunpack.c.l.b16 %v629
        %v1524 = vunpack.c.h.b16 %v629
        %v1525 = vunpack.c.l.b16 %v630
        %v1526 = vunpack.c.h.b16 %v630
        %v1527 = vunpack.c.l.b16 %v631
        %v1528 = vunpack.c.h.b16 %v631
        %v1529 = vunpack.c.l.b16 %v632
        %v1530 = vunpack.c.h.b16 %v632
        %v1531 = vunpack.c.l.b16 %v633
        %v1532 = vunpack.c.h.b16 %v633
        %v1533 = vunpack.c.l.b16 %v634
        %v1534 = vunpack.c.h.b16 %v634
        %v1535 = vunpack.c.l.b16 %v635
        %v1536 = vunpack.c.h.b16 %v635
        %v1537 = vunpack.c.l.b16 %v636
        %v1538 = vunpack.c.h.b16 %v636
        %v1539 = vunpack.c.l.b16 %v637
        %v1540 = vunpack.c.h.b16 %v637
        %v1541 = vunpack.c.l.b16 %v638
        %v1542 = vunpack.c.h.b16 %v638
        %v1543 = vunpack.c.l.b16 %v639
        %v1544 = vunpack.c.h.b16 %v639
        %v1545 = vunpack.c.l.b16 %v640
        %v1546 = vunpack.c.h.b16 %v640
        %v1547 = vunpack.c.l.b16 %v641
        %v1548 = vunpack.c.h.b16 %v641
        %v1549 = vunpack.c.l.b16 %v642
        %v1550 = vunpack.c.h.b16 %v642
        %v1551 = vunpack.c.l.b16 %v643
        %v1552 = vunpack.c.h.b16 %v643
        %v1553 = vunpack.c.l.b16 %v644
        %v1554 = vunpack.c.h.b16 %v644
        %v1555 = vunpack.c.l.b16 %v645
        %v1556 = vunpack.c.h.b16 %v645
        %v1557 = vunpack.c.l.b16 %v646
        %v1558 = vunpack.c.h.b16 %v646
        %v1559 = vunpack.c.l.b16 %v647
        %v1560 = vunpack.c.h.b16 %v647
        %v1561 = vunpack.c.l.b16 %v648
        %v1562 = vunpack.c.h.b16 %v648
        %v1563 = vunpack.c.l.b16 %v649
        %v1564 = vunpack.c.h.b16 %v649
        %v1565 = vunpack.c.l.b16 %v650
        %v1566 = vunpack.c.h.b16 %v650
        %v1567 = vunpack.c.l.b16 %v651
        %v1568 = vunpack.c.h.b16 %v651
        %v1569 = vunpack.c.l.b16 %v652
        %v1570 = vunpack.c.h.b16 %v652
        %v1571 = vunpack.c.l.b16 %v653
        %v1572 = vunpack.c.h.b16 %v653
        %v1573 = vunpack.c.l.b16 %v654
        %v1574 = vunpack.c.h.b16 %v654
        %v1575 = vunpack.c.l.b16 %v655
        %v1576 = vunpack.c.h.b16 %v655
        %v1577 = vunpack.c.l.b16 %v656
        %v1578 = vunpack.c.h.b16 %v656
        %v1579 = vunpack.c.l.b16 %v657
        %v1580 = vunpack.c.h.b16 %v657
        %v1581 = vunpack.c.l.b16 %v658
        %v1582 = vunpack.c.h.b16 %v658
        %v1583 = vunpack.c.l.b16 %v659
        %v1584 = vunpack.c.h.b16 %v659
        %v1585 = vunpack.c.l.b16 %v660
        %v1586 = vunpack.c.h.b16 %v660
        %v1587 = vunpack.c.l.b16 %v661
        %v1588 = vunpack.c.h.b16 %v661
        %v1589 = vunpack.c.l.b16 %v662
        %v1590 = vunpack.c.h.b16 %v662
        %v1591 = vpack.c.b16 %v1027, %v1015
        %v1592 = vpack.c.b16 %v1028, %v1016
        %v1593 = vpack.c.b16 %v1029, %v1017
        %v1594 = vpack.c.b16 %v1030, %v1018
        %v1595 = vpack.c.b16 %v1031, %v1019
        %v1596 = vpack.c.b16 %v1032, %v1020
        %v1597 = vpack.c.b16 %v1033, %v1021
        %v1598 = vpack.c.b16 %v1034, %v1022
        %v1599 = vpack.c.b16 %v1035, %v1023
        %v1600 = vpack.c.b16 %v1036, %v1024
        %v1601 = vpack.c.b16 %v1037, %v1025
        %v1602 = vpack.c.b16 %v1038, %v1026
        %v1603 = vpack.c.b16 %v1051, %v1039
        %v1604 = vpack.c.b16 %v1052, %v1040
        %v1605 = vpack.c.b16 %v1053, %v1041
        %v1606 = vpack.c.b16 %v1054, %v1042
        %v1607 = vpack.c.b16 %v1055, %v1043
        %v1608 = vpack.c.b16 %v1056, %v1044
        %v1609 = vpack.c.b16 %v1057, %v1045
        %v1610 = vpack.c.b16 %v1058, %v1046
        %v1611 = vpack.c.b16 %v1059, %v1047
        %v1612 = vpack.c.b16 %v1060, %v1048
        %v1613 = vpack.c.b16 %v1061, %v1049
        %v1614 = vpack.c.b16 %v1062, %v1050
        %v1615 = vpack.c.b16 %v1075, %v1063
        %v1616 = vpack.c.b16 %v1076, %v1064
        %v1617 = vpack.c.b16 %v1077, %v1065
        %v1618 = vpack.c.b16 %v1078, %v1066
        %v1619 = vpack.c.b16 %v1079, %v1067
        %v1620 = vpack.c.b16 %v1080, %v1068
        %v1621 = vpack.c.b16 %v1081, %v1069
        %v1622 = vpack.c.b16 %v1082, %v1070
        %v1623 = vpack.c.b16 %v1083, %v1071
        %v1624 = vpack.c.b16 %v1084, %v1072
        %v1625 = vpack.c.b16 %v1085, %v1073
        %v1626 = vpack.c.b16 %v1086, %v1074
        %v1627 = vpack.c.b16 %v1099, %v1087
        %v1628 = vpack.c.b16 %v1100, %v1088
        %v1629 = vpack.c.b16 %v1101, %v1089
        %v1630 = vpack.c.b16 %v1102, %v1090
        %v1631 = vpack.c.b16 %v1103, %v1091
        %v1632 = vpack.c.b16 %v1104, %v1092
        %v1633 = vpack.c.b16 %v1105, %v1093
        %v1634 = vpack.c.b16 %v1106, %v1094
        %v1635 = vpack.c.b16 %v1107, %v1095
        %v1636 = vpack.c.b16 %v1108, %v1096
        %v1637 = vpack.c.b16 %v1109, %v1097
        %v1638 = vpack.c.b16 %v1110, %v1098
        %v1639 = vpack.c.b16 %v1123, %v1111
        %v1640 = vpack.c.b16 %v1124, %v1112
        %v1641 = vpack.c.b16 %v1125, %v1113
        %v1642 = vpack.c.b16 %v1126, %v1114
        %v1643 = vpack.c.b16 %v1127, %v1115
        %v1644 = vpack.c.b16 %v1128, %v1116
        %v1645 = vpack.c.b16 %v1129, %v1117
        %v1646 = vpack.c.b16 %v1130, %v1118
        %v1647 = vpack.c.b16 %v1131, %v1119
        %v1648 = vpack.c.b16 %v1132, %v1120
        %v1649 = vpack.c.b16 %v1133, %v1121
        %v1650 = vpack.c.b16 %v1134, %v1122
        %v1651 = vpack.c.b16 %v1147, %v1135
        %v1652 = vpack.c.b16 %v1148, %v1136
        %v1653 = vpack.c.b16 %v1149, %v1137
        %v1654 = vpack.c.b16 %v1150, %v1138
        %v1655 = vpack.c.b16 %v1151, %v1139
        %v1656 = vpack.c.b16 %v1152, %v1140
        %v1657 = vpack.c.b16 %v1153, %v1141
        %v1658 = vpack.c.b16 %v1154, %v1142
        %v1659 = vpack.c.b16 %v1155, %v1143
        %v1660 = vpack.c.b16 %v1156, %v1144
        %v1661 = vpack.c.b16 %v1157, %v1145
        %v1662 = vpack.c.b16 %v1158, %v1146
        %v1663 = vpack.c.b16 %v1171, %v1159
        %v1664 = vpack.c.b16 %v1172, %v1160
        %v1665 = vpack.c.b16 %v1173, %v1161
        %v1666 = vpack.c.b16 %v1174, %v1162
        %v1667 = vpack.c.b16 %v1175, %v1163
        %v1668 = vpack.c.b16 %v1176, %v1164
        %v1669 = vpack.c.b16 %v1177, %v1165
        %v1670 = vpack.c.b16 %v1178, %v1166
        %v1671 = vpack.c.b16 %v1179, %v1167
        %v1672 = vpack.c.b16 %v1180, %v1168
        %v1673 = vpack.c.b16 %v1181, %v1169
        %v1674 = vpack.c.b16 %v1182, %v1170
        %v1675 = vpack.c.b16 %v1195, %v1183
        %v1676 = vpack.c.b16 %v1196, %v1184
        %v1677 = vpack.c.b16 %v1197, %v1185
        %v1678 = vpack.c.b16 %v1198, %v1186
        %v1679 = vpack.c.b16 %v1199, %v1187
        %v1680 = vpack.c.b16 %v1200, %v1188
        %v1681 = vpack.c.b16 %v1201, %v1189
        %v1682 = vpack.c.b16 %v1202, %v1190
        %v1683 = vpack.c.b16 %v1203, %v1191
        %v1684 = vpack.c.b16 %v1204, %v1192
        %v1685 = vpack.c.b16 %v1205, %v1193
        %v1686 = vpack.c.b16 %v1206, %v1194
        %v1687 = vpack.c.b16 %v1219, %v1207
        %v1688 = vpack.c.b16 %v1220, %v1208
        %v1689 = vpack.c.b16 %v1221, %v1209
        %v1690 = vpack.c.b16 %v1222, %v1210
        %v1691 = vpack.c.b16 %v1223, %v1211
        %v1692 = vpack.c.b16 %v1224, %v1212
        %v1693 = vpack.c.b16 %v1225, %v1213
        %v1694 = vpack.c.b16 %v1226, %v1214
        %v1695 = vpack.c.b16 %v1227, %v1215
        %v1696 = vpack.c.b16 %v1228, %v1216
        %v1697 = vpack.c.b16 %v1229, %v1217
        %v1698 = vpack.c.b16 %v1230, %v1218
        %v1699 = vpack.c.b16 %v1243, %v1231
        %v1700 = vpack.c.b16 %v1244, %v1232
        %v1701 = vpack.c.b16 %v1245, %v1233
        %v1702 = vpack.c.b16 %v1246, %v1234
        %v1703 = vpack.c.b16 %v1247, %v1235
        %v1704 = vpack.c.b16 %v1248, %v1236
        %v1705 = vpack.c.b16 %v1249, %v1237
        %v1706 = vpack.c.b16 %v1250, %v1238
        %v1707 = vpack.c.b16 %v1251, %v1239
        %v1708 = vpack.c.b16 %v1252, %v1240
        %v1709 = vpack.c.b16 %v1253, %v1241
        %v1710 = vpack.c.b16 %v1254, %v1242
        %v1711 = vpack.c.b16 %v1267, %v1255
        %v1712 = vpack.c.b16 %v1268, %v1256
        %v1713 = vpack.c.b16 %v1269, %v1257
        %v1714 = vpack.c.b16 %v1270, %v1258
        %v1715 = vpack.c.b16 %v1271, %v1259
        %v1716 = vpack.c.b16 %v1272, %v1260
        %v1717 = vpack.c.b16 %v1273, %v1261
        %v1718 = vpack.c.b16 %v1274, %v1262
        %v1719 = vpack.c.b16 %v1275, %v1263
        %v1720 = vpack.c.b16 %v1276, %v1264
        %v1721 = vpack.c.b16 %v1277, %v1265
        %v1722 = vpack.c.b16 %v1278, %v1266
        %v1723 = vpack.c.b16 %v1291, %v1279
        %v1724 = vpack.c.b16 %v1292, %v1280
        %v1725 = vpack.c.b16 %v1293, %v1281
        %v1726 = vpack.c.b16 %v1294, %v1282
        %v1727 = vpack.c.b16 %v1295, %v1283
        %v1728 = vpack.c.b16 %v1296, %v1284
        %v1729 = vpack.c.b16 %v1297, %v1285
        %v1730 = vpack.c.b16 %v1298, %v1286
        %v1731 = vpack.c.b16 %v1299, %v1287
        %v1732 = vpack.c.b16 %v1300, %v1288
        %v1733 = vpack.c.b16 %v1301, %v1289
        %v1734 = vpack.c.b16 %v1302, %v1290
        %v1735 = vpack.c.b16 %v1315, %v1303
        %v1736 = vpack.c.b16 %v1316, %v1304
        %v1737 = vpack.c.b16 %v1317, %v1305
        %v1738 = vpack.c.b16 %v1318, %v1306
        %v1739 = vpack.c.b16 %v1319, %v1307
        %v1740 = vpack.c.b16 %v1320, %v1308
        %v1741 = vpack.c.b16 %v1321, %v1309
        %v1742 = vpack.c.b16 %v1322, %v1310
        %v1743 = vpack.c.b16 %v1323, %v1311
        %v1744 = vpack.c.b16 %v1324, %v1312
        %v1745 = vpack.c.b16 %v1325, %v1313
        %v1746 = vpack.c.b16 %v1326, %v1314
        %v1747 = vpack.c.b16 %v1339, %v1327
        %v1748 = vpack.c.b16 %v1340, %v1328
        %v1749 = vpack.c.b16 %v1341, %v1329
        %v1750 = vpack.c.b16 %v1342, %v1330
        %v1751 = vpack.c.b16 %v1343, %v1331
        %v1752 = vpack.c.b16 %v1344, %v1332
        %v1753 = vpack.c.b16 %v1345, %v1333
        %v1754 = vpack.c.b16 %v1346, %v1334
        %v1755 = vpack.c.b16 %v1347, %v1335
        %v1756 = vpack.c.b16 %v1348, %v1336
        %v1757 = vpack.c.b16 %v1349, %v1337
        %v1758 = vpack.c.b16 %v1350, %v1338
        %v1759 = vpack.c.b16 %v1363, %v1351
        %v1760 = vpack.c.b16 %v1364, %v1352
        %v1761 = vpack.c.b16 %v1365, %v1353
        %v1762 = vpack.c.b16 %v1366, %v1354
        %v1763 = vpack.c.b16 %v1367, %v1355
        %v1764 = vpack.c.b16 %v1368, %v1356
        %v1765 = vpack.c.b16 %v1369, %v1357
        %v1766 = vpack.c.b16 %v1370, %v1358
        %v1767 = vpack.c.b16 %v1371, %v1359
        %v1768 = vpack.c.b16 %v1372, %v1360
        %v1769 = vpack.c.b16 %v1373, %v1361
        %v1770 = vpack.c.b16 %v1374, %v1362
        %v1771 = vpack.c.b16 %v1387, %v1375
        %v1772 = vpack.c.b16 %v1388, %v1376
        %v1773 = vpack.c.b16 %v1389, %v1377
        %v1774 = vpack.c.b16 %v1390, %v1378
        %v1775 = vpack.c.b16 %v1391, %v1379
        %v1776 = vpack.c.b16 %v1392, %v1380
        %v1777 = vpack.c.b16 %v1393, %v1381
        %v1778 = vpack.c.b16 %v1394, %v1382
        %v1779 = vpack.c.b16 %v1395, %v1383
        %v1780 = vpack.c.b16 %v1396, %v1384
        %v1781 = vpack.c.b16 %v1397, %v1385
        %v1782 = vpack.c.b16 %v1398, %v1386
        %v1783 = vpack.c.b16 %v1411, %v1399
        %v1784 = vpack.c.b16 %v1412, %v1400
        %v1785 = vpack.c.b16 %v1413, %v1401
        %v1786 = vpack.c.b16 %v1414, %v1402
        %v1787 = vpack.c.b16 %v1415, %v1403
        %v1788 = vpack.c.b16 %v1416, %v1404
        %v1789 = vpack.c.b16 %v1417, %v1405
        %v1790 = vpack.c.b16 %v1418, %v1406
        %v1791 = vpack.c.b16 %v1419, %v1407
        %v1792 = vpack.c.b16 %v1420, %v1408
        %v1793 = vpack.c.b16 %v1421, %v1409
        %v1794 = vpack.c.b16 %v1422, %v1410
        %v1795 = vpack.c.b16 %v1435, %v1423
        %v1796 = vpack.c.b16 %v1436, %v1424
        %v1797 = vpack.c.b16 %v1437, %v1425
        %v1798 = vpack.c.b16 %v1438, %v1426
        %v1799 = vpack.c.b16 %v1439, %v1427
        %v1800 = vpack.c.b16 %v1440, %v1428
        %v1801 = vpack.c.b16 %v1441, %v1429
        %v1802 = vpack.c.b16 %v1442, %v1430
        %v1803 = vpack.c.b16 %v1443, %v1431
        %v1804 = vpack.c.b16 %v1444, %v1432
        %v1805 = vpack.c.b16 %v1445, %v1433
        %v1806 = vpack.c.b16 %v1446, %v1434
        %v1807 = vpack.c.b16 %v1459, %v1447
        %v1808 = vpack.c.b16 %v1460, %v1448
        %v1809 = vpack.c.b16 %v1461, %v1449
        %v1810 = vpack.c.b16 %v1462, %v1450
        %v1811 = vpack.c.b16 %v1463, %v1451
        %v1812 = vpack.c.b16 %v1464, %v1452
        %v1813 = vpack.c.b16 %v1465, %v1453
        %v1814 = vpack.c.b16 %v1466, %v1454
        %v1815 = vpack.c.b16 %v1467, %v1455
        %v1816 = vpack.c.b16 %v1468, %v1456
        %v1817 = vpack.c.b16 %v1469, %v1457
        %v1818 = vpack.c.b16 %v1470, %v1458
        %v1819 = vpack.c.b16 %v1483, %v1471
        %v1820 = vpack.c.b16 %v1484, %v1472
        %v1821 = vpack.c.b16 %v1485, %v1473
        %v1822 = vpack.c.b16 %v1486, %v1474
        %v1823 = vpack.c.b16 %v1487, %v1475
        %v1824 = vpack.c.b16 %v1488, %v1476
        %v1825 = vpack.c.b16 %v1489, %v1477
        %v1826 = vpack.c.b16 %v1490, %v1478
        %v1827 = vpack.c.b16 %v1491, %v1479
        %v1828 = vpack.c.b16 %v1492, %v1480
        %v1829 = vpack.c.b16 %v1493, %v1481
        %v1830 = vpack.c.b16 %v1494, %v1482
        %v1831 = vpack.c.b16 %v1507, %v1495
        %v1832 = vpack.c.b16 %v1508, %v1496
        %v1833 = vpack.c.b16 %v1509, %v1497
        %v1834 = vpack.c.b16 %v1510, %v1498
        %v1835 = vpack.c.b16 %v1511, %v1499
        %v1836 = vpack.c.b16 %v1512, %v1500
        %v1837 = vpack.c.b16 %v1513, %v1501
        %v1838 = vpack.c.b16 %v1514, %v1502
        %v1839 = vpack.c.b16 %v1515, %v1503
        %v1840 = vpack.c.b16 %v1516, %v1504
        %v1841 = vpack.c.b16 %v1517, %v1505
        %v1842 = vpack.c.b16 %v1518, %v1506
        %v1843 = vpack.c.b16 %v1531, %v1519
        %v1844 = vpack.c.b16 %v1532, %v1520
        %v1845 = vpack.c.b16 %v1533, %v1521
        %v1846 = vpack.c.b16 %v1534, %v1522
        %v1847 = vpack.c.b16 %v1535, %v1523
        %v1848 = vpack.c.b16 %v1536, %v1524
        %v1849 = vpack.c.b16 %v1537, %v1525
        %v1850 = vpack.c.b16 %v1538, %v1526
        %v1851 = vpack.c.b16 %v1539, %v1527
        %v1852 = vpack.c.b16 %v1540, %v1528
        %v1853 = vpack.c.b16 %v1541, %v1529
        %v1854 = vpack.c.b16 %v1542, %v1530
        %v1855 = vpack.c.b16 %v1555, %v1543
        %v1856 = vpack.c.b16 %v1556, %v1544
        %v1857 = vpack.c.b16 %v1557, %v1545
        %v1858 = vpack.c.b16 %v1558, %v1546
        %v1859 = vpack.c.b16 %v1559, %v1547
        %v1860 = vpack.c.b16 %v1560, %v1548
        %v1861 = vpack.c.b16 %v1561, %v1549
        %v1862 = vpack.c.b16 %v1562, %v1550
        %v1863 = vpack.c.b16 %v1563, %v1551
        %v1864 = vpack.c.b16 %v1564, %v1552
        %v1865 = vpack.c.b16 %v1565, %v1553
        %v1866 = vpack.c.b16 %v1566, %v1554
        %v1867 = vpack.c.b16 %v1579, %v1567
        %v1868 = vpack.c.b16 %v1580, %v1568
        %v1869 = vpack.c.b16 %v1581, %v1569
        %v1870 = vpack.c.b16 %v1582, %v1570
        %v1871 = vpack.c.b16 %v1583, %v1571
        %v1872 = vpack.c.b16 %v1584, %v1572
        %v1873 = vpack.c.b16 %v1585, %v1573
        %v1874 = vpack.c.b16 %v1586, %v1574
        %v1875 = vpack.c.b16 %v1587, %v1575
        %v1876 = vpack.c.b16 %v1588, %v1576
        %v1877 = vpack.c.b16 %v1589, %v1577
        %v1878 = vpack.c.b16 %v1590, %v1578
        %2167 = vmatprep.subr.bf16.mxu0 %v1676
        %2168 = vmatpush1.bf16.msra.mxu0 %v1675
        %2169 = vmatprep.subr.bf16.mxu0 %v1664
        %2170 = vmatpush1.bf16.msra.mxu0 %v1663
        %2171 = vmatprep.subr.bf16.mxu0 %v1652
        %2172 = vmatpush1.bf16.msra.mxu0 %v1651
        %2173 = vmatprep.subr.bf16.mxu0 %v1640
        %2174 = vmatpush1.bf16.msra.mxu0 %v1639
        %2175 = vmatprep.subr.bf16.mxu0 %v1628
        %2176 = vmatpush1.bf16.msra.mxu0 %v1627
        %2177 = vmatprep.subr.bf16.mxu0 %v1616
        %2178 = vmatpush1.bf16.msra.mxu0 %v1615
        %2179 = vmatprep.subr.bf16.mxu0 %v1604
        %2180 = vmatpush1.bf16.msra.mxu0 %v1603
        %2181 = vmatprep.subr.bf16.mxu0 %v1592
        %2182 = vmatpush1.bf16.msra.mxu0 %v1591
        %2183 = vmatprep.subr.bf16.mxu0 %v1772
        %2184 = vmatpush2.bf16.msra.mxu0 %v1771
        %2185 = vmatprep.subr.bf16.mxu0 %v1760
        %2186 = vmatpush2.bf16.msra.mxu0 %v1759
        %2187 = vmatprep.subr.bf16.mxu0 %v1748
        %2188 = vmatpush2.bf16.msra.mxu0 %v1747
        %2189 = vmatprep.subr.bf16.mxu0 %v1736
        %2190 = vmatpush2.bf16.msra.mxu0 %v1735
        %2191 = vmatprep.subr.bf16.mxu0 %v1724
        %2192 = vmatpush2.bf16.msra.mxu0 %v1723
        %2193 = vmatprep.subr.bf16.mxu0 %v1712
        %2194 = vmatpush2.bf16.msra.mxu0 %v1711
        %2195 = vmatprep.subr.bf16.mxu0 %v1700
        %2196 = vmatpush2.bf16.msra.mxu0 %v1699
        %2197 = vmatprep.subr.bf16.mxu0 %v1688
        %2198 = vmatpush2.bf16.msra.mxu0 %v1687
        %2199 = vmatprep.mubr.bf16.mxu0 %v352
        %2200 = vmatmul.mubr.bf16.gmra.mxu0 %v351
        %v2201 = vpop.f32.mrf.mxu0
        %v2202 = vadd.f32 %v670, %v2201
        %v2203 = vpop.f32.mrf.mxu0
        %v2204 = vadd.f32 %v674, %v2203
        %v2205 = vpop.f32.mrf.mxu0
        %v2206 = vadd.f32 %v670, %v2205
        %v2207 = vpop.f32.mrf.mxu0
        %v2208 = vadd.f32 %v674, %v2207
        %2209 = vmatprep.mubr.bf16.mxu0 %v355
        %2210 = vmatmul.mubr.bf16.gmra.mxu0 %v354
        %v2211 = vpop.f32.mrf.mxu0
        %v2212 = vadd.f32 %v670, %v2211
        %v2213 = vpop.f32.mrf.mxu0
        %v2214 = vadd.f32 %v674, %v2213
        %v2215 = vpop.f32.mrf.mxu0
        %v2216 = vadd.f32 %v670, %v2215
        %v2217 = vpop.f32.mrf.mxu0
        %v2218 = vadd.f32 %v674, %v2217
        %2219 = vmatprep.mubr.bf16.mxu0 %v358
        %2220 = vmatmul.mubr.bf16.gmra.mxu0 %v357
        %v2221 = vpop.f32.mrf.mxu0
        %v2222 = vadd.f32 %v670, %v2221
        %v2223 = vpop.f32.mrf.mxu0
        %v2224 = vadd.f32 %v674, %v2223
        %v2225 = vpop.f32.mrf.mxu0
        %v2226 = vadd.f32 %v670, %v2225
        %v2227 = vpop.f32.mrf.mxu0
        %v2228 = vadd.f32 %v674, %v2227
        %2229 = vmatprep.mubr.bf16.mxu0 %v361
        %2230 = vmatmul.mubr.bf16.gmra.mxu0 %v360
        %v2231 = vpop.f32.mrf.mxu0
        %v2232 = vadd.f32 %v670, %v2231
        %v2233 = vpop.f32.mrf.mxu0
        %v2234 = vadd.f32 %v674, %v2233
        %v2235 = vpop.f32.mrf.mxu0
        %v2236 = vadd.f32 %v670, %v2235
        %v2237 = vpop.f32.mrf.mxu0
        %v2238 = vadd.f32 %v674, %v2237
        %2239 = vmatprep.mubr.bf16.mxu0 %v364
        %2240 = vmatmul.mubr.bf16.gmra.mxu0 %v363
        %v2241 = vpop.f32.mrf.mxu0
        %v2242 = vadd.f32 %v670, %v2241
        %v2243 = vpop.f32.mrf.mxu0
        %v2244 = vadd.f32 %v674, %v2243
        %v2245 = vpop.f32.mrf.mxu0
        %v2246 = vadd.f32 %v670, %v2245
        %v2247 = vpop.f32.mrf.mxu0
        %v2248 = vadd.f32 %v674, %v2247
        %2249 = vmatprep.mubr.bf16.mxu0 %v367
        %2250 = vmatmul.mubr.bf16.gmra.mxu0 %v366
        %v2251 = vpop.f32.mrf.mxu0
        %v2252 = vadd.f32 %v670, %v2251
        %v2253 = vpop.f32.mrf.mxu0
        %v2254 = vadd.f32 %v674, %v2253
        %v2255 = vpop.f32.mrf.mxu0
        %v2256 = vadd.f32 %v670, %v2255
        %v2257 = vpop.f32.mrf.mxu0
        %v2258 = vadd.f32 %v674, %v2257
        %2259 = vmatprep.mubr.bf16.mxu0 %v370
        %2260 = vmatmul.mubr.bf16.gmra.mxu0 %v369
        %v2261 = vpop.f32.mrf.mxu0
        %v2262 = vadd.f32 %v670, %v2261
        %v2263 = vpop.f32.mrf.mxu0
        %v2264 = vadd.f32 %v674, %v2263
        %v2265 = vpop.f32.mrf.mxu0
        %v2266 = vadd.f32 %v670, %v2265
        %v2267 = vpop.f32.mrf.mxu0
        %v2268 = vadd.f32 %v674, %v2267
        %2269 = vmatprep.mubr.bf16.mxu0 %v373
        %2270 = vmatmul.mubr.bf16.gmra.mxu0 %v372
        %v2271 = vpop.f32.mrf.mxu0
        %v2272 = vadd.f32 %v670, %v2271
        %v2273 = vpop.f32.mrf.mxu0
        %v2274 = vadd.f32 %v674, %v2273
        %v2275 = vpop.f32.mrf.mxu0
        %v2276 = vadd.f32 %v670, %v2275
        %v2277 = vpop.f32.mrf.mxu0
        %v2278 = vadd.f32 %v674, %v2277
        %2279 = vdwg.mxu0
        %2280 = vmatprep.subr.bf16.mxu0 %v1868
        %2281 = vmatpush1.bf16.msra.mxu0 %v1867
        %2282 = vmatprep.subr.bf16.mxu0 %v1856
        %2283 = vmatpush1.bf16.msra.mxu0 %v1855
        %2284 = vmatprep.subr.bf16.mxu0 %v1844
        %2285 = vmatpush1.bf16.msra.mxu0 %v1843
        %2286 = vmatprep.subr.bf16.mxu0 %v1832
        %2287 = vmatpush1.bf16.msra.mxu0 %v1831
        %2288 = vmatprep.subr.bf16.mxu0 %v1820
        %2289 = vmatpush1.bf16.msra.mxu0 %v1819
        %2290 = vmatprep.subr.bf16.mxu0 %v1808
        %2291 = vmatpush1.bf16.msra.mxu0 %v1807
        %2292 = vmatprep.subr.bf16.mxu0 %v1796
        %2293 = vmatpush1.bf16.msra.mxu0 %v1795
        %2294 = vmatprep.subr.bf16.mxu0 %v1784
        %2295 = vmatpush1.bf16.msra.mxu0 %v1783
        %2296 = vmatprep.subr.bf16.mxu0 0
        %2297 = vmatpush2.bf16.msra.mxu0 0
        %2298 = vmatprep.subr.bf16.mxu0 0
        %2299 = vmatpush2.bf16.msra.mxu0 0
        %2300 = vmatprep.subr.bf16.mxu0 0
        %2301 = vmatpush2.bf16.msra.mxu0 0
        %2302 = vmatprep.subr.bf16.mxu0 0
        %2303 = vmatpush2.bf16.msra.mxu0 0
        %2304 = vmatprep.subr.bf16.mxu0 0
        %2305 = vmatpush2.bf16.msra.mxu0 0
        %2306 = vmatprep.subr.bf16.mxu0 0
        %2307 = vmatpush2.bf16.msra.mxu0 0
        %2308 = vmatprep.subr.bf16.mxu0 0
        %2309 = vmatpush2.bf16.msra.mxu0 0
        %2310 = vmatprep.subr.bf16.mxu0 0
        %2311 = vmatpush2.bf16.msra.mxu0 0
        %2312 = vmatprep.mubr.bf16.mxu0 0
        %2313 = vmatmul.mubr.bf16.gmra.mxu0 %v353
        %v2314 = vpop.f32.mrf.mxu0
        %v2315 = vadd.f32 %v2202, %v2314
        %v2316 = vpop.f32.mrf.mxu0
        %v2317 = vadd.f32 %v2204, %v2316
        %v2318 = vpop.f32.mrf.mxu0
        %v2319 = vadd.f32 %v2206, %v2318
        %v2320 = vpop.f32.mrf.mxu0
        %v2321 = vadd.f32 %v2208, %v2320
        %2322 = vmatprep.mubr.bf16.mxu0 0
        %2323 = vmatmul.mubr.bf16.gmra.mxu0 %v356
        %v2324 = vpop.f32.mrf.mxu0
        %v2325 = vadd.f32 %v2212, %v2324
        %v2326 = vpop.f32.mrf.mxu0
        %v2327 = vadd.f32 %v2214, %v2326
        %v2328 = vpop.f32.mrf.mxu0
        %v2329 = vadd.f32 %v2216, %v2328
        %v2330 = vpop.f32.mrf.mxu0
        %v2331 = vadd.f32 %v2218, %v2330
        %2332 = vmatprep.mubr.bf16.mxu0 0
        %2333 = vmatmul.mubr.bf16.gmra.mxu0 %v359
        %v2334 = vpop.f32.mrf.mxu0
        %v2335 = vadd.f32 %v2222, %v2334
        %v2336 = vpop.f32.mrf.mxu0
        %v2337 = vadd.f32 %v2224, %v2336
        %v2338 = vpop.f32.mrf.mxu0
        %v2339 = vadd.f32 %v2226, %v2338
        %v2340 = vpop.f32.mrf.mxu0
        %v2341 = vadd.f32 %v2228, %v2340
        %2342 = vmatprep.mubr.bf16.mxu0 0
        %2343 = vmatmul.mubr.bf16.gmra.mxu0 %v362
        %v2344 = vpop.f32.mrf.mxu0
        %v2345 = vadd.f32 %v2232, %v2344
        %v2346 = vpop.f32.mrf.mxu0
        %v2347 = vadd.f32 %v2234, %v2346
        %v2348 = vpop.f32.mrf.mxu0
        %v2349 = vadd.f32 %v2236, %v2348
        %v2350 = vpop.f32.mrf.mxu0
        %v2351 = vadd.f32 %v2238, %v2350
        %2352 = vmatprep.mubr.bf16.mxu0 0
        %2353 = vmatmul.mubr.bf16.gmra.mxu0 %v365
        %v2354 = vpop.f32.mrf.mxu0
        %v2355 = vadd.f32 %v2242, %v2354
        %v2356 = vpop.f32.mrf.mxu0
        %v2357 = vadd.f32 %v2244, %v2356
        %v2358 = vpop.f32.mrf.mxu0
        %v2359 = vadd.f32 %v2246, %v2358
        %v2360 = vpop.f32.mrf.mxu0
        %v2361 = vadd.f32 %v2248, %v2360
        %2362 = vmatprep.mubr.bf16.mxu0 0
        %2363 = vmatmul.mubr.bf16.gmra.mxu0 %v368
        %v2364 = vpop.f32.mrf.mxu0
        %v2365 = vadd.f32 %v2252, %v2364
        %v2366 = vpop.f32.mrf.mxu0
        %v2367 = vadd.f32 %v2254, %v2366
        %v2368 = vpop.f32.mrf.mxu0
        %v2369 = vadd.f32 %v2256, %v2368
        %v2370 = vpop.f32.mrf.mxu0
        %v2371 = vadd.f32 %v2258, %v2370
        %2372 = vmatprep.mubr.bf16.mxu0 0
        %2373 = vmatmul.mubr.bf16.gmra.mxu0 %v371
        %v2374 = vpop.f32.mrf.mxu0
        %v2375 = vadd.f32 %v2262, %v2374
        %v2376 = vpop.f32.mrf.mxu0
        %v2377 = vadd.f32 %v2264, %v2376
        %v2378 = vpop.f32.mrf.mxu0
        %v2379 = vadd.f32 %v2266, %v2378
        %v2380 = vpop.f32.mrf.mxu0
        %v2381 = vadd.f32 %v2268, %v2380
        %2382 = vmatprep.mubr.bf16.mxu0 0
        %2383 = vmatmul.mubr.bf16.gmra.mxu0 %v374
        %v2384 = vpop.f32.mrf.mxu0
        %v2385 = vadd.f32 %v2272, %v2384
        %v2386 = vpop.f32.mrf.mxu0
        %v2387 = vadd.f32 %v2274, %v2386
        %v2388 = vpop.f32.mrf.mxu0
        %v2389 = vadd.f32 %v2276, %v2388
        %v2390 = vpop.f32.mrf.mxu0
        %v2391 = vadd.f32 %v2278, %v2390
        %2392 = vdwg.mxu0
        %2393 = vmatprep.subr.bf16.mxu0 %v1678
        %2394 = vmatpush1.bf16.msra.mxu0 %v1677
        %2395 = vmatprep.subr.bf16.mxu0 %v1666
        %2396 = vmatpush1.bf16.msra.mxu0 %v1665
        %2397 = vmatprep.subr.bf16.mxu0 %v1654
        %2398 = vmatpush1.bf16.msra.mxu0 %v1653
        %2399 = vmatprep.subr.bf16.mxu0 %v1642
        %2400 = vmatpush1.bf16.msra.mxu0 %v1641
        %2401 = vmatprep.subr.bf16.mxu0 %v1630
        %2402 = vmatpush1.bf16.msra.mxu0 %v1629
        %2403 = vmatprep.subr.bf16.mxu0 %v1618
        %2404 = vmatpush1.bf16.msra.mxu0 %v1617
        %2405 = vmatprep.subr.bf16.mxu0 %v1606
        %2406 = vmatpush1.bf16.msra.mxu0 %v1605
        %2407 = vmatprep.subr.bf16.mxu0 %v1594
        %2408 = vmatpush1.bf16.msra.mxu0 %v1593
        %2409 = vmatprep.subr.bf16.mxu0 %v1774
        %2410 = vmatpush2.bf16.msra.mxu0 %v1773
        %2411 = vmatprep.subr.bf16.mxu0 %v1762
        %2412 = vmatpush2.bf16.msra.mxu0 %v1761
        %2413 = vmatprep.subr.bf16.mxu0 %v1750
        %2414 = vmatpush2.bf16.msra.mxu0 %v1749
        %2415 = vmatprep.subr.bf16.mxu0 %v1738
        %2416 = vmatpush2.bf16.msra.mxu0 %v1737
        %2417 = vmatprep.subr.bf16.mxu0 %v1726
        %2418 = vmatpush2.bf16.msra.mxu0 %v1725
        %2419 = vmatprep.subr.bf16.mxu0 %v1714
        %2420 = vmatpush2.bf16.msra.mxu0 %v1713
        %2421 = vmatprep.subr.bf16.mxu0 %v1702
        %2422 = vmatpush2.bf16.msra.mxu0 %v1701
        %2423 = vmatprep.subr.bf16.mxu0 %v1690
        %2424 = vmatpush2.bf16.msra.mxu0 %v1689
        %2425 = vmatprep.mubr.bf16.mxu0 %v352
        %2426 = vmatmul.mubr.bf16.gmra.mxu0 %v351
        %v2427 = vpop.f32.mrf.mxu0
        %v2428 = vadd.f32 %v678, %v2427
        %v2429 = vpop.f32.mrf.mxu0
        %v2430 = vadd.f32 %v682, %v2429
        %v2431 = vpop.f32.mrf.mxu0
        %v2432 = vadd.f32 %v678, %v2431
        %v2433 = vpop.f32.mrf.mxu0
        %v2434 = vadd.f32 %v682, %v2433
        %2435 = vmatprep.mubr.bf16.mxu0 %v355
        %2436 = vmatmul.mubr.bf16.gmra.mxu0 %v354
        %v2437 = vpop.f32.mrf.mxu0
        %v2438 = vadd.f32 %v678, %v2437
        %v2439 = vpop.f32.mrf.mxu0
        %v2440 = vadd.f32 %v682, %v2439
        %v2441 = vpop.f32.mrf.mxu0
        %v2442 = vadd.f32 %v678, %v2441
        %v2443 = vpop.f32.mrf.mxu0
        %v2444 = vadd.f32 %v682, %v2443
        %2445 = vmatprep.mubr.bf16.mxu0 %v358
        %2446 = vmatmul.mubr.bf16.gmra.mxu0 %v357
        %v2447 = vpop.f32.mrf.mxu0
        %v2448 = vadd.f32 %v678, %v2447
        %v2449 = vpop.f32.mrf.mxu0
        %v2450 = vadd.f32 %v682, %v2449
        %v2451 = vpop.f32.mrf.mxu0
        %v2452 = vadd.f32 %v678, %v2451
        %v2453 = vpop.f32.mrf.mxu0
        %v2454 = vadd.f32 %v682, %v2453
        %2455 = vmatprep.mubr.bf16.mxu0 %v361
        %2456 = vmatmul.mubr.bf16.gmra.mxu0 %v360
        %v2457 = vpop.f32.mrf.mxu0
        %v2458 = vadd.f32 %v678, %v2457
        %v2459 = vpop.f32.mrf.mxu0
        %v2460 = vadd.f32 %v682, %v2459
        %v2461 = vpop.f32.mrf.mxu0
        %v2462 = vadd.f32 %v678, %v2461
        %v2463 = vpop.f32.mrf.mxu0
        %v2464 = vadd.f32 %v682, %v2463
        %2465 = vmatprep.mubr.bf16.mxu0 %v364
        %2466 = vmatmul.mubr.bf16.gmra.mxu0 %v363
        %v2467 = vpop.f32.mrf.mxu0
        %v2468 = vadd.f32 %v678, %v2467
        %v2469 = vpop.f32.mrf.mxu0
        %v2470 = vadd.f32 %v682, %v2469
        %v2471 = vpop.f32.mrf.mxu0
        %v2472 = vadd.f32 %v678, %v2471
        %v2473 = vpop.f32.mrf.mxu0
        %v2474 = vadd.f32 %v682, %v2473
        %2475 = vmatprep.mubr.bf16.mxu0 %v367
        %2476 = vmatmul.mubr.bf16.gmra.mxu0 %v366
        %v2477 = vpop.f32.mrf.mxu0
        %v2478 = vadd.f32 %v678, %v2477
        %v2479 = vpop.f32.mrf.mxu0
        %v2480 = vadd.f32 %v682, %v2479
        %v2481 = vpop.f32.mrf.mxu0
        %v2482 = vadd.f32 %v678, %v2481
        %v2483 = vpop.f32.mrf.mxu0
        %v2484 = vadd.f32 %v682, %v2483
        %2485 = vmatprep.mubr.bf16.mxu0 %v370
        %2486 = vmatmul.mubr.bf16.gmra.mxu0 %v369
        %v2487 = vpop.f32.mrf.mxu0
        %v2488 = vadd.f32 %v678, %v2487
        %v2489 = vpop.f32.mrf.mxu0
        %v2490 = vadd.f32 %v682, %v2489
        %v2491 = vpop.f32.mrf.mxu0
        %v2492 = vadd.f32 %v678, %v2491
        %v2493 = vpop.f32.mrf.mxu0
        %v2494 = vadd.f32 %v682, %v2493
        %2495 = vmatprep.mubr.bf16.mxu0 %v373
        %2496 = vmatmul.mubr.bf16.gmra.mxu0 %v372
        %v2497 = vpop.f32.mrf.mxu0
        %v2498 = vadd.f32 %v678, %v2497
        %v2499 = vpop.f32.mrf.mxu0
        %v2500 = vadd.f32 %v682, %v2499
        %v2501 = vpop.f32.mrf.mxu0
        %v2502 = vadd.f32 %v678, %v2501
        %v2503 = vpop.f32.mrf.mxu0
        %v2504 = vadd.f32 %v682, %v2503
        %2505 = vdwg.mxu0
        %2506 = vmatprep.subr.bf16.mxu0 %v1870
        %2507 = vmatpush1.bf16.msra.mxu0 %v1869
        %2508 = vmatprep.subr.bf16.mxu0 %v1858
        %2509 = vmatpush1.bf16.msra.mxu0 %v1857
        %2510 = vmatprep.subr.bf16.mxu0 %v1846
        %2511 = vmatpush1.bf16.msra.mxu0 %v1845
        %2512 = vmatprep.subr.bf16.mxu0 %v1834
        %2513 = vmatpush1.bf16.msra.mxu0 %v1833
        %2514 = vmatprep.subr.bf16.mxu0 %v1822
        %2515 = vmatpush1.bf16.msra.mxu0 %v1821
        %2516 = vmatprep.subr.bf16.mxu0 %v1810
        %2517 = vmatpush1.bf16.msra.mxu0 %v1809
        %2518 = vmatprep.subr.bf16.mxu0 %v1798
        %2519 = vmatpush1.bf16.msra.mxu0 %v1797
        %2520 = vmatprep.subr.bf16.mxu0 %v1786
        %2521 = vmatpush1.bf16.msra.mxu0 %v1785
        %2522 = vmatprep.subr.bf16.mxu0 0
        %2523 = vmatpush2.bf16.msra.mxu0 0
        %2524 = vmatprep.subr.bf16.mxu0 0
        %2525 = vmatpush2.bf16.msra.mxu0 0
        %2526 = vmatprep.subr.bf16.mxu0 0
        %2527 = vmatpush2.bf16.msra.mxu0 0
        %2528 = vmatprep.subr.bf16.mxu0 0
        %2529 = vmatpush2.bf16.msra.mxu0 0
        %2530 = vmatprep.subr.bf16.mxu0 0
        %2531 = vmatpush2.bf16.msra.mxu0 0
        %2532 = vmatprep.subr.bf16.mxu0 0
        %2533 = vmatpush2.bf16.msra.mxu0 0
        %2534 = vmatprep.subr.bf16.mxu0 0
        %2535 = vmatpush2.bf16.msra.mxu0 0
        %2536 = vmatprep.subr.bf16.mxu0 0
        %2537 = vmatpush2.bf16.msra.mxu0 0
        %2538 = vmatprep.mubr.bf16.mxu0 0
        %2539 = vmatmul.mubr.bf16.gmra.mxu0 %v353
        %v2540 = vpop.f32.mrf.mxu0
        %v2541 = vadd.f32 %v2428, %v2540
        %v2542 = vpop.f32.mrf.mxu0
        %v2543 = vadd.f32 %v2430, %v2542
        %v2544 = vpop.f32.mrf.mxu0
        %v2545 = vadd.f32 %v2432, %v2544
        %v2546 = vpop.f32.mrf.mxu0
        %v2547 = vadd.f32 %v2434, %v2546
        %2548 = vmatprep.mubr.bf16.mxu0 0
        %2549 = vmatmul.mubr.bf16.gmra.mxu0 %v356
        %v2550 = vpop.f32.mrf.mxu0
        %v2551 = vadd.f32 %v2438, %v2550
        %v2552 = vpop.f32.mrf.mxu0
        %v2553 = vadd.f32 %v2440, %v2552
        %v2554 = vpop.f32.mrf.mxu0
        %v2555 = vadd.f32 %v2442, %v2554
        %v2556 = vpop.f32.mrf.mxu0
        %v2557 = vadd.f32 %v2444, %v2556
        %2558 = vmatprep.mubr.bf16.mxu0 0
        %2559 = vmatmul.mubr.bf16.gmra.mxu0 %v359
        %v2560 = vpop.f32.mrf.mxu0
        %v2561 = vadd.f32 %v2448, %v2560
        %v2562 = vpop.f32.mrf.mxu0
        %v2563 = vadd.f32 %v2450, %v2562
        %v2564 = vpop.f32.mrf.mxu0
        %v2565 = vadd.f32 %v2452, %v2564
        %v2566 = vpop.f32.mrf.mxu0
        %v2567 = vadd.f32 %v2454, %v2566
        %2568 = vmatprep.mubr.bf16.mxu0 0
        %2569 = vmatmul.mubr.bf16.gmra.mxu0 %v362
        %v2570 = vpop.f32.mrf.mxu0
        %v2571 = vadd.f32 %v2458, %v2570
        %v2572 = vpop.f32.mrf.mxu0
        %v2573 = vadd.f32 %v2460, %v2572
        %v2574 = vpop.f32.mrf.mxu0
        %v2575 = vadd.f32 %v2462, %v2574
        %v2576 = vpop.f32.mrf.mxu0
        %v2577 = vadd.f32 %v2464, %v2576
        %2578 = vmatprep.mubr.bf16.mxu0 0
        %2579 = vmatmul.mubr.bf16.gmra.mxu0 %v365
        %v2580 = vpop.f32.mrf.mxu0
        %v2581 = vadd.f32 %v2468, %v2580
        %v2582 = vpop.f32.mrf.mxu0
        %v2583 = vadd.f32 %v2470, %v2582
        %v2584 = vpop.f32.mrf.mxu0
        %v2585 = vadd.f32 %v2472, %v2584
        %v2586 = vpop.f32.mrf.mxu0
        %v2587 = vadd.f32 %v2474, %v2586
        %2588 = vmatprep.mubr.bf16.mxu0 0
        %2589 = vmatmul.mubr.bf16.gmra.mxu0 %v368
        %v2590 = vpop.f32.mrf.mxu0
        %v2591 = vadd.f32 %v2478, %v2590
        %v2592 = vpop.f32.mrf.mxu0
        %v2593 = vadd.f32 %v2480, %v2592
        %v2594 = vpop.f32.mrf.mxu0
        %v2595 = vadd.f32 %v2482, %v2594
        %v2596 = vpop.f32.mrf.mxu0
        %v2597 = vadd.f32 %v2484, %v2596
        %2598 = vmatprep.mubr.bf16.mxu0 0
        %2599 = vmatmul.mubr.bf16.gmra.mxu0 %v371
        %v2600 = vpop.f32.mrf.mxu0
        %v2601 = vadd.f32 %v2488, %v2600
        %v2602 = vpop.f32.mrf.mxu0
        %v2603 = vadd.f32 %v2490, %v2602
        %v2604 = vpop.f32.mrf.mxu0
        %v2605 = vadd.f32 %v2492, %v2604
        %v2606 = vpop.f32.mrf.mxu0
        %v2607 = vadd.f32 %v2494, %v2606
        %2608 = vmatprep.mubr.bf16.mxu0 0
        %2609 = vmatmul.mubr.bf16.gmra.mxu0 %v374
        %v2610 = vpop.f32.mrf.mxu0
        %v2611 = vadd.f32 %v2498, %v2610
        %v2612 = vpop.f32.mrf.mxu0
        %v2613 = vadd.f32 %v2500, %v2612
        %v2614 = vpop.f32.mrf.mxu0
        %v2615 = vadd.f32 %v2502, %v2614
        %v2616 = vpop.f32.mrf.mxu0
        %v2617 = vadd.f32 %v2504, %v2616
        %2618 = vdwg.mxu0
        %2619 = vmatprep.subr.bf16.mxu0 %v1680
        %2620 = vmatpush1.bf16.msra.mxu0 %v1679
        %2621 = vmatprep.subr.bf16.mxu0 %v1668
        %2622 = vmatpush1.bf16.msra.mxu0 %v1667
        %2623 = vmatprep.subr.bf16.mxu0 %v1656
        %2624 = vmatpush1.bf16.msra.mxu0 %v1655
        %2625 = vmatprep.subr.bf16.mxu0 %v1644
        %2626 = vmatpush1.bf16.msra.mxu0 %v1643
        %2627 = vmatprep.subr.bf16.mxu0 %v1632
        %2628 = vmatpush1.bf16.msra.mxu0 %v1631
        %2629 = vmatprep.subr.bf16.mxu0 %v1620
        %2630 = vmatpush1.bf16.msra.mxu0 %v1619
        %2631 = vmatprep.subr.bf16.mxu0 %v1608
        %2632 = vmatpush1.bf16.msra.mxu0 %v1607
        %2633 = vmatprep.subr.bf16.mxu0 %v1596
        %2634 = vmatpush1.bf16.msra.mxu0 %v1595
        %2635 = vmatprep.subr.bf16.mxu0 %v1776
        %2636 = vmatpush2.bf16.msra.mxu0 %v1775
        %2637 = vmatprep.subr.bf16.mxu0 %v1764
        %2638 = vmatpush2.bf16.msra.mxu0 %v1763
        %2639 = vmatprep.subr.bf16.mxu0 %v1752
        %2640 = vmatpush2.bf16.msra.mxu0 %v1751
        %2641 = vmatprep.subr.bf16.mxu0 %v1740
        %2642 = vmatpush2.bf16.msra.mxu0 %v1739
        %2643 = vmatprep.subr.bf16.mxu0 %v1728
        %2644 = vmatpush2.bf16.msra.mxu0 %v1727
        %2645 = vmatprep.subr.bf16.mxu0 %v1716
        %2646 = vmatpush2.bf16.msra.mxu0 %v1715
        %2647 = vmatprep.subr.bf16.mxu0 %v1704
        %2648 = vmatpush2.bf16.msra.mxu0 %v1703
        %2649 = vmatprep.subr.bf16.mxu0 %v1692
        %2650 = vmatpush2.bf16.msra.mxu0 %v1691
        %2651 = vmatprep.mubr.bf16.mxu0 %v352
        %2652 = vmatmul.mubr.bf16.gmra.mxu0 %v351
        %v2653 = vpop.f32.mrf.mxu0
        %v2654 = vadd.f32 %v686, %v2653
        %v2655 = vpop.f32.mrf.mxu0
        %v2656 = vadd.f32 %v690, %v2655
        %v2657 = vpop.f32.mrf.mxu0
        %v2658 = vadd.f32 %v686, %v2657
        %v2659 = vpop.f32.mrf.mxu0
        %v2660 = vadd.f32 %v690, %v2659
        %2661 = vmatprep.mubr.bf16.mxu0 %v355
        %2662 = vmatmul.mubr.bf16.gmra.mxu0 %v354
        %v2663 = vpop.f32.mrf.mxu0
        %v2664 = vadd.f32 %v686, %v2663
        %v2665 = vpop.f32.mrf.mxu0
        %v2666 = vadd.f32 %v690, %v2665
        %v2667 = vpop.f32.mrf.mxu0
        %v2668 = vadd.f32 %v686, %v2667
        %v2669 = vpop.f32.mrf.mxu0
        %v2670 = vadd.f32 %v690, %v2669
        %2671 = vmatprep.mubr.bf16.mxu0 %v358
        %2672 = vmatmul.mubr.bf16.gmra.mxu0 %v357
        %v2673 = vpop.f32.mrf.mxu0
        %v2674 = vadd.f32 %v686, %v2673
        %v2675 = vpop.f32.mrf.mxu0
        %v2676 = vadd.f32 %v690, %v2675
        %v2677 = vpop.f32.mrf.mxu0
        %v2678 = vadd.f32 %v686, %v2677
        %v2679 = vpop.f32.mrf.mxu0
        %v2680 = vadd.f32 %v690, %v2679
        %2681 = vmatprep.mubr.bf16.mxu0 %v361
        %2682 = vmatmul.mubr.bf16.gmra.mxu0 %v360
        %v2683 = vpop.f32.mrf.mxu0
        %v2684 = vadd.f32 %v686, %v2683
        %v2685 = vpop.f32.mrf.mxu0
        %v2686 = vadd.f32 %v690, %v2685
        %v2687 = vpop.f32.mrf.mxu0
        %v2688 = vadd.f32 %v686, %v2687
        %v2689 = vpop.f32.mrf.mxu0
        %v2690 = vadd.f32 %v690, %v2689
        %2691 = vmatprep.mubr.bf16.mxu0 %v364
        %2692 = vmatmul.mubr.bf16.gmra.mxu0 %v363
        %v2693 = vpop.f32.mrf.mxu0
        %v2694 = vadd.f32 %v686, %v2693
        %v2695 = vpop.f32.mrf.mxu0
        %v2696 = vadd.f32 %v690, %v2695
        %v2697 = vpop.f32.mrf.mxu0
        %v2698 = vadd.f32 %v686, %v2697
        %v2699 = vpop.f32.mrf.mxu0
        %v2700 = vadd.f32 %v690, %v2699
        %2701 = vmatprep.mubr.bf16.mxu0 %v367
        %2702 = vmatmul.mubr.bf16.gmra.mxu0 %v366
        %v2703 = vpop.f32.mrf.mxu0
        %v2704 = vadd.f32 %v686, %v2703
        %v2705 = vpop.f32.mrf.mxu0
        %v2706 = vadd.f32 %v690, %v2705
        %v2707 = vpop.f32.mrf.mxu0
        %v2708 = vadd.f32 %v686, %v2707
        %v2709 = vpop.f32.mrf.mxu0
        %v2710 = vadd.f32 %v690, %v2709
        %2711 = vmatprep.mubr.bf16.mxu0 %v370
        %2712 = vmatmul.mubr.bf16.gmra.mxu0 %v369
        %v2713 = vpop.f32.mrf.mxu0
        %v2714 = vadd.f32 %v686, %v2713
        %v2715 = vpop.f32.mrf.mxu0
        %v2716 = vadd.f32 %v690, %v2715
        %v2717 = vpop.f32.mrf.mxu0
        %v2718 = vadd.f32 %v686, %v2717
        %v2719 = vpop.f32.mrf.mxu0
        %v2720 = vadd.f32 %v690, %v2719
        %2721 = vmatprep.mubr.bf16.mxu0 %v373
        %2722 = vmatmul.mubr.bf16.gmra.mxu0 %v372
        %v2723 = vpop.f32.mrf.mxu0
        %v2724 = vadd.f32 %v686, %v2723
        %v2725 = vpop.f32.mrf.mxu0
        %v2726 = vadd.f32 %v690, %v2725
        %v2727 = vpop.f32.mrf.mxu0
        %v2728 = vadd.f32 %v686, %v2727
        %v2729 = vpop.f32.mrf.mxu0
        %v2730 = vadd.f32 %v690, %v2729
        %2731 = vdwg.mxu0
        %2732 = vmatprep.subr.bf16.mxu0 %v1872
        %2733 = vmatpush1.bf16.msra.mxu0 %v1871
        %2734 = vmatprep.subr.bf16.mxu0 %v1860
        %2735 = vmatpush1.bf16.msra.mxu0 %v1859
        %2736 = vmatprep.subr.bf16.mxu0 %v1848
        %2737 = vmatpush1.bf16.msra.mxu0 %v1847
        %2738 = vmatprep.subr.bf16.mxu0 %v1836
        %2739 = vmatpush1.bf16.msra.mxu0 %v1835
        %2740 = vmatprep.subr.bf16.mxu0 %v1824
        %2741 = vmatpush1.bf16.msra.mxu0 %v1823
        %2742 = vmatprep.subr.bf16.mxu0 %v1812
        %2743 = vmatpush1.bf16.msra.mxu0 %v1811
        %2744 = vmatprep.subr.bf16.mxu0 %v1800
        %2745 = vmatpush1.bf16.msra.mxu0 %v1799
        %2746 = vmatprep.subr.bf16.mxu0 %v1788
        %2747 = vmatpush1.bf16.msra.mxu0 %v1787
        %2748 = vmatprep.subr.bf16.mxu0 0
        %2749 = vmatpush2.bf16.msra.mxu0 0
        %2750 = vmatprep.subr.bf16.mxu0 0
        %2751 = vmatpush2.bf16.msra.mxu0 0
        %2752 = vmatprep.subr.bf16.mxu0 0
        %2753 = vmatpush2.bf16.msra.mxu0 0
        %2754 = vmatprep.subr.bf16.mxu0 0
        %2755 = vmatpush2.bf16.msra.mxu0 0
        %2756 = vmatprep.subr.bf16.mxu0 0
        %2757 = vmatpush2.bf16.msra.mxu0 0
        %2758 = vmatprep.subr.bf16.mxu0 0
        %2759 = vmatpush2.bf16.msra.mxu0 0
        %2760 = vmatprep.subr.bf16.mxu0 0
        %2761 = vmatpush2.bf16.msra.mxu0 0
        %2762 = vmatprep.subr.bf16.mxu0 0
        %2763 = vmatpush2.bf16.msra.mxu0 0
        %2764 = vmatprep.mubr.bf16.mxu0 0
        %2765 = vmatmul.mubr.bf16.gmra.mxu0 %v353
        %v2766 = vpop.f32.mrf.mxu0
        %v2767 = vadd.f32 %v2654, %v2766
        %v2768 = vpop.f32.mrf.mxu0
        %v2769 = vadd.f32 %v2656, %v2768
        %v2770 = vpop.f32.mrf.mxu0
        %v2771 = vadd.f32 %v2658, %v2770
        %v2772 = vpop.f32.mrf.mxu0
        %v2773 = vadd.f32 %v2660, %v2772
        %2774 = vmatprep.mubr.bf16.mxu0 0
        %2775 = vmatmul.mubr.bf16.gmra.mxu0 %v356
        %v2776 = vpop.f32.mrf.mxu0
        %v2777 = vadd.f32 %v2664, %v2776
        %v2778 = vpop.f32.mrf.mxu0
        %v2779 = vadd.f32 %v2666, %v2778
        %v2780 = vpop.f32.mrf.mxu0
        %v2781 = vadd.f32 %v2668, %v2780
        %v2782 = vpop.f32.mrf.mxu0
        %v2783 = vadd.f32 %v2670, %v2782
        %2784 = vmatprep.mubr.bf16.mxu0 0
        %2785 = vmatmul.mubr.bf16.gmra.mxu0 %v359
        %v2786 = vpop.f32.mrf.mxu0
        %v2787 = vadd.f32 %v2674, %v2786
        %v2788 = vpop.f32.mrf.mxu0
        %v2789 = vadd.f32 %v2676, %v2788
        %v2790 = vpop.f32.mrf.mxu0
        %v2791 = vadd.f32 %v2678, %v2790
        %v2792 = vpop.f32.mrf.mxu0
        %v2793 = vadd.f32 %v2680, %v2792
        %2794 = vmatprep.mubr.bf16.mxu0 0
        %2795 = vmatmul.mubr.bf16.gmra.mxu0 %v362
        %v2796 = vpop.f32.mrf.mxu0
        %v2797 = vadd.f32 %v2684, %v2796
        %v2798 = vpop.f32.mrf.mxu0
        %v2799 = vadd.f32 %v2686, %v2798
        %v2800 = vpop.f32.mrf.mxu0
        %v2801 = vadd.f32 %v2688, %v2800
        %v2802 = vpop.f32.mrf.mxu0
        %v2803 = vadd.f32 %v2690, %v2802
        %2804 = vmatprep.mubr.bf16.mxu0 0
        %2805 = vmatmul.mubr.bf16.gmra.mxu0 %v365
        %v2806 = vpop.f32.mrf.mxu0
        %v2807 = vadd.f32 %v2694, %v2806
        %v2808 = vpop.f32.mrf.mxu0
        %v2809 = vadd.f32 %v2696, %v2808
        %v2810 = vpop.f32.mrf.mxu0
        %v2811 = vadd.f32 %v2698, %v2810
        %v2812 = vpop.f32.mrf.mxu0
        %v2813 = vadd.f32 %v2700, %v2812
        %2814 = vmatprep.mubr.bf16.mxu0 0
        %2815 = vmatmul.mubr.bf16.gmra.mxu0 %v368
        %v2816 = vpop.f32.mrf.mxu0
        %v2817 = vadd.f32 %v2704, %v2816
        %v2818 = vpop.f32.mrf.mxu0
        %v2819 = vadd.f32 %v2706, %v2818
        %v2820 = vpop.f32.mrf.mxu0
        %v2821 = vadd.f32 %v2708, %v2820
        %v2822 = vpop.f32.mrf.mxu0
        %v2823 = vadd.f32 %v2710, %v2822
        %2824 = vmatprep.mubr.bf16.mxu0 0
        %2825 = vmatmul.mubr.bf16.gmra.mxu0 %v371
        %v2826 = vpop.f32.mrf.mxu0
        %v2827 = vadd.f32 %v2714, %v2826
        %v2828 = vpop.f32.mrf.mxu0
        %v2829 = vadd.f32 %v2716, %v2828
        %v2830 = vpop.f32.mrf.mxu0
        %v2831 = vadd.f32 %v2718, %v2830
        %v2832 = vpop.f32.mrf.mxu0
        %v2833 = vadd.f32 %v2720, %v2832
        %2834 = vmatprep.mubr.bf16.mxu0 0
        %2835 = vmatmul.mubr.bf16.gmra.mxu0 %v374
        %v2836 = vpop.f32.mrf.mxu0
        %v2837 = vadd.f32 %v2724, %v2836
        %v2838 = vpop.f32.mrf.mxu0
        %v2839 = vadd.f32 %v2726, %v2838
        %v2840 = vpop.f32.mrf.mxu0
        %v2841 = vadd.f32 %v2728, %v2840
        %v2842 = vpop.f32.mrf.mxu0
        %v2843 = vadd.f32 %v2730, %v2842
        %2844 = vdwg.mxu0
        %2845 = vmatprep.subr.bf16.mxu0 %v1682
        %2846 = vmatpush1.bf16.msra.mxu0 %v1681
        %2847 = vmatprep.subr.bf16.mxu0 %v1670
        %2848 = vmatpush1.bf16.msra.mxu0 %v1669
        %2849 = vmatprep.subr.bf16.mxu0 %v1658
        %2850 = vmatpush1.bf16.msra.mxu0 %v1657
        %2851 = vmatprep.subr.bf16.mxu0 %v1646
        %2852 = vmatpush1.bf16.msra.mxu0 %v1645
        %2853 = vmatprep.subr.bf16.mxu0 %v1634
        %2854 = vmatpush1.bf16.msra.mxu0 %v1633
        %2855 = vmatprep.subr.bf16.mxu0 %v1622
        %2856 = vmatpush1.bf16.msra.mxu0 %v1621
        %2857 = vmatprep.subr.bf16.mxu0 %v1610
        %2858 = vmatpush1.bf16.msra.mxu0 %v1609
        %2859 = vmatprep.subr.bf16.mxu0 %v1598
        %2860 = vmatpush1.bf16.msra.mxu0 %v1597
        %2861 = vmatprep.subr.bf16.mxu0 %v1778
        %2862 = vmatpush2.bf16.msra.mxu0 %v1777
        %2863 = vmatprep.subr.bf16.mxu0 %v1766
        %2864 = vmatpush2.bf16.msra.mxu0 %v1765
        %2865 = vmatprep.subr.bf16.mxu0 %v1754
        %2866 = vmatpush2.bf16.msra.mxu0 %v1753
        %2867 = vmatprep.subr.bf16.mxu0 %v1742
        %2868 = vmatpush2.bf16.msra.mxu0 %v1741
        %2869 = vmatprep.subr.bf16.mxu0 %v1730
        %2870 = vmatpush2.bf16.msra.mxu0 %v1729
        %2871 = vmatprep.subr.bf16.mxu0 %v1718
        %2872 = vmatpush2.bf16.msra.mxu0 %v1717
        %2873 = vmatprep.subr.bf16.mxu0 %v1706
        %2874 = vmatpush2.bf16.msra.mxu0 %v1705
        %2875 = vmatprep.subr.bf16.mxu0 %v1694
        %2876 = vmatpush2.bf16.msra.mxu0 %v1693
        %2877 = vmatprep.mubr.bf16.mxu0 %v352
        %2878 = vmatmul.mubr.bf16.gmra.mxu0 %v351
        %v2879 = vpop.f32.mrf.mxu0
        %v2880 = vadd.f32 %v694, %v2879
        %v2881 = vpop.f32.mrf.mxu0
        %v2882 = vadd.f32 %v698, %v2881
        %v2883 = vpop.f32.mrf.mxu0
        %v2884 = vadd.f32 %v694, %v2883
        %v2885 = vpop.f32.mrf.mxu0
        %v2886 = vadd.f32 %v698, %v2885
        %2887 = vmatprep.mubr.bf16.mxu0 %v355
        %2888 = vmatmul.mubr.bf16.gmra.mxu0 %v354
        %v2889 = vpop.f32.mrf.mxu0
        %v2890 = vadd.f32 %v694, %v2889
        %v2891 = vpop.f32.mrf.mxu0
        %v2892 = vadd.f32 %v698, %v2891
        %v2893 = vpop.f32.mrf.mxu0
        %v2894 = vadd.f32 %v694, %v2893
        %v2895 = vpop.f32.mrf.mxu0
        %v2896 = vadd.f32 %v698, %v2895
        %2897 = vmatprep.mubr.bf16.mxu0 %v358
        %2898 = vmatmul.mubr.bf16.gmra.mxu0 %v357
        %v2899 = vpop.f32.mrf.mxu0
        %v2900 = vadd.f32 %v694, %v2899
        %v2901 = vpop.f32.mrf.mxu0
        %v2902 = vadd.f32 %v698, %v2901
        %v2903 = vpop.f32.mrf.mxu0
        %v2904 = vadd.f32 %v694, %v2903
        %v2905 = vpop.f32.mrf.mxu0
        %v2906 = vadd.f32 %v698, %v2905
        %2907 = vmatprep.mubr.bf16.mxu0 %v361
        %2908 = vmatmul.mubr.bf16.gmra.mxu0 %v360
        %v2909 = vpop.f32.mrf.mxu0
        %v2910 = vadd.f32 %v694, %v2909
        %v2911 = vpop.f32.mrf.mxu0
        %v2912 = vadd.f32 %v698, %v2911
        %v2913 = vpop.f32.mrf.mxu0
        %v2914 = vadd.f32 %v694, %v2913
        %v2915 = vpop.f32.mrf.mxu0
        %v2916 = vadd.f32 %v698, %v2915
        %2917 = vmatprep.mubr.bf16.mxu0 %v364
        %2918 = vmatmul.mubr.bf16.gmra.mxu0 %v363
        %v2919 = vpop.f32.mrf.mxu0
        %v2920 = vadd.f32 %v694, %v2919
        %v2921 = vpop.f32.mrf.mxu0
        %v2922 = vadd.f32 %v698, %v2921
        %v2923 = vpop.f32.mrf.mxu0
        %v2924 = vadd.f32 %v694, %v2923
        %v2925 = vpop.f32.mrf.mxu0
        %v2926 = vadd.f32 %v698, %v2925
        %2927 = vmatprep.mubr.bf16.mxu0 %v367
        %2928 = vmatmul.mubr.bf16.gmra.mxu0 %v366
        %v2929 = vpop.f32.mrf.mxu0
        %v2930 = vadd.f32 %v694, %v2929
        %v2931 = vpop.f32.mrf.mxu0
        %v2932 = vadd.f32 %v698, %v2931
        %v2933 = vpop.f32.mrf.mxu0
        %v2934 = vadd.f32 %v694, %v2933
        %v2935 = vpop.f32.mrf.mxu0
        %v2936 = vadd.f32 %v698, %v2935
        %2937 = vmatprep.mubr.bf16.mxu0 %v370
        %2938 = vmatmul.mubr.bf16.gmra.mxu0 %v369
        %v2939 = vpop.f32.mrf.mxu0
        %v2940 = vadd.f32 %v694, %v2939
        %v2941 = vpop.f32.mrf.mxu0
        %v2942 = vadd.f32 %v698, %v2941
        %v2943 = vpop.f32.mrf.mxu0
        %v2944 = vadd.f32 %v694, %v2943
        %v2945 = vpop.f32.mrf.mxu0
        %v2946 = vadd.f32 %v698, %v2945
        %2947 = vmatprep.mubr.bf16.mxu0 %v373
        %2948 = vmatmul.mubr.bf16.gmra.mxu0 %v372
        %v2949 = vpop.f32.mrf.mxu0
        %v2950 = vadd.f32 %v694, %v2949
        %v2951 = vpop.f32.mrf.mxu0
        %v2952 = vadd.f32 %v698, %v2951
        %v2953 = vpop.f32.mrf.mxu0
        %v2954 = vadd.f32 %v694, %v2953
        %v2955 = vpop.f32.mrf.mxu0
        %v2956 = vadd.f32 %v698, %v2955
        %2957 = vdwg.mxu0
        %2958 = vmatprep.subr.bf16.mxu0 %v1874
        %2959 = vmatpush1.bf16.msra.mxu0 %v1873
        %2960 = vmatprep.subr.bf16.mxu0 %v1862
        %2961 = vmatpush1.bf16.msra.mxu0 %v1861
        %2962 = vmatprep.subr.bf16.mxu0 %v1850
        %2963 = vmatpush1.bf16.msra.mxu0 %v1849
        %2964 = vmatprep.subr.bf16.mxu0 %v1838
        %2965 = vmatpush1.bf16.msra.mxu0 %v1837
        %2966 = vmatprep.subr.bf16.mxu0 %v1826
        %2967 = vmatpush1.bf16.msra.mxu0 %v1825
        %2968 = vmatprep.subr.bf16.mxu0 %v1814
        %2969 = vmatpush1.bf16.msra.mxu0 %v1813
        %2970 = vmatprep.subr.bf16.mxu0 %v1802
        %2971 = vmatpush1.bf16.msra.mxu0 %v1801
        %2972 = vmatprep.subr.bf16.mxu0 %v1790
        %2973 = vmatpush1.bf16.msra.mxu0 %v1789
        %2974 = vmatprep.subr.bf16.mxu0 0
        %2975 = vmatpush2.bf16.msra.mxu0 0
        %2976 = vmatprep.subr.bf16.mxu0 0
        %2977 = vmatpush2.bf16.msra.mxu0 0
        %2978 = vmatprep.subr.bf16.mxu0 0
        %2979 = vmatpush2.bf16.msra.mxu0 0
        %2980 = vmatprep.subr.bf16.mxu0 0
        %2981 = vmatpush2.bf16.msra.mxu0 0
        %2982 = vmatprep.subr.bf16.mxu0 0
        %2983 = vmatpush2.bf16.msra.mxu0 0
        %2984 = vmatprep.subr.bf16.mxu0 0
        %2985 = vmatpush2.bf16.msra.mxu0 0
        %2986 = vmatprep.subr.bf16.mxu0 0
        %2987 = vmatpush2.bf16.msra.mxu0 0
        %2988 = vmatprep.subr.bf16.mxu0 0
        %2989 = vmatpush2.bf16.msra.mxu0 0
        %2990 = vmatprep.mubr.bf16.mxu0 0
        %2991 = vmatmul.mubr.bf16.gmra.mxu0 %v353
        %v2992 = vpop.f32.mrf.mxu0
        %v2993 = vadd.f32 %v2880, %v2992
        %v2994 = vpop.f32.mrf.mxu0
        %v2995 = vadd.f32 %v2882, %v2994
        %v2996 = vpop.f32.mrf.mxu0
        %v2997 = vadd.f32 %v2884, %v2996
        %v2998 = vpop.f32.mrf.mxu0
        %v2999 = vadd.f32 %v2886, %v2998
        %3000 = vmatprep.mubr.bf16.mxu0 0
        %3001 = vmatmul.mubr.bf16.gmra.mxu0 %v356
        %v3002 = vpop.f32.mrf.mxu0
        %v3003 = vadd.f32 %v2890, %v3002
        %v3004 = vpop.f32.mrf.mxu0
        %v3005 = vadd.f32 %v2892, %v3004
        %v3006 = vpop.f32.mrf.mxu0
        %v3007 = vadd.f32 %v2894, %v3006
        %v3008 = vpop.f32.mrf.mxu0
        %v3009 = vadd.f32 %v2896, %v3008
        %3010 = vmatprep.mubr.bf16.mxu0 0
        %3011 = vmatmul.mubr.bf16.gmra.mxu0 %v359
        %v3012 = vpop.f32.mrf.mxu0
        %v3013 = vadd.f32 %v2900, %v3012
        %v3014 = vpop.f32.mrf.mxu0
        %v3015 = vadd.f32 %v2902, %v3014
        %v3016 = vpop.f32.mrf.mxu0
        %v3017 = vadd.f32 %v2904, %v3016
        %v3018 = vpop.f32.mrf.mxu0
        %v3019 = vadd.f32 %v2906, %v3018
        %3020 = vmatprep.mubr.bf16.mxu0 0
        %3021 = vmatmul.mubr.bf16.gmra.mxu0 %v362
        %v3022 = vpop.f32.mrf.mxu0
        %v3023 = vadd.f32 %v2910, %v3022
        %v3024 = vpop.f32.mrf.mxu0
        %v3025 = vadd.f32 %v2912, %v3024
        %v3026 = vpop.f32.mrf.mxu0
        %v3027 = vadd.f32 %v2914, %v3026
        %v3028 = vpop.f32.mrf.mxu0
        %v3029 = vadd.f32 %v2916, %v3028
        %3030 = vmatprep.mubr.bf16.mxu0 0
        %3031 = vmatmul.mubr.bf16.gmra.mxu0 %v365
        %v3032 = vpop.f32.mrf.mxu0
        %v3033 = vadd.f32 %v2920, %v3032
        %v3034 = vpop.f32.mrf.mxu0
        %v3035 = vadd.f32 %v2922, %v3034
        %v3036 = vpop.f32.mrf.mxu0
        %v3037 = vadd.f32 %v2924, %v3036
        %v3038 = vpop.f32.mrf.mxu0
        %v3039 = vadd.f32 %v2926, %v3038
        %3040 = vmatprep.mubr.bf16.mxu0 0
        %3041 = vmatmul.mubr.bf16.gmra.mxu0 %v368
        %v3042 = vpop.f32.mrf.mxu0
        %v3043 = vadd.f32 %v2930, %v3042
        %v3044 = vpop.f32.mrf.mxu0
        %v3045 = vadd.f32 %v2932, %v3044
        %v3046 = vpop.f32.mrf.mxu0
        %v3047 = vadd.f32 %v2934, %v3046
        %v3048 = vpop.f32.mrf.mxu0
        %v3049 = vadd.f32 %v2936, %v3048
        %3050 = vmatprep.mubr.bf16.mxu0 0
        %3051 = vmatmul.mubr.bf16.gmra.mxu0 %v371
        %v3052 = vpop.f32.mrf.mxu0
        %v3053 = vadd.f32 %v2940, %v3052
        %v3054 = vpop.f32.mrf.mxu0
        %v3055 = vadd.f32 %v2942, %v3054
        %v3056 = vpop.f32.mrf.mxu0
        %v3057 = vadd.f32 %v2944, %v3056
        %v3058 = vpop.f32.mrf.mxu0
        %v3059 = vadd.f32 %v2946, %v3058
        %3060 = vmatprep.mubr.bf16.mxu0 0
        %3061 = vmatmul.mubr.bf16.gmra.mxu0 %v374
        %v3062 = vpop.f32.mrf.mxu0
        %v3063 = vadd.f32 %v2950, %v3062
        %v3064 = vpop.f32.mrf.mxu0
        %v3065 = vadd.f32 %v2952, %v3064
        %v3066 = vpop.f32.mrf.mxu0
        %v3067 = vadd.f32 %v2954, %v3066
        %v3068 = vpop.f32.mrf.mxu0
        %v3069 = vadd.f32 %v2956, %v3068
        %3070 = vdwg.mxu0
        %3071 = vmatprep.subr.bf16.mxu0 %v1684
        %3072 = vmatpush1.bf16.msra.mxu0 %v1683
        %3073 = vmatprep.subr.bf16.mxu0 %v1672
        %3074 = vmatpush1.bf16.msra.mxu0 %v1671
        %3075 = vmatprep.subr.bf16.mxu0 %v1660
        %3076 = vmatpush1.bf16.msra.mxu0 %v1659
        %3077 = vmatprep.subr.bf16.mxu0 %v1648
        %3078 = vmatpush1.bf16.msra.mxu0 %v1647
        %3079 = vmatprep.subr.bf16.mxu0 %v1636
        %3080 = vmatpush1.bf16.msra.mxu0 %v1635
        %3081 = vmatprep.subr.bf16.mxu0 %v1624
        %3082 = vmatpush1.bf16.msra.mxu0 %v1623
        %3083 = vmatprep.subr.bf16.mxu0 %v1612
        %3084 = vmatpush1.bf16.msra.mxu0 %v1611
        %3085 = vmatprep.subr.bf16.mxu0 %v1600
        %3086 = vmatpush1.bf16.msra.mxu0 %v1599
        %3087 = vmatprep.subr.bf16.mxu0 %v1780
        %3088 = vmatpush2.bf16.msra.mxu0 %v1779
        %3089 = vmatprep.subr.bf16.mxu0 %v1768
        %3090 = vmatpush2.bf16.msra.mxu0 %v1767
        %3091 = vmatprep.subr.bf16.mxu0 %v1756
        %3092 = vmatpush2.bf16.msra.mxu0 %v1755
        %3093 = vmatprep.subr.bf16.mxu0 %v1744
        %3094 = vmatpush2.bf16.msra.mxu0 %v1743
        %3095 = vmatprep.subr.bf16.mxu0 %v1732
        %3096 = vmatpush2.bf16.msra.mxu0 %v1731
        %3097 = vmatprep.subr.bf16.mxu0 %v1720
        %3098 = vmatpush2.bf16.msra.mxu0 %v1719
        %3099 = vmatprep.subr.bf16.mxu0 %v1708
        %3100 = vmatpush2.bf16.msra.mxu0 %v1707
        %3101 = vmatprep.subr.bf16.mxu0 %v1696
        %3102 = vmatpush2.bf16.msra.mxu0 %v1695
        %3103 = vmatprep.mubr.bf16.mxu0 %v352
        %3104 = vmatmul.mubr.bf16.gmra.mxu0 %v351
        %v3105 = vpop.f32.mrf.mxu0
        %v3106 = vadd.f32 %v702, %v3105
        %v3107 = vpop.f32.mrf.mxu0
        %v3108 = vadd.f32 %v706, %v3107
        %v3109 = vpop.f32.mrf.mxu0
        %v3110 = vadd.f32 %v702, %v3109
        %v3111 = vpop.f32.mrf.mxu0
        %v3112 = vadd.f32 %v706, %v3111
        %3113 = vmatprep.mubr.bf16.mxu0 %v355
        %3114 = vmatmul.mubr.bf16.gmra.mxu0 %v354
        %v3115 = vpop.f32.mrf.mxu0
        %v3116 = vadd.f32 %v702, %v3115
        %v3117 = vpop.f32.mrf.mxu0
        %v3118 = vadd.f32 %v706, %v3117
        %v3119 = vpop.f32.mrf.mxu0
        %v3120 = vadd.f32 %v702, %v3119
        %v3121 = vpop.f32.mrf.mxu0
        %v3122 = vadd.f32 %v706, %v3121
        %3123 = vmatprep.mubr.bf16.mxu0 %v358
        %3124 = vmatmul.mubr.bf16.gmra.mxu0 %v357
        %v3125 = vpop.f32.mrf.mxu0
        %v3126 = vadd.f32 %v702, %v3125
        %v3127 = vpop.f32.mrf.mxu0
        %v3128 = vadd.f32 %v706, %v3127
        %v3129 = vpop.f32.mrf.mxu0
        %v3130 = vadd.f32 %v702, %v3129
        %v3131 = vpop.f32.mrf.mxu0
        %v3132 = vadd.f32 %v706, %v3131
        %3133 = vmatprep.mubr.bf16.mxu0 %v361
        %3134 = vmatmul.mubr.bf16.gmra.mxu0 %v360
        %v3135 = vpop.f32.mrf.mxu0
        %v3136 = vadd.f32 %v702, %v3135
        %v3137 = vpop.f32.mrf.mxu0
        %v3138 = vadd.f32 %v706, %v3137
        %v3139 = vpop.f32.mrf.mxu0
        %v3140 = vadd.f32 %v702, %v3139
        %v3141 = vpop.f32.mrf.mxu0
        %v3142 = vadd.f32 %v706, %v3141
        %3143 = vmatprep.mubr.bf16.mxu0 %v364
        %3144 = vmatmul.mubr.bf16.gmra.mxu0 %v363
        %v3145 = vpop.f32.mrf.mxu0
        %v3146 = vadd.f32 %v702, %v3145
        %v3147 = vpop.f32.mrf.mxu0
        %v3148 = vadd.f32 %v706, %v3147
        %v3149 = vpop.f32.mrf.mxu0
        %v3150 = vadd.f32 %v702, %v3149
        %v3151 = vpop.f32.mrf.mxu0
        %v3152 = vadd.f32 %v706, %v3151
        %3153 = vmatprep.mubr.bf16.mxu0 %v367
        %3154 = vmatmul.mubr.bf16.gmra.mxu0 %v366
        %v3155 = vpop.f32.mrf.mxu0
        %v3156 = vadd.f32 %v702, %v3155
        %v3157 = vpop.f32.mrf.mxu0
        %v3158 = vadd.f32 %v706, %v3157
        %v3159 = vpop.f32.mrf.mxu0
        %v3160 = vadd.f32 %v702, %v3159
        %v3161 = vpop.f32.mrf.mxu0
        %v3162 = vadd.f32 %v706, %v3161
        %3163 = vmatprep.mubr.bf16.mxu0 %v370
        %3164 = vmatmul.mubr.bf16.gmra.mxu0 %v369
        %v3165 = vpop.f32.mrf.mxu0
        %v3166 = vadd.f32 %v702, %v3165
        %v3167 = vpop.f32.mrf.mxu0
        %v3168 = vadd.f32 %v706, %v3167
        %v3169 = vpop.f32.mrf.mxu0
        %v3170 = vadd.f32 %v702, %v3169
        %v3171 = vpop.f32.mrf.mxu0
        %v3172 = vadd.f32 %v706, %v3171
        %3173 = vmatprep.mubr.bf16.mxu0 %v373
        %3174 = vmatmul.mubr.bf16.gmra.mxu0 %v372
        %v3175 = vpop.f32.mrf.mxu0
        %v3176 = vadd.f32 %v702, %v3175
        %v3177 = vpop.f32.mrf.mxu0
        %v3178 = vadd.f32 %v706, %v3177
        %v3179 = vpop.f32.mrf.mxu0
        %v3180 = vadd.f32 %v702, %v3179
        %v3181 = vpop.f32.mrf.mxu0
        %v3182 = vadd.f32 %v706, %v3181
        %3183 = vdwg.mxu0
        %3184 = vmatprep.subr.bf16.mxu0 %v1876
        %3185 = vmatpush1.bf16.msra.mxu0 %v1875
        %3186 = vmatprep.subr.bf16.mxu0 %v1864
        %3187 = vmatpush1.bf16.msra.mxu0 %v1863
        %3188 = vmatprep.subr.bf16.mxu0 %v1852
        %3189 = vmatpush1.bf16.msra.mxu0 %v1851
        %3190 = vmatprep.subr.bf16.mxu0 %v1840
        %3191 = vmatpush1.bf16.msra.mxu0 %v1839
        %3192 = vmatprep.subr.bf16.mxu0 %v1828
        %3193 = vmatpush1.bf16.msra.mxu0 %v1827
        %3194 = vmatprep.subr.bf16.mxu0 %v1816
        %3195 = vmatpush1.bf16.msra.mxu0 %v1815
        %3196 = vmatprep.subr.bf16.mxu0 %v1804
        %3197 = vmatpush1.bf16.msra.mxu0 %v1803
        %3198 = vmatprep.subr.bf16.mxu0 %v1792
        %3199 = vmatpush1.bf16.msra.mxu0 %v1791
        %3200 = vmatprep.subr.bf16.mxu0 0
        %3201 = vmatpush2.bf16.msra.mxu0 0
        %3202 = vmatprep.subr.bf16.mxu0 0
        %3203 = vmatpush2.bf16.msra.mxu0 0
        %3204 = vmatprep.subr.bf16.mxu0 0
        %3205 = vmatpush2.bf16.msra.mxu0 0
        %3206 = vmatprep.subr.bf16.mxu0 0
        %3207 = vmatpush2.bf16.msra.mxu0 0
        %3208 = vmatprep.subr.bf16.mxu0 0
        %3209 = vmatpush2.bf16.msra.mxu0 0
        %3210 = vmatprep.subr.bf16.mxu0 0
        %3211 = vmatpush2.bf16.msra.mxu0 0
        %3212 = vmatprep.subr.bf16.mxu0 0
        %3213 = vmatpush2.bf16.msra.mxu0 0
        %3214 = vmatprep.subr.bf16.mxu0 0
        %3215 = vmatpush2.bf16.msra.mxu0 0
        %3216 = vmatprep.mubr.bf16.mxu0 0
        %3217 = vmatmul.mubr.bf16.gmra.mxu0 %v353
        %v3218 = vpop.f32.mrf.mxu0
        %v3219 = vadd.f32 %v3106, %v3218
        %v3220 = vpop.f32.mrf.mxu0
        %v3221 = vadd.f32 %v3108, %v3220
        %v3222 = vpop.f32.mrf.mxu0
        %v3223 = vadd.f32 %v3110, %v3222
        %v3224 = vpop.f32.mrf.mxu0
        %v3225 = vadd.f32 %v3112, %v3224
        %3226 = vmatprep.mubr.bf16.mxu0 0
        %3227 = vmatmul.mubr.bf16.gmra.mxu0 %v356
        %v3228 = vpop.f32.mrf.mxu0
        %v3229 = vadd.f32 %v3116, %v3228
        %v3230 = vpop.f32.mrf.mxu0
        %v3231 = vadd.f32 %v3118, %v3230
        %v3232 = vpop.f32.mrf.mxu0
        %v3233 = vadd.f32 %v3120, %v3232
        %v3234 = vpop.f32.mrf.mxu0
        %v3235 = vadd.f32 %v3122, %v3234
        %3236 = vmatprep.mubr.bf16.mxu0 0
        %3237 = vmatmul.mubr.bf16.gmra.mxu0 %v359
        %v3238 = vpop.f32.mrf.mxu0
        %v3239 = vadd.f32 %v3126, %v3238
        %v3240 = vpop.f32.mrf.mxu0
        %v3241 = vadd.f32 %v3128, %v3240
        %v3242 = vpop.f32.mrf.mxu0
        %v3243 = vadd.f32 %v3130, %v3242
        %v3244 = vpop.f32.mrf.mxu0
        %v3245 = vadd.f32 %v3132, %v3244
        %3246 = vmatprep.mubr.bf16.mxu0 0
        %3247 = vmatmul.mubr.bf16.gmra.mxu0 %v362
        %v3248 = vpop.f32.mrf.mxu0
        %v3249 = vadd.f32 %v3136, %v3248
        %v3250 = vpop.f32.mrf.mxu0
        %v3251 = vadd.f32 %v3138, %v3250
        %v3252 = vpop.f32.mrf.mxu0
        %v3253 = vadd.f32 %v3140, %v3252
        %v3254 = vpop.f32.mrf.mxu0
        %v3255 = vadd.f32 %v3142, %v3254
        %3256 = vmatprep.mubr.bf16.mxu0 0
        %3257 = vmatmul.mubr.bf16.gmra.mxu0 %v365
        %v3258 = vpop.f32.mrf.mxu0
        %v3259 = vadd.f32 %v3146, %v3258
        %v3260 = vpop.f32.mrf.mxu0
        %v3261 = vadd.f32 %v3148, %v3260
        %v3262 = vpop.f32.mrf.mxu0
        %v3263 = vadd.f32 %v3150, %v3262
        %v3264 = vpop.f32.mrf.mxu0
        %v3265 = vadd.f32 %v3152, %v3264
        %3266 = vmatprep.mubr.bf16.mxu0 0
        %3267 = vmatmul.mubr.bf16.gmra.mxu0 %v368
        %v3268 = vpop.f32.mrf.mxu0
        %v3269 = vadd.f32 %v3156, %v3268
        %v3270 = vpop.f32.mrf.mxu0
        %v3271 = vadd.f32 %v3158, %v3270
        %v3272 = vpop.f32.mrf.mxu0
        %v3273 = vadd.f32 %v3160, %v3272
        %v3274 = vpop.f32.mrf.mxu0
        %v3275 = vadd.f32 %v3162, %v3274
        %3276 = vmatprep.mubr.bf16.mxu0 0
        %3277 = vmatmul.mubr.bf16.gmra.mxu0 %v371
        %v3278 = vpop.f32.mrf.mxu0
        %v3279 = vadd.f32 %v3166, %v3278
        %v3280 = vpop.f32.mrf.mxu0
        %v3281 = vadd.f32 %v3168, %v3280
        %v3282 = vpop.f32.mrf.mxu0
        %v3283 = vadd.f32 %v3170, %v3282
        %v3284 = vpop.f32.mrf.mxu0
        %v3285 = vadd.f32 %v3172, %v3284
        %3286 = vmatprep.mubr.bf16.mxu0 0
        %3287 = vmatmul.mubr.bf16.gmra.mxu0 %v374
        %v3288 = vpop.f32.mrf.mxu0
        %v3289 = vadd.f32 %v3176, %v3288
        %v3290 = vpop.f32.mrf.mxu0
        %v3291 = vadd.f32 %v3178, %v3290
        %v3292 = vpop.f32.mrf.mxu0
        %v3293 = vadd.f32 %v3180, %v3292
        %v3294 = vpop.f32.mrf.mxu0
        %v3295 = vadd.f32 %v3182, %v3294
        %3296 = vdwg.mxu0
        %3297 = vmatprep.subr.bf16.mxu0 %v1686
        %3298 = vmatpush1.bf16.msra.mxu0 %v1685
        %3299 = vmatprep.subr.bf16.mxu0 %v1674
        %3300 = vmatpush1.bf16.msra.mxu0 %v1673
        %3301 = vmatprep.subr.bf16.mxu0 %v1662
        %3302 = vmatpush1.bf16.msra.mxu0 %v1661
        %3303 = vmatprep.subr.bf16.mxu0 %v1650
        %3304 = vmatpush1.bf16.msra.mxu0 %v1649
        %3305 = vmatprep.subr.bf16.mxu0 %v1638
        %3306 = vmatpush1.bf16.msra.mxu0 %v1637
        %3307 = vmatprep.subr.bf16.mxu0 %v1626
        %3308 = vmatpush1.bf16.msra.mxu0 %v1625
        %3309 = vmatprep.subr.bf16.mxu0 %v1614
        %3310 = vmatpush1.bf16.msra.mxu0 %v1613
        %3311 = vmatprep.subr.bf16.mxu0 %v1602
        %3312 = vmatpush1.bf16.msra.mxu0 %v1601
        %3313 = vmatprep.subr.bf16.mxu0 %v1782
        %3314 = vmatpush2.bf16.msra.mxu0 %v1781
        %3315 = vmatprep.subr.bf16.mxu0 %v1770
        %3316 = vmatpush2.bf16.msra.mxu0 %v1769
        %3317 = vmatprep.subr.bf16.mxu0 %v1758
        %3318 = vmatpush2.bf16.msra.mxu0 %v1757
        %3319 = vmatprep.subr.bf16.mxu0 %v1746
        %3320 = vmatpush2.bf16.msra.mxu0 %v1745
        %3321 = vmatprep.subr.bf16.mxu0 %v1734
        %3322 = vmatpush2.bf16.msra.mxu0 %v1733
        %3323 = vmatprep.subr.bf16.mxu0 %v1722
        %3324 = vmatpush2.bf16.msra.mxu0 %v1721
        %3325 = vmatprep.subr.bf16.mxu0 %v1710
        %3326 = vmatpush2.bf16.msra.mxu0 %v1709
        %3327 = vmatprep.subr.bf16.mxu0 %v1698
        %3328 = vmatpush2.bf16.msra.mxu0 %v1697
        %3329 = vmatprep.mubr.bf16.mxu0 %v352
        %3330 = vmatmul.mubr.bf16.gmra.mxu0 %v351
        %v3331 = vpop.f32.mrf.mxu0
        %v3332 = vadd.f32 %v710, %v3331
        %v3333 = vpop.f32.mrf.mxu0
        %v3334 = vadd.f32 %v714, %v3333
        %v3335 = vpop.f32.mrf.mxu0
        %v3336 = vadd.f32 %v710, %v3335
        %v3337 = vpop.f32.mrf.mxu0
        %v3338 = vadd.f32 %v714, %v3337
        %3339 = vmatprep.mubr.bf16.mxu0 %v355
        %3340 = vmatmul.mubr.bf16.gmra.mxu0 %v354
        %v3341 = vpop.f32.mrf.mxu0
        %v3342 = vadd.f32 %v710, %v3341
        %v3343 = vpop.f32.mrf.mxu0
        %v3344 = vadd.f32 %v714, %v3343
        %v3345 = vpop.f32.mrf.mxu0
        %v3346 = vadd.f32 %v710, %v3345
        %v3347 = vpop.f32.mrf.mxu0
        %v3348 = vadd.f32 %v714, %v3347
        %3349 = vmatprep.mubr.bf16.mxu0 %v358
        %3350 = vmatmul.mubr.bf16.gmra.mxu0 %v357
        %v3351 = vpop.f32.mrf.mxu0
        %v3352 = vadd.f32 %v710, %v3351
        %v3353 = vpop.f32.mrf.mxu0
        %v3354 = vadd.f32 %v714, %v3353
        %v3355 = vpop.f32.mrf.mxu0
        %v3356 = vadd.f32 %v710, %v3355
        %v3357 = vpop.f32.mrf.mxu0
        %v3358 = vadd.f32 %v714, %v3357
        %3359 = vmatprep.mubr.bf16.mxu0 %v361
        %3360 = vmatmul.mubr.bf16.gmra.mxu0 %v360
        %v3361 = vpop.f32.mrf.mxu0
        %v3362 = vadd.f32 %v710, %v3361
        %v3363 = vpop.f32.mrf.mxu0
        %v3364 = vadd.f32 %v714, %v3363
        %v3365 = vpop.f32.mrf.mxu0
        %v3366 = vadd.f32 %v710, %v3365
        %v3367 = vpop.f32.mrf.mxu0
        %v3368 = vadd.f32 %v714, %v3367
        %3369 = vmatprep.mubr.bf16.mxu0 %v364
        %3370 = vmatmul.mubr.bf16.gmra.mxu0 %v363
        %v3371 = vpop.f32.mrf.mxu0
        %v3372 = vadd.f32 %v710, %v3371
        %v3373 = vpop.f32.mrf.mxu0
        %v3374 = vadd.f32 %v714, %v3373
        %v3375 = vpop.f32.mrf.mxu0
        %v3376 = vadd.f32 %v710, %v3375
        %v3377 = vpop.f32.mrf.mxu0
        %v3378 = vadd.f32 %v714, %v3377
        %3379 = vmatprep.mubr.bf16.mxu0 %v367
        %3380 = vmatmul.mubr.bf16.gmra.mxu0 %v366
        %v3381 = vpop.f32.mrf.mxu0
        %v3382 = vadd.f32 %v710, %v3381
        %v3383 = vpop.f32.mrf.mxu0
        %v3384 = vadd.f32 %v714, %v3383
        %v3385 = vpop.f32.mrf.mxu0
        %v3386 = vadd.f32 %v710, %v3385
        %v3387 = vpop.f32.mrf.mxu0
        %v3388 = vadd.f32 %v714, %v3387
        %3389 = vmatprep.mubr.bf16.mxu0 %v370
        %3390 = vmatmul.mubr.bf16.gmra.mxu0 %v369
        %v3391 = vpop.f32.mrf.mxu0
        %v3392 = vadd.f32 %v710, %v3391
        %v3393 = vpop.f32.mrf.mxu0
        %v3394 = vadd.f32 %v714, %v3393
        %v3395 = vpop.f32.mrf.mxu0
        %v3396 = vadd.f32 %v710, %v3395
        %v3397 = vpop.f32.mrf.mxu0
        %v3398 = vadd.f32 %v714, %v3397
        %3399 = vmatprep.mubr.bf16.mxu0 %v373
        %3400 = vmatmul.mubr.bf16.gmra.mxu0 %v372
        %v3401 = vpop.f32.mrf.mxu0
        %v3402 = vadd.f32 %v710, %v3401
        %v3403 = vpop.f32.mrf.mxu0
        %v3404 = vadd.f32 %v714, %v3403
        %v3405 = vpop.f32.mrf.mxu0
        %v3406 = vadd.f32 %v710, %v3405
        %v3407 = vpop.f32.mrf.mxu0
        %v3408 = vadd.f32 %v714, %v3407
        %3409 = vdwg.mxu0
        %3410 = vmatprep.subr.bf16.mxu0 %v1878
        %3411 = vmatpush1.bf16.msra.mxu0 %v1877
        %3412 = vmatprep.subr.bf16.mxu0 %v1866
        %3413 = vmatpush1.bf16.msra.mxu0 %v1865
        %3414 = vmatprep.subr.bf16.mxu0 %v1854
        %3415 = vmatpush1.bf16.msra.mxu0 %v1853
        %3416 = vmatprep.subr.bf16.mxu0 %v1842
        %3417 = vmatpush1.bf16.msra.mxu0 %v1841
        %3418 = vmatprep.subr.bf16.mxu0 %v1830
        %3419 = vmatpush1.bf16.msra.mxu0 %v1829
        %3420 = vmatprep.subr.bf16.mxu0 %v1818
        %3421 = vmatpush1.bf16.msra.mxu0 %v1817
        %3422 = vmatprep.subr.bf16.mxu0 %v1806
        %3423 = vmatpush1.bf16.msra.mxu0 %v1805
        %3424 = vmatprep.subr.bf16.mxu0 %v1794
        %3425 = vmatpush1.bf16.msra.mxu0 %v1793
        %3426 = vmatprep.subr.bf16.mxu0 0
        %3427 = vmatpush2.bf16.msra.mxu0 0
        %3428 = vmatprep.subr.bf16.mxu0 0
        %3429 = vmatpush2.bf16.msra.mxu0 0
        %3430 = vmatprep.subr.bf16.mxu0 0
        %3431 = vmatpush2.bf16.msra.mxu0 0
        %3432 = vmatprep.subr.bf16.mxu0 0
        %3433 = vmatpush2.bf16.msra.mxu0 0
        %3434 = vmatprep.subr.bf16.mxu0 0
        %3435 = vmatpush2.bf16.msra.mxu0 0
        %3436 = vmatprep.subr.bf16.mxu0 0
        %3437 = vmatpush2.bf16.msra.mxu0 0
        %3438 = vmatprep.subr.bf16.mxu0 0
        %3439 = vmatpush2.bf16.msra.mxu0 0
        %3440 = vmatprep.subr.bf16.mxu0 0
        %3441 = vmatpush2.bf16.msra.mxu0 0
        %3442 = vmatprep.mubr.bf16.mxu0 0
        %3443 = vmatmul.mubr.bf16.gmra.mxu0 %v353
        %v3444 = vpop.f32.mrf.mxu0
        %v3445 = vadd.f32 %v3332, %v3444
        %v3446 = vpop.f32.mrf.mxu0
        %v3447 = vadd.f32 %v3334, %v3446
        %v3448 = vpop.f32.mrf.mxu0
        %v3449 = vadd.f32 %v3336, %v3448
        %v3450 = vpop.f32.mrf.mxu0
        %v3451 = vadd.f32 %v3338, %v3450
        %3452 = vmatprep.mubr.bf16.mxu0 0
        %3453 = vmatmul.mubr.bf16.gmra.mxu0 %v356
        %v3454 = vpop.f32.mrf.mxu0
        %v3455 = vadd.f32 %v3342, %v3454
        %v3456 = vpop.f32.mrf.mxu0
        %v3457 = vadd.f32 %v3344, %v3456
        %v3458 = vpop.f32.mrf.mxu0
        %v3459 = vadd.f32 %v3346, %v3458
        %v3460 = vpop.f32.mrf.mxu0
        %v3461 = vadd.f32 %v3348, %v3460
        %3462 = vmatprep.mubr.bf16.mxu0 0
        %3463 = vmatmul.mubr.bf16.gmra.mxu0 %v359
        %v3464 = vpop.f32.mrf.mxu0
        %v3465 = vadd.f32 %v3352, %v3464
        %v3466 = vpop.f32.mrf.mxu0
        %v3467 = vadd.f32 %v3354, %v3466
        %v3468 = vpop.f32.mrf.mxu0
        %v3469 = vadd.f32 %v3356, %v3468
        %v3470 = vpop.f32.mrf.mxu0
        %v3471 = vadd.f32 %v3358, %v3470
        %3472 = vmatprep.mubr.bf16.mxu0 0
        %3473 = vmatmul.mubr.bf16.gmra.mxu0 %v362
        %v3474 = vpop.f32.mrf.mxu0
        %v3475 = vadd.f32 %v3362, %v3474
        %v3476 = vpop.f32.mrf.mxu0
        %v3477 = vadd.f32 %v3364, %v3476
        %v3478 = vpop.f32.mrf.mxu0
        %v3479 = vadd.f32 %v3366, %v3478
        %v3480 = vpop.f32.mrf.mxu0
        %v3481 = vadd.f32 %v3368, %v3480
        %3482 = vmatprep.mubr.bf16.mxu0 0
        %3483 = vmatmul.mubr.bf16.gmra.mxu0 %v365
        %v3484 = vpop.f32.mrf.mxu0
        %v3485 = vadd.f32 %v3372, %v3484
        %v3486 = vpop.f32.mrf.mxu0
        %v3487 = vadd.f32 %v3374, %v3486
        %v3488 = vpop.f32.mrf.mxu0
        %v3489 = vadd.f32 %v3376, %v3488
        %v3490 = vpop.f32.mrf.mxu0
        %v3491 = vadd.f32 %v3378, %v3490
        %3492 = vmatprep.mubr.bf16.mxu0 0
        %3493 = vmatmul.mubr.bf16.gmra.mxu0 %v368
        %v3494 = vpop.f32.mrf.mxu0
        %v3495 = vadd.f32 %v3382, %v3494
        %v3496 = vpop.f32.mrf.mxu0
        %v3497 = vadd.f32 %v3384, %v3496
        %v3498 = vpop.f32.mrf.mxu0
        %v3499 = vadd.f32 %v3386, %v3498
        %v3500 = vpop.f32.mrf.mxu0
        %v3501 = vadd.f32 %v3388, %v3500
        %3502 = vmatprep.mubr.bf16.mxu0 0
        %3503 = vmatmul.mubr.bf16.gmra.mxu0 %v371
        %v3504 = vpop.f32.mrf.mxu0
        %v3505 = vadd.f32 %v3392, %v3504
        %v3506 = vpop.f32.mrf.mxu0
        %v3507 = vadd.f32 %v3394, %v3506
        %v3508 = vpop.f32.mrf.mxu0
        %v3509 = vadd.f32 %v3396, %v3508
        %v3510 = vpop.f32.mrf.mxu0
        %v3511 = vadd.f32 %v3398, %v3510
        %3512 = vmatprep.mubr.bf16.mxu0 0
        %3513 = vmatmul.mubr.bf16.gmra.mxu0 %v374
        %v3514 = vpop.f32.mrf.mxu0
        %v3515 = vadd.f32 %v3402, %v3514
        %v3516 = vpop.f32.mrf.mxu0
        %v3517 = vadd.f32 %v3404, %v3516
        %v3518 = vpop.f32.mrf.mxu0
        %v3519 = vadd.f32 %v3406, %v3518
        %v3520 = vpop.f32.mrf.mxu0
        %v3521 = vadd.f32 %v3408, %v3520
        %3522 = vdwg.mxu0
        %v3523 = vmax.f32 %v2315, 0.0
        %v3524 = vmax.f32 %v2317, 0.0
        %v3525 = vmax.f32 %v2541, 0.0
        %v3526 = vmax.f32 %v2543, 0.0
        %v3527 = vmax.f32 %v2767, 0.0
        %v3528 = vmax.f32 %v2769, 0.0
        %v3529 = vmax.f32 %v2993, 0.0
        %v3530 = vmax.f32 %v2995, 0.0
        %v3531 = vmax.f32 %v3219, 0.0
        %v3532 = vmax.f32 %v3221, 0.0
        %v3533 = vmax.f32 %v3445, 0.0
        %v3534 = vmax.f32 %v3447, 0.0
        %v3535 = vmax.f32 %v2319, 0.0
        %v3536 = vmax.f32 %v2321, 0.0
        %v3537 = vmax.f32 %v2545, 0.0
        %v3538 = vmax.f32 %v2547, 0.0
        %v3539 = vmax.f32 %v2771, 0.0
        %v3540 = vmax.f32 %v2773, 0.0
        %v3541 = vmax.f32 %v2997, 0.0
        %v3542 = vmax.f32 %v2999, 0.0
        %v3543 = vmax.f32 %v3223, 0.0
        %v3544 = vmax.f32 %v3225, 0.0
        %v3545 = vmax.f32 %v3449, 0.0
        %v3546 = vmax.f32 %v3451, 0.0
        %v3547 = vmax.f32 %v2325, 0.0
        %v3548 = vmax.f32 %v2327, 0.0
        %v3549 = vmax.f32 %v2551, 0.0
        %v3550 = vmax.f32 %v2553, 0.0
        %v3551 = vmax.f32 %v2777, 0.0
        %v3552 = vmax.f32 %v2779, 0.0
        %v3553 = vmax.f32 %v3003, 0.0
        %v3554 = vmax.f32 %v3005, 0.0
        %v3555 = vmax.f32 %v3229, 0.0
        %v3556 = vmax.f32 %v3231, 0.0
        %v3557 = vmax.f32 %v3455, 0.0
        %v3558 = vmax.f32 %v3457, 0.0
        %v3559 = vmax.f32 %v2329, 0.0
        %v3560 = vmax.f32 %v2331, 0.0
        %v3561 = vmax.f32 %v2555, 0.0
        %v3562 = vmax.f32 %v2557, 0.0
        %v3563 = vmax.f32 %v2781, 0.0
        %v3564 = vmax.f32 %v2783, 0.0
        %v3565 = vmax.f32 %v3007, 0.0
        %v3566 = vmax.f32 %v3009, 0.0
        %v3567 = vmax.f32 %v3233, 0.0
        %v3568 = vmax.f32 %v3235, 0.0
        %v3569 = vmax.f32 %v3459, 0.0
        %v3570 = vmax.f32 %v3461, 0.0
        %v3571 = vmax.f32 %v2335, 0.0
        %v3572 = vmax.f32 %v2337, 0.0
        %v3573 = vmax.f32 %v2561, 0.0
        %v3574 = vmax.f32 %v2563, 0.0
        %v3575 = vmax.f32 %v2787, 0.0
        %v3576 = vmax.f32 %v2789, 0.0
        %v3577 = vmax.f32 %v3013, 0.0
        %v3578 = vmax.f32 %v3015, 0.0
        %v3579 = vmax.f32 %v3239, 0.0
        %v3580 = vmax.f32 %v3241, 0.0
        %v3581 = vmax.f32 %v3465, 0.0
        %v3582 = vmax.f32 %v3467, 0.0
        %v3583 = vmax.f32 %v2339, 0.0
        %v3584 = vmax.f32 %v2341, 0.0
        %v3585 = vmax.f32 %v2565, 0.0
        %v3586 = vmax.f32 %v2567, 0.0
        %v3587 = vmax.f32 %v2791, 0.0
        %v3588 = vmax.f32 %v2793, 0.0
        %v3589 = vmax.f32 %v3017, 0.0
        %v3590 = vmax.f32 %v3019, 0.0
        %v3591 = vmax.f32 %v3243, 0.0
        %v3592 = vmax.f32 %v3245, 0.0
        %v3593 = vmax.f32 %v3469, 0.0
        %v3594 = vmax.f32 %v3471, 0.0
        %v3595 = vmax.f32 %v2345, 0.0
        %v3596 = vmax.f32 %v2347, 0.0
        %v3597 = vmax.f32 %v2571, 0.0
        %v3598 = vmax.f32 %v2573, 0.0
        %v3599 = vmax.f32 %v2797, 0.0
        %v3600 = vmax.f32 %v2799, 0.0
        %v3601 = vmax.f32 %v3023, 0.0
        %v3602 = vmax.f32 %v3025, 0.0
        %v3603 = vmax.f32 %v3249, 0.0
        %v3604 = vmax.f32 %v3251, 0.0
        %v3605 = vmax.f32 %v3475, 0.0
        %v3606 = vmax.f32 %v3477, 0.0
        %v3607 = vmax.f32 %v2349, 0.0
        %v3608 = vmax.f32 %v2351, 0.0
        %v3609 = vmax.f32 %v2575, 0.0
        %v3610 = vmax.f32 %v2577, 0.0
        %v3611 = vmax.f32 %v2801, 0.0
        %v3612 = vmax.f32 %v2803, 0.0
        %v3613 = vmax.f32 %v3027, 0.0
        %v3614 = vmax.f32 %v3029, 0.0
        %v3615 = vmax.f32 %v3253, 0.0
        %v3616 = vmax.f32 %v3255, 0.0
        %v3617 = vmax.f32 %v3479, 0.0
        %v3618 = vmax.f32 %v3481, 0.0
        %v3619 = vmax.f32 %v2355, 0.0
        %v3620 = vmax.f32 %v2357, 0.0
        %v3621 = vmax.f32 %v2581, 0.0
        %v3622 = vmax.f32 %v2583, 0.0
        %v3623 = vmax.f32 %v2807, 0.0
        %v3624 = vmax.f32 %v2809, 0.0
        %v3625 = vmax.f32 %v3033, 0.0
        %v3626 = vmax.f32 %v3035, 0.0
        %v3627 = vmax.f32 %v3259, 0.0
        %v3628 = vmax.f32 %v3261, 0.0
        %v3629 = vmax.f32 %v3485, 0.0
        %v3630 = vmax.f32 %v3487, 0.0
        %v3631 = vmax.f32 %v2359, 0.0
        %v3632 = vmax.f32 %v2361, 0.0
        %v3633 = vmax.f32 %v2585, 0.0
        %v3634 = vmax.f32 %v2587, 0.0
        %v3635 = vmax.f32 %v2811, 0.0
        %v3636 = vmax.f32 %v2813, 0.0
        %v3637 = vmax.f32 %v3037, 0.0
        %v3638 = vmax.f32 %v3039, 0.0
        %v3639 = vmax.f32 %v3263, 0.0
        %v3640 = vmax.f32 %v3265, 0.0
        %v3641 = vmax.f32 %v3489, 0.0
        %v3642 = vmax.f32 %v3491, 0.0
        %v3643 = vmax.f32 %v2365, 0.0
        %v3644 = vmax.f32 %v2367, 0.0
        %v3645 = vmax.f32 %v2591, 0.0
        %v3646 = vmax.f32 %v2593, 0.0
        %v3647 = vmax.f32 %v2817, 0.0
        %v3648 = vmax.f32 %v2819, 0.0
        %v3649 = vmax.f32 %v3043, 0.0
        %v3650 = vmax.f32 %v3045, 0.0
        %v3651 = vmax.f32 %v3269, 0.0
        %v3652 = vmax.f32 %v3271, 0.0
        %v3653 = vmax.f32 %v3495, 0.0
        %v3654 = vmax.f32 %v3497, 0.0
        %v3655 = vmax.f32 %v2369, 0.0
        %v3656 = vmax.f32 %v2371, 0.0
        %v3657 = vmax.f32 %v2595, 0.0
        %v3658 = vmax.f32 %v2597, 0.0
        %v3659 = vmax.f32 %v2821, 0.0
        %v3660 = vmax.f32 %v2823, 0.0
        %v3661 = vmax.f32 %v3047, 0.0
        %v3662 = vmax.f32 %v3049, 0.0
        %v3663 = vmax.f32 %v3273, 0.0
        %v3664 = vmax.f32 %v3275, 0.0
        %v3665 = vmax.f32 %v3499, 0.0
        %v3666 = vmax.f32 %v3501, 0.0
        %v3667 = vmax.f32 %v2375, 0.0
        %v3668 = vmax.f32 %v2377, 0.0
        %v3669 = vmax.f32 %v2601, 0.0
        %v3670 = vmax.f32 %v2603, 0.0
        %v3671 = vmax.f32 %v2827, 0.0
        %v3672 = vmax.f32 %v2829, 0.0
        %v3673 = vmax.f32 %v3053, 0.0
        %v3674 = vmax.f32 %v3055, 0.0
        %v3675 = vmax.f32 %v3279, 0.0
        %v3676 = vmax.f32 %v3281, 0.0
        %v3677 = vmax.f32 %v3505, 0.0
        %v3678 = vmax.f32 %v3507, 0.0
        %v3679 = vmax.f32 %v2379, 0.0
        %v3680 = vmax.f32 %v2381, 0.0
        %v3681 = vmax.f32 %v2605, 0.0
        %v3682 = vmax.f32 %v2607, 0.0
        %v3683 = vmax.f32 %v2831, 0.0
        %v3684 = vmax.f32 %v2833, 0.0
        %v3685 = vmax.f32 %v3057, 0.0
        %v3686 = vmax.f32 %v3059, 0.0
        %v3687 = vmax.f32 %v3283, 0.0
        %v3688 = vmax.f32 %v3285, 0.0
        %v3689 = vmax.f32 %v3509, 0.0
        %v3690 = vmax.f32 %v3511, 0.0
        %v3691 = vmax.f32 %v2385, 0.0
        %v3692 = vmax.f32 %v2387, 0.0
        %v3693 = vmax.f32 %v2611, 0.0
        %v3694 = vmax.f32 %v2613, 0.0
        %v3695 = vmax.f32 %v2837, 0.0
        %v3696 = vmax.f32 %v2839, 0.0
        %v3697 = vmax.f32 %v3063, 0.0
        %v3698 = vmax.f32 %v3065, 0.0
        %v3699 = vmax.f32 %v3289, 0.0
        %v3700 = vmax.f32 %v3291, 0.0
        %v3701 = vmax.f32 %v3515, 0.0
        %v3702 = vmax.f32 %v3517, 0.0
        %v3703 = vmax.f32 %v2389, 0.0
        %v3704 = vmax.f32 %v2391, 0.0
        %v3705 = vmax.f32 %v2615, 0.0
        %v3706 = vmax.f32 %v2617, 0.0
        %v3707 = vmax.f32 %v2841, 0.0
        %v3708 = vmax.f32 %v2843, 0.0
        %v3709 = vmax.f32 %v3067, 0.0
        %v3710 = vmax.f32 %v3069, 0.0
        %v3711 = vmax.f32 %v3293, 0.0
        %v3712 = vmax.f32 %v3295, 0.0
        %v3713 = vmax.f32 %v3519, 0.0
        %v3714 = vmax.f32 %v3521, 0.0
        %v3715 = vpack.c.bf16 %v3535, %v3523
        %v3716 = vpack.c.bf16 %v3536, %v3524
        %v3717 = vpack.c.bf16 %v3537, %v3525
        %v3718 = vpack.c.bf16 %v3538, %v3526
        %v3719 = vpack.c.bf16 %v3539, %v3527
        %v3720 = vpack.c.bf16 %v3540, %v3528
        %v3721 = vpack.c.bf16 %v3541, %v3529
        %v3722 = vpack.c.bf16 %v3542, %v3530
        %v3723 = vpack.c.bf16 %v3543, %v3531
        %v3724 = vpack.c.bf16 %v3544, %v3532
        %v3725 = vpack.c.bf16 %v3545, %v3533
        %v3726 = vpack.c.bf16 %v3546, %v3534
        %v3727 = vpack.c.bf16 %v3559, %v3547
        %v3728 = vpack.c.bf16 %v3560, %v3548
        %v3729 = vpack.c.bf16 %v3561, %v3549
        %v3730 = vpack.c.bf16 %v3562, %v3550
        %v3731 = vpack.c.bf16 %v3563, %v3551
        %v3732 = vpack.c.bf16 %v3564, %v3552
        %v3733 = vpack.c.bf16 %v3565, %v3553
        %v3734 = vpack.c.bf16 %v3566, %v3554
        %v3735 = vpack.c.bf16 %v3567, %v3555
        %v3736 = vpack.c.bf16 %v3568, %v3556
        %v3737 = vpack.c.bf16 %v3569, %v3557
        %v3738 = vpack.c.bf16 %v3570, %v3558
        %v3739 = vpack.c.bf16 %v3583, %v3571
        %v3740 = vpack.c.bf16 %v3584, %v3572
        %v3741 = vpack.c.bf16 %v3585, %v3573
        %v3742 = vpack.c.bf16 %v3586, %v3574
        %v3743 = vpack.c.bf16 %v3587, %v3575
        %v3744 = vpack.c.bf16 %v3588, %v3576
        %v3745 = vpack.c.bf16 %v3589, %v3577
        %v3746 = vpack.c.bf16 %v3590, %v3578
        %v3747 = vpack.c.bf16 %v3591, %v3579
        %v3748 = vpack.c.bf16 %v3592, %v3580
        %v3749 = vpack.c.bf16 %v3593, %v3581
        %v3750 = vpack.c.bf16 %v3594, %v3582
        %v3751 = vpack.c.bf16 %v3607, %v3595
        %v3752 = vpack.c.bf16 %v3608, %v3596
        %v3753 = vpack.c.bf16 %v3609, %v3597
        %v3754 = vpack.c.bf16 %v3610, %v3598
        %v3755 = vpack.c.bf16 %v3611, %v3599
        %v3756 = vpack.c.bf16 %v3612, %v3600
        %v3757 = vpack.c.bf16 %v3613, %v3601
        %v3758 = vpack.c.bf16 %v3614, %v3602
        %v3759 = vpack.c.bf16 %v3615, %v3603
        %v3760 = vpack.c.bf16 %v3616, %v3604
        %v3761 = vpack.c.bf16 %v3617, %v3605
        %v3762 = vpack.c.bf16 %v3618, %v3606
        %v3763 = vpack.c.bf16 %v3631, %v3619
        %v3764 = vpack.c.bf16 %v3632, %v3620
        %v3765 = vpack.c.bf16 %v3633, %v3621
        %v3766 = vpack.c.bf16 %v3634, %v3622
        %v3767 = vpack.c.bf16 %v3635, %v3623
        %v3768 = vpack.c.bf16 %v3636, %v3624
        %v3769 = vpack.c.bf16 %v3637, %v3625
        %v3770 = vpack.c.bf16 %v3638, %v3626
        %v3771 = vpack.c.bf16 %v3639, %v3627
        %v3772 = vpack.c.bf16 %v3640, %v3628
        %v3773 = vpack.c.bf16 %v3641, %v3629
        %v3774 = vpack.c.bf16 %v3642, %v3630
        %v3775 = vpack.c.bf16 %v3655, %v3643
        %v3776 = vpack.c.bf16 %v3656, %v3644
        %v3777 = vpack.c.bf16 %v3657, %v3645
        %v3778 = vpack.c.bf16 %v3658, %v3646
        %v3779 = vpack.c.bf16 %v3659, %v3647
        %v3780 = vpack.c.bf16 %v3660, %v3648
        %v3781 = vpack.c.bf16 %v3661, %v3649
        %v3782 = vpack.c.bf16 %v3662, %v3650
        %v3783 = vpack.c.bf16 %v3663, %v3651
        %v3784 = vpack.c.bf16 %v3664, %v3652
        %v3785 = vpack.c.bf16 %v3665, %v3653
        %v3786 = vpack.c.bf16 %v3666, %v3654
        %v3787 = vpack.c.bf16 %v3679, %v3667
        %v3788 = vpack.c.bf16 %v3680, %v3668
        %v3789 = vpack.c.bf16 %v3681, %v3669
        %v3790 = vpack.c.bf16 %v3682, %v3670
        %v3791 = vpack.c.bf16 %v3683, %v3671
        %v3792 = vpack.c.bf16 %v3684, %v3672
        %v3793 = vpack.c.bf16 %v3685, %v3673
        %v3794 = vpack.c.bf16 %v3686, %v3674
        %v3795 = vpack.c.bf16 %v3687, %v3675
        %v3796 = vpack.c.bf16 %v3688, %v3676
        %v3797 = vpack.c.bf16 %v3689, %v3677
        %v3798 = vpack.c.bf16 %v3690, %v3678
        %v3799 = vpack.c.bf16 %v3703, %v3691
        %v3800 = vpack.c.bf16 %v3704, %v3692
        %v3801 = vpack.c.bf16 %v3705, %v3693
        %v3802 = vpack.c.bf16 %v3706, %v3694
        %v3803 = vpack.c.bf16 %v3707, %v3695
        %v3804 = vpack.c.bf16 %v3708, %v3696
        %v3805 = vpack.c.bf16 %v3709, %v3697
        %v3806 = vpack.c.bf16 %v3710, %v3698
        %v3807 = vpack.c.bf16 %v3711, %v3699
        %v3808 = vpack.c.bf16 %v3712, %v3700
        %v3809 = vpack.c.bf16 %v3713, %v3701
        %v3810 = vpack.c.bf16 %v3714, %v3702
        %v3811 = vld [vmem:[#allocation10] sm:$0xff]
        %v3812 = vld [vmem:[#allocation10 + $0x8] sm:$0xf]
        %v3813 = vld [vmem:[#allocation10 + $0xc] sm:$0xff]
        %v3814 = vld [vmem:[#allocation10 + $0x14] sm:$0xf]
        %v3815 = vld [vmem:[#allocation10 + $0x18] sm:$0xff]
        %v3816 = vld [vmem:[#allocation10 + $0x20] sm:$0xf]
        %v3817 = vld [vmem:[#allocation10 + $0x24] sm:$0xff]
        %v3818 = vld [vmem:[#allocation10 + $0x2c] sm:$0xf]
        %v3819 = vld [vmem:[#allocation10 + $0x30] sm:$0xff]
        %v3820 = vld [vmem:[#allocation10 + $0x38] sm:$0xf]
        %v3821 = vld [vmem:[#allocation10 + $0x3c] sm:$0xff]
        %v3822 = vld [vmem:[#allocation10 + $0x44] sm:$0xf]
        %v3823 = vld [vmem:[#allocation10 + $0x48] sm:$0xff]
        %v3824 = vld [vmem:[#allocation10 + $0x50] sm:$0xf]
        %v3825 = vld [vmem:[#allocation10 + $0x54] sm:$0xff]
        %v3826 = vld [vmem:[#allocation10 + $0x5c] sm:$0xf]
        %v3827 = vld [vmem:[#allocation10 + $0x60] sm:$0xff]
        %v3828 = vld [vmem:[#allocation10 + $0x68] sm:$0xf]
        %v3829 = vld [vmem:[#allocation10 + $0x6c] sm:$0xff]
        %v3830 = vld [vmem:[#allocation10 + $0x74] sm:$0xf]
        %v3831 = vld [vmem:[#allocation10 + $0x78] sm:$0xff]
        %v3832 = vld [vmem:[#allocation10 + $0x80] sm:$0xf]
        %v3833 = vld [vmem:[#allocation10 + $0x84] sm:$0xff]
        %v3834 = vld [vmem:[#allocation10 + $0x8c] sm:$0xf]
        %v3835 = vld [vmem:[#allocation10 + $0x90] sm:$0xff]
        %v3836 = vld [vmem:[#allocation10 + $0x98] sm:$0xf]
        %v3837 = vld [vmem:[#allocation10 + $0x9c] sm:$0xff]
        %v3838 = vld [vmem:[#allocation10 + $0xa4] sm:$0xf]
        %v3839 = vld [vmem:[#allocation10 + $0xa8] sm:$0xff]
        %v3840 = vld [vmem:[#allocation10 + $0xb0] sm:$0xf]
        %v3841 = vld [vmem:[#allocation10 + $0xb4] sm:$0xff]
        %v3842 = vld [vmem:[#allocation10 + $0xbc] sm:$0xf]
        %v3843 = vld [vmem:[#allocation10 + $0xc0] sm:$0xff]
        %v3844 = vld [vmem:[#allocation10 + $0xc8] sm:$0xf]
        %v3845 = vld [vmem:[#allocation10 + $0xcc] sm:$0xff]
        %v3846 = vld [vmem:[#allocation10 + $0xd4] sm:$0xf]
        %v3847 = vld [vmem:[#allocation10 + $0xd8] sm:$0xff]
        %v3848 = vld [vmem:[#allocation10 + $0xe0] sm:$0xf]
        %v3849 = vld [vmem:[#allocation10 + $0xe4] sm:$0xff]
        %v3850 = vld [vmem:[#allocation10 + $0xec] sm:$0xf]
        %v3851 = vld [vmem:[#allocation10 + $0xf0] sm:$0xff]
        %v3852 = vld [vmem:[#allocation10 + $0xf8] sm:$0xf]
        %v3853 = vld [vmem:[#allocation10 + $0xfc] sm:$0xff]
        %v3854 = vld [vmem:[#allocation10 + $0x104] sm:$0xf]
        %v3855 = vld [vmem:[#allocation10 + $0x108] sm:$0xff]
        %v3856 = vld [vmem:[#allocation10 + $0x110] sm:$0xf]
        %v3857 = vld [vmem:[#allocation10 + $0x114] sm:$0xff]
        %v3858 = vld [vmem:[#allocation10 + $0x11c] sm:$0xf]
        %v3859 = vld [vmem:[#allocation10 + $0x120] sm:$0xff]
        %v3860 = vld [vmem:[#allocation10 + $0x128] sm:$0xf]
        %v3861 = vld [vmem:[#allocation10 + $0x12c] sm:$0xff]
        %v3862 = vld [vmem:[#allocation10 + $0x134] sm:$0xf]
        %v3863 = vld [vmem:[#allocation10 + $0x138] sm:$0xff]
        %v3864 = vld [vmem:[#allocation10 + $0x140] sm:$0xf]
        %v3865 = vld [vmem:[#allocation10 + $0x144] sm:$0xff]
        %v3866 = vld [vmem:[#allocation10 + $0x14c] sm:$0xf]
        %v3867 = vld [vmem:[#allocation10 + $0x150] sm:$0xff]
        %v3868 = vld [vmem:[#allocation10 + $0x158] sm:$0xf]
        %v3869 = vld [vmem:[#allocation10 + $0x15c] sm:$0xff]
        %v3870 = vld [vmem:[#allocation10 + $0x164] sm:$0xf]
        %v3871 = vld [vmem:[#allocation10 + $0x168] sm:$0xff]
        %v3872 = vld [vmem:[#allocation10 + $0x170] sm:$0xf]
        %v3873 = vld [vmem:[#allocation10 + $0x174] sm:$0xff]
        %v3874 = vld [vmem:[#allocation10 + $0x17c] sm:$0xf]
        %v3875 = vld [vmem:[#allocation10 + $0x180] sm:$0xff]
        %v3876 = vld [vmem:[#allocation10 + $0x188] sm:$0xf]
        %v3877 = vld [vmem:[#allocation10 + $0x18c] sm:$0xff]
        %v3878 = vld [vmem:[#allocation10 + $0x194] sm:$0xf]
        %v3879 = vld [vmem:[#allocation10 + $0x198] sm:$0xff]
        %v3880 = vld [vmem:[#allocation10 + $0x1a0] sm:$0xf]
        %v3881 = vld [vmem:[#allocation10 + $0x1a4] sm:$0xff]
        %v3882 = vld [vmem:[#allocation10 + $0x1ac] sm:$0xf]
        %v3883 = vld [vmem:[#allocation10 + $0x1b0] sm:$0xff]
        %v3884 = vld [vmem:[#allocation10 + $0x1b8] sm:$0xf]
        %v3885 = vld [vmem:[#allocation10 + $0x1bc] sm:$0xff]
        %v3886 = vld [vmem:[#allocation10 + $0x1c4] sm:$0xf]
        %v3887 = vld [vmem:[#allocation10 + $0x1c8] sm:$0xff]
        %v3888 = vld [vmem:[#allocation10 + $0x1d0] sm:$0xf]
        %v3889 = vld [vmem:[#allocation10 + $0x1d4] sm:$0xff]
        %v3890 = vld [vmem:[#allocation10 + $0x1dc] sm:$0xf]
        %v3891 = vld [vmem:[#allocation10 + $0x1e0] sm:$0xff]
        %v3892 = vld [vmem:[#allocation10 + $0x1e8] sm:$0xf]
        %v3893 = vld [vmem:[#allocation10 + $0x1ec] sm:$0xff]
        %v3894 = vld [vmem:[#allocation10 + $0x1f4] sm:$0xf]
        %v3895 = vld [vmem:[#allocation10 + $0x1f8] sm:$0xff]
        %v3896 = vld [vmem:[#allocation10 + $0x200] sm:$0xf]
        %v3897 = vld [vmem:[#allocation10 + $0x204] sm:$0xff]
        %v3898 = vld [vmem:[#allocation10 + $0x20c] sm:$0xf]
        %v3899 = vld [vmem:[#allocation10 + $0x210] sm:$0xff]
        %v3900 = vld [vmem:[#allocation10 + $0x218] sm:$0xf]
        %v3901 = vld [vmem:[#allocation10 + $0x21c] sm:$0xff]
        %v3902 = vld [vmem:[#allocation10 + $0x224] sm:$0xf]
        %v3903 = vld [vmem:[#allocation10 + $0x228] sm:$0xff]
        %v3904 = vld [vmem:[#allocation10 + $0x230] sm:$0xf]
        %v3905 = vld [vmem:[#allocation10 + $0x234] sm:$0xff]
        %v3906 = vld [vmem:[#allocation10 + $0x23c] sm:$0xf]
        %v3907 = vld [vmem:[#allocation10 + $0x240] sm:$0xff]
        %v3908 = vld [vmem:[#allocation10 + $0x248] sm:$0xf]
        %v3909 = vld [vmem:[#allocation10 + $0x24c] sm:$0xff]
        %v3910 = vld [vmem:[#allocation10 + $0x254] sm:$0xf]
        %v3911 = vld [vmem:[#allocation10 + $0x258] sm:$0xff]
        %v3912 = vld [vmem:[#allocation10 + $0x260] sm:$0xf]
        %v3913 = vld [vmem:[#allocation10 + $0x264] sm:$0xff]
        %v3914 = vld [vmem:[#allocation10 + $0x26c] sm:$0xf]
        %v3915 = vld [vmem:[#allocation10 + $0x270] sm:$0xff]
        %v3916 = vld [vmem:[#allocation10 + $0x278] sm:$0xf]
        %v3917 = vld [vmem:[#allocation10 + $0x27c] sm:$0xff]
        %v3918 = vld [vmem:[#allocation10 + $0x284] sm:$0xf]
        %v3919 = vld [vmem:[#allocation10 + $0x288] sm:$0xff]
        %v3920 = vld [vmem:[#allocation10 + $0x290] sm:$0xf]
        %v3921 = vld [vmem:[#allocation10 + $0x294] sm:$0xff]
        %v3922 = vld [vmem:[#allocation10 + $0x29c] sm:$0xf]
        %v3923 = vld [vmem:[#allocation10 + $0x2a0] sm:$0xff]
        %v3924 = vld [vmem:[#allocation10 + $0x2a8] sm:$0xf]
        %v3925 = vld [vmem:[#allocation10 + $0x2ac] sm:$0xff]
        %v3926 = vld [vmem:[#allocation10 + $0x2b4] sm:$0xf]
        %v3927 = vld [vmem:[#allocation10 + $0x2b8] sm:$0xff]
        %v3928 = vld [vmem:[#allocation10 + $0x2c0] sm:$0xf]
        %v3929 = vld [vmem:[#allocation10 + $0x2c4] sm:$0xff]
        %v3930 = vld [vmem:[#allocation10 + $0x2cc] sm:$0xf]
        %v3931 = vld [vmem:[#allocation10 + $0x2d0] sm:$0xff]
        %v3932 = vld [vmem:[#allocation10 + $0x2d8] sm:$0xf]
        %v3933 = vld [vmem:[#allocation10 + $0x2dc] sm:$0xff]
        %v3934 = vld [vmem:[#allocation10 + $0x2e4] sm:$0xf]
        %v3935 = vld [vmem:[#allocation10 + $0x2e8] sm:$0xff]
        %v3936 = vld [vmem:[#allocation10 + $0x2f0] sm:$0xf]
        %v3937 = vld [vmem:[#allocation10 + $0x2f4] sm:$0xff]
        %v3938 = vld [vmem:[#allocation10 + $0x2fc] sm:$0xf]
        %v3939 = vld [vmem:[#allocation10 + $0x300] sm:$0xff]
        %v3940 = vld [vmem:[#allocation10 + $0x308] sm:$0xf]
        %v3941 = vld [vmem:[#allocation10 + $0x30c] sm:$0xff]
        %v3942 = vld [vmem:[#allocation10 + $0x314] sm:$0xf]
        %v3943 = vld [vmem:[#allocation10 + $0x318] sm:$0xff]
        %v3944 = vld [vmem:[#allocation10 + $0x320] sm:$0xf]
        %v3945 = vld [vmem:[#allocation10 + $0x324] sm:$0xff]
        %v3946 = vld [vmem:[#allocation10 + $0x32c] sm:$0xf]
        %v3947 = vld [vmem:[#allocation10 + $0x330] sm:$0xff]
        %v3948 = vld [vmem:[#allocation10 + $0x338] sm:$0xf]
        %v3949 = vld [vmem:[#allocation10 + $0x33c] sm:$0xff]
        %v3950 = vld [vmem:[#allocation10 + $0x344] sm:$0xf]
        %v3951 = vld [vmem:[#allocation10 + $0x348] sm:$0xff]
        %v3952 = vld [vmem:[#allocation10 + $0x350] sm:$0xf]
        %v3953 = vld [vmem:[#allocation10 + $0x354] sm:$0xff]
        %v3954 = vld [vmem:[#allocation10 + $0x35c] sm:$0xf]
        %v3955 = vld [vmem:[#allocation10 + $0x360] sm:$0xff]
        %v3956 = vld [vmem:[#allocation10 + $0x368] sm:$0xf]
        %v3957 = vld [vmem:[#allocation10 + $0x36c] sm:$0xff]
        %v3958 = vld [vmem:[#allocation10 + $0x374] sm:$0xf]
        %v3959 = vld [vmem:[#allocation10 + $0x378] sm:$0xff]
        %v3960 = vld [vmem:[#allocation10 + $0x380] sm:$0xf]
        %v3961 = vld [vmem:[#allocation10 + $0x384] sm:$0xff]
        %v3962 = vld [vmem:[#allocation10 + $0x38c] sm:$0xf]
        %v3963 = vld [vmem:[#allocation10 + $0x390] sm:$0xff]
        %v3964 = vld [vmem:[#allocation10 + $0x398] sm:$0xf]
        %v3965 = vld [vmem:[#allocation10 + $0x39c] sm:$0xff]
        %v3966 = vld [vmem:[#allocation10 + $0x3a4] sm:$0xf]
        %v3967 = vld [vmem:[#allocation10 + $0x3a8] sm:$0xff]
        %v3968 = vld [vmem:[#allocation10 + $0x3b0] sm:$0xf]
        %v3969 = vld [vmem:[#allocation10 + $0x3b4] sm:$0xff]
        %v3970 = vld [vmem:[#allocation10 + $0x3bc] sm:$0xf]
        %v3971 = vld [vmem:[#allocation10 + $0x3c0] sm:$0xff]
        %v3972 = vld [vmem:[#allocation10 + $0x3c8] sm:$0xf]
        %v3973 = vld [vmem:[#allocation10 + $0x3cc] sm:$0xff]
        %v3974 = vld [vmem:[#allocation10 + $0x3d4] sm:$0xf]
        %v3975 = vld [vmem:[#allocation10 + $0x3d8] sm:$0xff]
        %v3976 = vld [vmem:[#allocation10 + $0x3e0] sm:$0xf]
        %v3977 = vld [vmem:[#allocation10 + $0x3e4] sm:$0xff]
        %v3978 = vld [vmem:[#allocation10 + $0x3ec] sm:$0xf]
        %v3979 = vld [vmem:[#allocation10 + $0x3f0] sm:$0xff]
        %v3980 = vld [vmem:[#allocation10 + $0x3f8] sm:$0xf]
        %v3981 = vld [vmem:[#allocation10 + $0x3fc] sm:$0xff]
        %v3982 = vld [vmem:[#allocation10 + $0x404] sm:$0xf]
        %v3983 = vld [vmem:[#allocation10 + $0x408] sm:$0xff]
        %v3984 = vld [vmem:[#allocation10 + $0x410] sm:$0xf]
        %v3985 = vld [vmem:[#allocation10 + $0x414] sm:$0xff]
        %v3986 = vld [vmem:[#allocation10 + $0x41c] sm:$0xf]
        %v3987 = vld [vmem:[#allocation10 + $0x420] sm:$0xff]
        %v3988 = vld [vmem:[#allocation10 + $0x428] sm:$0xf]
        %v3989 = vld [vmem:[#allocation10 + $0x42c] sm:$0xff]
        %v3990 = vld [vmem:[#allocation10 + $0x434] sm:$0xf]
        %v3991 = vld [vmem:[#allocation10 + $0x438] sm:$0xff]
        %v3992 = vld [vmem:[#allocation10 + $0x440] sm:$0xf]
        %v3993 = vld [vmem:[#allocation10 + $0x444] sm:$0xff]
        %v3994 = vld [vmem:[#allocation10 + $0x44c] sm:$0xf]
        %v3995 = vld [vmem:[#allocation10 + $0x450] sm:$0xff]
        %v3996 = vld [vmem:[#allocation10 + $0x458] sm:$0xf]
        %v3997 = vld [vmem:[#allocation10 + $0x45c] sm:$0xff]
        %v3998 = vld [vmem:[#allocation10 + $0x464] sm:$0xf]
        %v3999 = vld [vmem:[#allocation10 + $0x468] sm:$0xff]
        %v4000 = vld [vmem:[#allocation10 + $0x470] sm:$0xf]
        %v4001 = vld [vmem:[#allocation10 + $0x474] sm:$0xff]
        %v4002 = vld [vmem:[#allocation10 + $0x47c] sm:$0xf]
        %v4003 = vld [vmem:[#allocation10 + $0x480] sm:$0xff]
        %v4004 = vld [vmem:[#allocation10 + $0x488] sm:$0xf]
        %v4005 = vld [vmem:[#allocation10 + $0x48c] sm:$0xff]
        %v4006 = vld [vmem:[#allocation10 + $0x494] sm:$0xf]
        %v4007 = vld [vmem:[#allocation10 + $0x498] sm:$0xff]
        %v4008 = vld [vmem:[#allocation10 + $0x4a0] sm:$0xf]
        %v4009 = vld [vmem:[#allocation10 + $0x4a4] sm:$0xff]
        %v4010 = vld [vmem:[#allocation10 + $0x4ac] sm:$0xf]
        %v4011 = vld [vmem:[#allocation10 + $0x4b0] sm:$0xff]
        %v4012 = vld [vmem:[#allocation10 + $0x4b8] sm:$0xf]
        %v4013 = vld [vmem:[#allocation10 + $0x4bc] sm:$0xff]
        %v4014 = vld [vmem:[#allocation10 + $0x4c4] sm:$0xf]
        %v4015 = vld [vmem:[#allocation10 + $0x4c8] sm:$0xff]
        %v4016 = vld [vmem:[#allocation10 + $0x4d0] sm:$0xf]
        %v4017 = vld [vmem:[#allocation10 + $0x4d4] sm:$0xff]
        %v4018 = vld [vmem:[#allocation10 + $0x4dc] sm:$0xf]
        %v4019 = vld [vmem:[#allocation10 + $0x4e0] sm:$0xff]
        %v4020 = vld [vmem:[#allocation10 + $0x4e8] sm:$0xf]
        %v4021 = vld [vmem:[#allocation10 + $0x4ec] sm:$0xff]
        %v4022 = vld [vmem:[#allocation10 + $0x4f4] sm:$0xf]
        %v4023 = vld [vmem:[#allocation10 + $0x4f8] sm:$0xff]
        %v4024 = vld [vmem:[#allocation10 + $0x500] sm:$0xf]
        %v4025 = vld [vmem:[#allocation10 + $0x504] sm:$0xff]
        %v4026 = vld [vmem:[#allocation10 + $0x50c] sm:$0xf]
        %v4027 = vld [vmem:[#allocation10 + $0x510] sm:$0xff]
        %v4028 = vld [vmem:[#allocation10 + $0x518] sm:$0xf]
        %v4029 = vld [vmem:[#allocation10 + $0x51c] sm:$0xff]
        %v4030 = vld [vmem:[#allocation10 + $0x524] sm:$0xf]
        %v4031 = vld [vmem:[#allocation10 + $0x528] sm:$0xff]
        %v4032 = vld [vmem:[#allocation10 + $0x530] sm:$0xf]
        %v4033 = vld [vmem:[#allocation10 + $0x534] sm:$0xff]
        %v4034 = vld [vmem:[#allocation10 + $0x53c] sm:$0xf]
        %v4035 = vld [vmem:[#allocation10 + $0x540] sm:$0xff]
        %v4036 = vld [vmem:[#allocation10 + $0x548] sm:$0xf]
        %v4037 = vld [vmem:[#allocation10 + $0x54c] sm:$0xff]
        %v4038 = vld [vmem:[#allocation10 + $0x554] sm:$0xf]
        %v4039 = vld [vmem:[#allocation10 + $0x558] sm:$0xff]
        %v4040 = vld [vmem:[#allocation10 + $0x560] sm:$0xf]
        %v4041 = vld [vmem:[#allocation10 + $0x564] sm:$0xff]
        %v4042 = vld [vmem:[#allocation10 + $0x56c] sm:$0xf]
        %v4043 = vld [vmem:[#allocation10 + $0x570] sm:$0xff]
        %v4044 = vld [vmem:[#allocation10 + $0x578] sm:$0xf]
        %v4045 = vld [vmem:[#allocation10 + $0x57c] sm:$0xff]
        %v4046 = vld [vmem:[#allocation10 + $0x584] sm:$0xf]
        %v4047 = vld [vmem:[#allocation10 + $0x588] sm:$0xff]
        %v4048 = vld [vmem:[#allocation10 + $0x590] sm:$0xf]
        %v4049 = vld [vmem:[#allocation10 + $0x594] sm:$0xff]
        %v4050 = vld [vmem:[#allocation10 + $0x59c] sm:$0xf]
        %v4051 = vld [vmem:[#allocation10 + $0x5a0] sm:$0xff]
        %v4052 = vld [vmem:[#allocation10 + $0x5a8] sm:$0xf]
        %v4053 = vld [vmem:[#allocation10 + $0x5ac] sm:$0xff]
        %v4054 = vld [vmem:[#allocation10 + $0x5b4] sm:$0xf]
        %v4055 = vld [vmem:[#allocation10 + $0x5b8] sm:$0xff]
        %v4056 = vld [vmem:[#allocation10 + $0x5c0] sm:$0xf]
        %v4057 = vld [vmem:[#allocation10 + $0x5c4] sm:$0xff]
        %v4058 = vld [vmem:[#allocation10 + $0x5cc] sm:$0xf]
        %v4059 = vld [vmem:[#allocation10 + $0x5d0] sm:$0xff]
        %v4060 = vld [vmem:[#allocation10 + $0x5d8] sm:$0xf]
        %v4061 = vld [vmem:[#allocation10 + $0x5dc] sm:$0xff]
        %v4062 = vld [vmem:[#allocation10 + $0x5e4] sm:$0xf]
        %v4063 = vld [vmem:[#allocation10 + $0x5e8] sm:$0xff]
        %v4064 = vld [vmem:[#allocation10 + $0x5f0] sm:$0xf]
        %v4065 = vld [vmem:[#allocation10 + $0x5f4] sm:$0xff]
        %v4066 = vld [vmem:[#allocation10 + $0x5fc] sm:$0xf]
        %v4067 = vld [vmem:[#allocation10 + $0x600] sm:$0xff]
        %v4068 = vld [vmem:[#allocation10 + $0x608] sm:$0xf]
        %v4069 = vld [vmem:[#allocation10 + $0x60c] sm:$0xff]
        %v4070 = vld [vmem:[#allocation10 + $0x614] sm:$0xf]
        %v4071 = vld [vmem:[#allocation10 + $0x618] sm:$0xff]
        %v4072 = vld [vmem:[#allocation10 + $0x620] sm:$0xf]
        %v4073 = vld [vmem:[#allocation10 + $0x624] sm:$0xff]
        %v4074 = vld [vmem:[#allocation10 + $0x62c] sm:$0xf]
        %v4075 = vld [vmem:[#allocation10 + $0x630] sm:$0xff]
        %v4076 = vld [vmem:[#allocation10 + $0x638] sm:$0xf]
        %v4077 = vld [vmem:[#allocation10 + $0x63c] sm:$0xff]
        %v4078 = vld [vmem:[#allocation10 + $0x644] sm:$0xf]
        %v4079 = vld [vmem:[#allocation10 + $0x648] sm:$0xff]
        %v4080 = vld [vmem:[#allocation10 + $0x650] sm:$0xf]
        %v4081 = vld [vmem:[#allocation10 + $0x654] sm:$0xff]
        %v4082 = vld [vmem:[#allocation10 + $0x65c] sm:$0xf]
        %v4083 = vld [vmem:[#allocation10 + $0x660] sm:$0xff]
        %v4084 = vld [vmem:[#allocation10 + $0x668] sm:$0xf]
        %v4085 = vld [vmem:[#allocation10 + $0x66c] sm:$0xff]
        %v4086 = vld [vmem:[#allocation10 + $0x674] sm:$0xf]
        %v4087 = vld [vmem:[#allocation10 + $0x678] sm:$0xff]
        %v4088 = vld [vmem:[#allocation10 + $0x680] sm:$0xf]
        %v4089 = vld [vmem:[#allocation10 + $0x684] sm:$0xff]
        %v4090 = vld [vmem:[#allocation10 + $0x68c] sm:$0xf]
        %v4091 = vld [vmem:[#allocation10 + $0x690] sm:$0xff]
        %v4092 = vld [vmem:[#allocation10 + $0x698] sm:$0xf]
        %v4093 = vld [vmem:[#allocation10 + $0x69c] sm:$0xff]
        %v4094 = vld [vmem:[#allocation10 + $0x6a4] sm:$0xf]
        %v4095 = vld [vmem:[#allocation10 + $0x6a8] sm:$0xff]
        %v4096 = vld [vmem:[#allocation10 + $0x6b0] sm:$0xf]
        %v4097 = vld [vmem:[#allocation10 + $0x6b4] sm:$0xff]
        %v4098 = vld [vmem:[#allocation10 + $0x6bc] sm:$0xf]
        %v4099 = vld [vmem:[#allocation10 + $0x6c0] sm:$0xff]
        %v4100 = vld [vmem:[#allocation10 + $0x6c8] sm:$0xf]
        %v4101 = vld [vmem:[#allocation10 + $0x6cc] sm:$0xff]
        %v4102 = vld [vmem:[#allocation10 + $0x6d4] sm:$0xf]
        %v4103 = vld [vmem:[#allocation10 + $0x6d8] sm:$0xff]
        %v4104 = vld [vmem:[#allocation10 + $0x6e0] sm:$0xf]
        %v4105 = vld [vmem:[#allocation10 + $0x6e4] sm:$0xff]
        %v4106 = vld [vmem:[#allocation10 + $0x6ec] sm:$0xf]
        %v4107 = vld [vmem:[#allocation10 + $0x6f0] sm:$0xff]
        %v4108 = vld [vmem:[#allocation10 + $0x6f8] sm:$0xf]
        %v4109 = vld [vmem:[#allocation10 + $0x6fc] sm:$0xff]
        %v4110 = vld [vmem:[#allocation10 + $0x704] sm:$0xf]
        %v4111 = vld [vmem:[#allocation10 + $0x708] sm:$0xff]
        %v4112 = vld [vmem:[#allocation10 + $0x710] sm:$0xf]
        %v4113 = vld [vmem:[#allocation10 + $0x714] sm:$0xff]
        %v4114 = vld [vmem:[#allocation10 + $0x71c] sm:$0xf]
        %v4115 = vld [vmem:[#allocation10 + $0x720] sm:$0xff]
        %v4116 = vld [vmem:[#allocation10 + $0x728] sm:$0xf]
        %v4117 = vld [vmem:[#allocation10 + $0x72c] sm:$0xff]
        %v4118 = vld [vmem:[#allocation10 + $0x734] sm:$0xf]
        %v4119 = vld [vmem:[#allocation10 + $0x738] sm:$0xff]
        %v4120 = vld [vmem:[#allocation10 + $0x740] sm:$0xf]
        %v4121 = vld [vmem:[#allocation10 + $0x744] sm:$0xff]
        %v4122 = vld [vmem:[#allocation10 + $0x74c] sm:$0xf]
        %v4123 = vld [vmem:[#allocation10 + $0x750] sm:$0xff]
        %v4124 = vld [vmem:[#allocation10 + $0x758] sm:$0xf]
        %v4125 = vld [vmem:[#allocation10 + $0x75c] sm:$0xff]
        %v4126 = vld [vmem:[#allocation10 + $0x764] sm:$0xf]
        %v4127 = vld [vmem:[#allocation10 + $0x768] sm:$0xff]
        %v4128 = vld [vmem:[#allocation10 + $0x770] sm:$0xf]
        %v4129 = vld [vmem:[#allocation10 + $0x774] sm:$0xff]
        %v4130 = vld [vmem:[#allocation10 + $0x77c] sm:$0xf]
        %v4131 = vld [vmem:[#allocation10 + $0x780] sm:$0xff]
        %v4132 = vld [vmem:[#allocation10 + $0x788] sm:$0xf]
        %v4133 = vld [vmem:[#allocation10 + $0x78c] sm:$0xff]
        %v4134 = vld [vmem:[#allocation10 + $0x794] sm:$0xf]
        %v4135 = vld [vmem:[#allocation10 + $0x798] sm:$0xff]
        %v4136 = vld [vmem:[#allocation10 + $0x7a0] sm:$0xf]
        %v4137 = vld [vmem:[#allocation10 + $0x7a4] sm:$0xff]
        %v4138 = vld [vmem:[#allocation10 + $0x7ac] sm:$0xf]
        %v4139 = vld [vmem:[#allocation10 + $0x7b0] sm:$0xff]
        %v4140 = vld [vmem:[#allocation10 + $0x7b8] sm:$0xf]
        %v4141 = vld [vmem:[#allocation10 + $0x7bc] sm:$0xff]
        %v4142 = vld [vmem:[#allocation10 + $0x7c4] sm:$0xf]
        %v4143 = vld [vmem:[#allocation10 + $0x7c8] sm:$0xff]
        %v4144 = vld [vmem:[#allocation10 + $0x7d0] sm:$0xf]
        %v4145 = vld [vmem:[#allocation10 + $0x7d4] sm:$0xff]
        %v4146 = vld [vmem:[#allocation10 + $0x7dc] sm:$0xf]
        %v4147 = vld [vmem:[#allocation10 + $0x7e0] sm:$0xff]
        %v4148 = vld [vmem:[#allocation10 + $0x7e8] sm:$0xf]
        %v4149 = vld [vmem:[#allocation10 + $0x7ec] sm:$0xff]
        %v4150 = vld [vmem:[#allocation10 + $0x7f4] sm:$0xf]
        %v4151 = vld [vmem:[#allocation10 + $0x7f8] sm:$0xff]
        %v4152 = vld [vmem:[#allocation10 + $0x800] sm:$0xf]
        %v4153 = vld [vmem:[#allocation10 + $0x804] sm:$0xff]
        %v4154 = vld [vmem:[#allocation10 + $0x80c] sm:$0xf]
        %v4155 = vld [vmem:[#allocation10 + $0x810] sm:$0xff]
        %v4156 = vld [vmem:[#allocation10 + $0x818] sm:$0xf]
        %v4157 = vld [vmem:[#allocation10 + $0x81c] sm:$0xff]
        %v4158 = vld [vmem:[#allocation10 + $0x824] sm:$0xf]
        %v4159 = vld [vmem:[#allocation10 + $0x828] sm:$0xff]
        %v4160 = vld [vmem:[#allocation10 + $0x830] sm:$0xf]
        %v4161 = vld [vmem:[#allocation10 + $0x834] sm:$0xff]
        %v4162 = vld [vmem:[#allocation10 + $0x83c] sm:$0xf]
        %v4163 = vld [vmem:[#allocation10 + $0x840] sm:$0xff]
        %v4164 = vld [vmem:[#allocation10 + $0x848] sm:$0xf]
        %v4165 = vld [vmem:[#allocation10 + $0x84c] sm:$0xff]
        %v4166 = vld [vmem:[#allocation10 + $0x854] sm:$0xf]
        %v4167 = vld [vmem:[#allocation10 + $0x858] sm:$0xff]
        %v4168 = vld [vmem:[#allocation10 + $0x860] sm:$0xf]
        %v4169 = vld [vmem:[#allocation10 + $0x864] sm:$0xff]
        %v4170 = vld [vmem:[#allocation10 + $0x86c] sm:$0xf]
        %v4171 = vld [vmem:[#allocation10 + $0x870] sm:$0xff]
        %v4172 = vld [vmem:[#allocation10 + $0x878] sm:$0xf]
        %v4173 = vld [vmem:[#allocation10 + $0x87c] sm:$0xff]
        %v4174 = vld [vmem:[#allocation10 + $0x884] sm:$0xf]
        %v4175 = vld [vmem:[#allocation10 + $0x888] sm:$0xff]
        %v4176 = vld [vmem:[#allocation10 + $0x890] sm:$0xf]
        %v4177 = vld [vmem:[#allocation10 + $0x894] sm:$0xff]
        %v4178 = vld [vmem:[#allocation10 + $0x89c] sm:$0xf]
        %v4179 = vld [vmem:[#allocation10 + $0x8a0] sm:$0xff]
        %v4180 = vld [vmem:[#allocation10 + $0x8a8] sm:$0xf]
        %v4181 = vld [vmem:[#allocation10 + $0x8ac] sm:$0xff]
        %v4182 = vld [vmem:[#allocation10 + $0x8b4] sm:$0xf]
        %v4183 = vld [vmem:[#allocation10 + $0x8b8] sm:$0xff]
        %v4184 = vld [vmem:[#allocation10 + $0x8c0] sm:$0xf]
        %v4185 = vld [vmem:[#allocation10 + $0x8c4] sm:$0xff]
        %v4186 = vld [vmem:[#allocation10 + $0x8cc] sm:$0xf]
        %v4187 = vld [vmem:[#allocation10 + $0x8d0] sm:$0xff]
        %v4188 = vld [vmem:[#allocation10 + $0x8d8] sm:$0xf]
        %v4189 = vld [vmem:[#allocation10 + $0x8dc] sm:$0xff]
        %v4190 = vld [vmem:[#allocation10 + $0x8e4] sm:$0xf]
        %v4191 = vld [vmem:[#allocation10 + $0x8e8] sm:$0xff]
        %v4192 = vld [vmem:[#allocation10 + $0x8f0] sm:$0xf]
        %v4193 = vld [vmem:[#allocation10 + $0x8f4] sm:$0xff]
        %v4194 = vld [vmem:[#allocation10 + $0x8fc] sm:$0xf]
        %v4195 = vld [vmem:[#allocation12] sm:$0x7]
        %v4197 = vlaneseq
        %v4198 = vshrl.u32 %v4197, 7
        %v4199 = vsub.s32 0, %v4198
        %v4200 = vrot.slane %v4195, %v4199
        %v4201 = vlaneseq
        %v4202 = vshrl.u32 %v4201, 7
        %v4203 = vsub.s32 1, %v4202
        %v4204 = vrot.slane %v4195, %v4203
        %v4205 = vlaneseq
        %v4206 = vshrl.u32 %v4205, 7
        %v4207 = vsub.s32 2, %v4206
        %v4208 = vrot.slane %v4195, %v4207
        %v4596 = vunpack.c.l.b16 %v3811
        %v4597 = vunpack.c.h.b16 %v3811
        %v4598 = vunpack.c.l.b16 %v3812
        %v4599 = vunpack.c.l.b16 %v3813
        %v4600 = vunpack.c.h.b16 %v3813
        %v4601 = vunpack.c.l.b16 %v3814
        %v4602 = vunpack.c.l.b16 %v3815
        %v4603 = vunpack.c.h.b16 %v3815
        %v4604 = vunpack.c.l.b16 %v3816
        %v4605 = vunpack.c.l.b16 %v3817
        %v4606 = vunpack.c.h.b16 %v3817
        %v4607 = vunpack.c.l.b16 %v3818
        %v4608 = vunpack.c.l.b16 %v3819
        %v4609 = vunpack.c.h.b16 %v3819
        %v4610 = vunpack.c.l.b16 %v3820
        %v4611 = vunpack.c.l.b16 %v3821
        %v4612 = vunpack.c.h.b16 %v3821
        %v4613 = vunpack.c.l.b16 %v3822
        %v4614 = vunpack.c.l.b16 %v3823
        %v4615 = vunpack.c.h.b16 %v3823
        %v4616 = vunpack.c.l.b16 %v3824
        %v4617 = vunpack.c.l.b16 %v3825
        %v4618 = vunpack.c.h.b16 %v3825
        %v4619 = vunpack.c.l.b16 %v3826
        %v4620 = vunpack.c.l.b16 %v3827
        %v4621 = vunpack.c.h.b16 %v3827
        %v4622 = vunpack.c.l.b16 %v3828
        %v4623 = vunpack.c.l.b16 %v3829
        %v4624 = vunpack.c.h.b16 %v3829
        %v4625 = vunpack.c.l.b16 %v3830
        %v4626 = vunpack.c.l.b16 %v3831
        %v4627 = vunpack.c.h.b16 %v3831
        %v4628 = vunpack.c.l.b16 %v3832
        %v4629 = vunpack.c.l.b16 %v3833
        %v4630 = vunpack.c.h.b16 %v3833
        %v4631 = vunpack.c.l.b16 %v3834
        %v4632 = vunpack.c.l.b16 %v3835
        %v4633 = vunpack.c.h.b16 %v3835
        %v4634 = vunpack.c.l.b16 %v3836
        %v4635 = vunpack.c.l.b16 %v3837
        %v4636 = vunpack.c.h.b16 %v3837
        %v4637 = vunpack.c.l.b16 %v3838
        %v4638 = vunpack.c.l.b16 %v3839
        %v4639 = vunpack.c.h.b16 %v3839
        %v4640 = vunpack.c.l.b16 %v3840
        %v4641 = vunpack.c.l.b16 %v3841
        %v4642 = vunpack.c.h.b16 %v3841
        %v4643 = vunpack.c.l.b16 %v3842
        %v4644 = vunpack.c.l.b16 %v3843
        %v4645 = vunpack.c.h.b16 %v3843
        %v4646 = vunpack.c.l.b16 %v3844
        %v4647 = vunpack.c.l.b16 %v3845
        %v4648 = vunpack.c.h.b16 %v3845
        %v4649 = vunpack.c.l.b16 %v3846
        %v4650 = vunpack.c.l.b16 %v3847
        %v4651 = vunpack.c.h.b16 %v3847
        %v4652 = vunpack.c.l.b16 %v3848
        %v4653 = vunpack.c.l.b16 %v3849
        %v4654 = vunpack.c.h.b16 %v3849
        %v4655 = vunpack.c.l.b16 %v3850
        %v4656 = vunpack.c.l.b16 %v3851
        %v4657 = vunpack.c.h.b16 %v3851
        %v4658 = vunpack.c.l.b16 %v3852
        %v4659 = vunpack.c.l.b16 %v3853
        %v4660 = vunpack.c.h.b16 %v3853
        %v4661 = vunpack.c.l.b16 %v3854
        %v4662 = vunpack.c.l.b16 %v3855
        %v4663 = vunpack.c.h.b16 %v3855
        %v4664 = vunpack.c.l.b16 %v3856
        %v4665 = vunpack.c.l.b16 %v3857
        %v4666 = vunpack.c.h.b16 %v3857
        %v4667 = vunpack.c.l.b16 %v3858
        %v4668 = vunpack.c.l.b16 %v3859
        %v4669 = vunpack.c.h.b16 %v3859
        %v4670 = vunpack.c.l.b16 %v3860
        %v4671 = vunpack.c.l.b16 %v3861
        %v4672 = vunpack.c.h.b16 %v3861
        %v4673 = vunpack.c.l.b16 %v3862
        %v4674 = vunpack.c.l.b16 %v3863
        %v4675 = vunpack.c.h.b16 %v3863
        %v4676 = vunpack.c.l.b16 %v3864
        %v4677 = vunpack.c.l.b16 %v3865
        %v4678 = vunpack.c.h.b16 %v3865
        %v4679 = vunpack.c.l.b16 %v3866
        %v4680 = vunpack.c.l.b16 %v3867
        %v4681 = vunpack.c.h.b16 %v3867
        %v4682 = vunpack.c.l.b16 %v3868
        %v4683 = vunpack.c.l.b16 %v3869
        %v4684 = vunpack.c.h.b16 %v3869
        %v4685 = vunpack.c.l.b16 %v3870
        %v4686 = vunpack.c.l.b16 %v3871
        %v4687 = vunpack.c.h.b16 %v3871
        %v4688 = vunpack.c.l.b16 %v3872
        %v4689 = vunpack.c.l.b16 %v3873
        %v4690 = vunpack.c.h.b16 %v3873
        %v4691 = vunpack.c.l.b16 %v3874
        %v4692 = vunpack.c.l.b16 %v3875
        %v4693 = vunpack.c.h.b16 %v3875
        %v4694 = vunpack.c.l.b16 %v3876
        %v4695 = vunpack.c.l.b16 %v3877
        %v4696 = vunpack.c.h.b16 %v3877
        %v4697 = vunpack.c.l.b16 %v3878
        %v4698 = vunpack.c.l.b16 %v3879
        %v4699 = vunpack.c.h.b16 %v3879
        %v4700 = vunpack.c.l.b16 %v3880
        %v4701 = vunpack.c.l.b16 %v3881
        %v4702 = vunpack.c.h.b16 %v3881
        %v4703 = vunpack.c.l.b16 %v3882
        %v4704 = vunpack.c.l.b16 %v3883
        %v4705 = vunpack.c.h.b16 %v3883
        %v4706 = vunpack.c.l.b16 %v3884
        %v4707 = vunpack.c.l.b16 %v3885
        %v4708 = vunpack.c.h.b16 %v3885
        %v4709 = vunpack.c.l.b16 %v3886
        %v4710 = vunpack.c.l.b16 %v3887
        %v4711 = vunpack.c.h.b16 %v3887
        %v4712 = vunpack.c.l.b16 %v3888
        %v4713 = vunpack.c.l.b16 %v3889
        %v4714 = vunpack.c.h.b16 %v3889
        %v4715 = vunpack.c.l.b16 %v3890
        %v4716 = vunpack.c.l.b16 %v3891
        %v4717 = vunpack.c.h.b16 %v3891
        %v4718 = vunpack.c.l.b16 %v3892
        %v4719 = vunpack.c.l.b16 %v3893
        %v4720 = vunpack.c.h.b16 %v3893
        %v4721 = vunpack.c.l.b16 %v3894
        %v4722 = vunpack.c.l.b16 %v3895
        %v4723 = vunpack.c.h.b16 %v3895
        %v4724 = vunpack.c.l.b16 %v3896
        %v4725 = vunpack.c.l.b16 %v3897
        %v4726 = vunpack.c.h.b16 %v3897
        %v4727 = vunpack.c.l.b16 %v3898
        %v4728 = vunpack.c.l.b16 %v3899
        %v4729 = vunpack.c.h.b16 %v3899
        %v4730 = vunpack.c.l.b16 %v3900
        %v4731 = vunpack.c.l.b16 %v3901
        %v4732 = vunpack.c.h.b16 %v3901
        %v4733 = vunpack.c.l.b16 %v3902
        %v4734 = vunpack.c.l.b16 %v3903
        %v4735 = vunpack.c.h.b16 %v3903
        %v4736 = vunpack.c.l.b16 %v3904
        %v4737 = vunpack.c.l.b16 %v3905
        %v4738 = vunpack.c.h.b16 %v3905
        %v4739 = vunpack.c.l.b16 %v3906
        %v4740 = vunpack.c.l.b16 %v3907
        %v4741 = vunpack.c.h.b16 %v3907
        %v4742 = vunpack.c.l.b16 %v3908
        %v4743 = vunpack.c.l.b16 %v3909
        %v4744 = vunpack.c.h.b16 %v3909
        %v4745 = vunpack.c.l.b16 %v3910
        %v4746 = vunpack.c.l.b16 %v3911
        %v4747 = vunpack.c.h.b16 %v3911
        %v4748 = vunpack.c.l.b16 %v3912
        %v4749 = vunpack.c.l.b16 %v3913
        %v4750 = vunpack.c.h.b16 %v3913
        %v4751 = vunpack.c.l.b16 %v3914
        %v4752 = vunpack.c.l.b16 %v3915
        %v4753 = vunpack.c.h.b16 %v3915
        %v4754 = vunpack.c.l.b16 %v3916
        %v4755 = vunpack.c.l.b16 %v3917
        %v4756 = vunpack.c.h.b16 %v3917
        %v4757 = vunpack.c.l.b16 %v3918
        %v4758 = vunpack.c.l.b16 %v3919
        %v4759 = vunpack.c.h.b16 %v3919
        %v4760 = vunpack.c.l.b16 %v3920
        %v4761 = vunpack.c.l.b16 %v3921
        %v4762 = vunpack.c.h.b16 %v3921
        %v4763 = vunpack.c.l.b16 %v3922
        %v4764 = vunpack.c.l.b16 %v3923
        %v4765 = vunpack.c.h.b16 %v3923
        %v4766 = vunpack.c.l.b16 %v3924
        %v4767 = vunpack.c.l.b16 %v3925
        %v4768 = vunpack.c.h.b16 %v3925
        %v4769 = vunpack.c.l.b16 %v3926
        %v4770 = vunpack.c.l.b16 %v3927
        %v4771 = vunpack.c.h.b16 %v3927
        %v4772 = vunpack.c.l.b16 %v3928
        %v4773 = vunpack.c.l.b16 %v3929
        %v4774 = vunpack.c.h.b16 %v3929
        %v4775 = vunpack.c.l.b16 %v3930
        %v4776 = vunpack.c.l.b16 %v3931
        %v4777 = vunpack.c.h.b16 %v3931
        %v4778 = vunpack.c.l.b16 %v3932
        %v4779 = vunpack.c.l.b16 %v3933
        %v4780 = vunpack.c.h.b16 %v3933
        %v4781 = vunpack.c.l.b16 %v3934
        %v4782 = vunpack.c.l.b16 %v3935
        %v4783 = vunpack.c.h.b16 %v3935
        %v4784 = vunpack.c.l.b16 %v3936
        %v4785 = vunpack.c.l.b16 %v3937
        %v4786 = vunpack.c.h.b16 %v3937
        %v4787 = vunpack.c.l.b16 %v3938
        %v4788 = vunpack.c.l.b16 %v3939
        %v4789 = vunpack.c.h.b16 %v3939
        %v4790 = vunpack.c.l.b16 %v3940
        %v4791 = vunpack.c.l.b16 %v3941
        %v4792 = vunpack.c.h.b16 %v3941
        %v4793 = vunpack.c.l.b16 %v3942
        %v4794 = vunpack.c.l.b16 %v3943
        %v4795 = vunpack.c.h.b16 %v3943
        %v4796 = vunpack.c.l.b16 %v3944
        %v4797 = vunpack.c.l.b16 %v3945
        %v4798 = vunpack.c.h.b16 %v3945
        %v4799 = vunpack.c.l.b16 %v3946
        %v4800 = vunpack.c.l.b16 %v3947
        %v4801 = vunpack.c.h.b16 %v3947
        %v4802 = vunpack.c.l.b16 %v3948
        %v4803 = vunpack.c.l.b16 %v3949
        %v4804 = vunpack.c.h.b16 %v3949
        %v4805 = vunpack.c.l.b16 %v3950
        %v4806 = vunpack.c.l.b16 %v3951
        %v4807 = vunpack.c.h.b16 %v3951
        %v4808 = vunpack.c.l.b16 %v3952
        %v4809 = vunpack.c.l.b16 %v3953
        %v4810 = vunpack.c.h.b16 %v3953
        %v4811 = vunpack.c.l.b16 %v3954
        %v4812 = vunpack.c.l.b16 %v3955
        %v4813 = vunpack.c.h.b16 %v3955
        %v4814 = vunpack.c.l.b16 %v3956
        %v4815 = vunpack.c.l.b16 %v3957
        %v4816 = vunpack.c.h.b16 %v3957
        %v4817 = vunpack.c.l.b16 %v3958
        %v4818 = vunpack.c.l.b16 %v3959
        %v4819 = vunpack.c.h.b16 %v3959
        %v4820 = vunpack.c.l.b16 %v3960
        %v4821 = vunpack.c.l.b16 %v3961
        %v4822 = vunpack.c.h.b16 %v3961
        %v4823 = vunpack.c.l.b16 %v3962
        %v4824 = vunpack.c.l.b16 %v3963
        %v4825 = vunpack.c.h.b16 %v3963
        %v4826 = vunpack.c.l.b16 %v3964
        %v4827 = vunpack.c.l.b16 %v3965
        %v4828 = vunpack.c.h.b16 %v3965
        %v4829 = vunpack.c.l.b16 %v3966
        %v4830 = vunpack.c.l.b16 %v3967
        %v4831 = vunpack.c.h.b16 %v3967
        %v4832 = vunpack.c.l.b16 %v3968
        %v4833 = vunpack.c.l.b16 %v3969
        %v4834 = vunpack.c.h.b16 %v3969
        %v4835 = vunpack.c.l.b16 %v3970
        %v4836 = vunpack.c.l.b16 %v3971
        %v4837 = vunpack.c.h.b16 %v3971
        %v4838 = vunpack.c.l.b16 %v3972
        %v4839 = vunpack.c.l.b16 %v3973
        %v4840 = vunpack.c.h.b16 %v3973
        %v4841 = vunpack.c.l.b16 %v3974
        %v4842 = vunpack.c.l.b16 %v3975
        %v4843 = vunpack.c.h.b16 %v3975
        %v4844 = vunpack.c.l.b16 %v3976
        %v4845 = vunpack.c.l.b16 %v3977
        %v4846 = vunpack.c.h.b16 %v3977
        %v4847 = vunpack.c.l.b16 %v3978
        %v4848 = vunpack.c.l.b16 %v3979
        %v4849 = vunpack.c.h.b16 %v3979
        %v4850 = vunpack.c.l.b16 %v3980
        %v4851 = vunpack.c.l.b16 %v3981
        %v4852 = vunpack.c.h.b16 %v3981
        %v4853 = vunpack.c.l.b16 %v3982
        %v4854 = vunpack.c.l.b16 %v3983
        %v4855 = vunpack.c.h.b16 %v3983
        %v4856 = vunpack.c.l.b16 %v3984
        %v4857 = vunpack.c.l.b16 %v3985
        %v4858 = vunpack.c.h.b16 %v3985
        %v4859 = vunpack.c.l.b16 %v3986
        %v4860 = vunpack.c.l.b16 %v3987
        %v4861 = vunpack.c.h.b16 %v3987
        %v4862 = vunpack.c.l.b16 %v3988
        %v4863 = vunpack.c.l.b16 %v3989
        %v4864 = vunpack.c.h.b16 %v3989
        %v4865 = vunpack.c.l.b16 %v3990
        %v4866 = vunpack.c.l.b16 %v3991
        %v4867 = vunpack.c.h.b16 %v3991
        %v4868 = vunpack.c.l.b16 %v3992
        %v4869 = vunpack.c.l.b16 %v3993
        %v4870 = vunpack.c.h.b16 %v3993
        %v4871 = vunpack.c.l.b16 %v3994
        %v4872 = vunpack.c.l.b16 %v3995
        %v4873 = vunpack.c.h.b16 %v3995
        %v4874 = vunpack.c.l.b16 %v3996
        %v4875 = vunpack.c.l.b16 %v3997
        %v4876 = vunpack.c.h.b16 %v3997
        %v4877 = vunpack.c.l.b16 %v3998
        %v4878 = vunpack.c.l.b16 %v3999
        %v4879 = vunpack.c.h.b16 %v3999
        %v4880 = vunpack.c.l.b16 %v4000
        %v4881 = vunpack.c.l.b16 %v4001
        %v4882 = vunpack.c.h.b16 %v4001
        %v4883 = vunpack.c.l.b16 %v4002
        %v4884 = vunpack.c.l.b16 %v4003
        %v4885 = vunpack.c.h.b16 %v4003
        %v4886 = vunpack.c.l.b16 %v4004
        %v4887 = vunpack.c.l.b16 %v4005
        %v4888 = vunpack.c.h.b16 %v4005
        %v4889 = vunpack.c.l.b16 %v4006
        %v4890 = vunpack.c.l.b16 %v4007
        %v4891 = vunpack.c.h.b16 %v4007
        %v4892 = vunpack.c.l.b16 %v4008
        %v4893 = vunpack.c.l.b16 %v4009
        %v4894 = vunpack.c.h.b16 %v4009
        %v4895 = vunpack.c.l.b16 %v4010
        %v4896 = vunpack.c.l.b16 %v4011
        %v4897 = vunpack.c.h.b16 %v4011
        %v4898 = vunpack.c.l.b16 %v4012
        %v4899 = vunpack.c.l.b16 %v4013
        %v4900 = vunpack.c.h.b16 %v4013
        %v4901 = vunpack.c.l.b16 %v4014
        %v4902 = vunpack.c.l.b16 %v4015
        %v4903 = vunpack.c.h.b16 %v4015
        %v4904 = vunpack.c.l.b16 %v4016
        %v4905 = vunpack.c.l.b16 %v4017
        %v4906 = vunpack.c.h.b16 %v4017
        %v4907 = vunpack.c.l.b16 %v4018
        %v4908 = vunpack.c.l.b16 %v4019
        %v4909 = vunpack.c.h.b16 %v4019
        %v4910 = vunpack.c.l.b16 %v4020
        %v4911 = vunpack.c.l.b16 %v4021
        %v4912 = vunpack.c.h.b16 %v4021
        %v4913 = vunpack.c.l.b16 %v4022
        %v4914 = vunpack.c.l.b16 %v4023
        %v4915 = vunpack.c.h.b16 %v4023
        %v4916 = vunpack.c.l.b16 %v4024
        %v4917 = vunpack.c.l.b16 %v4025
        %v4918 = vunpack.c.h.b16 %v4025
        %v4919 = vunpack.c.l.b16 %v4026
        %v4920 = vunpack.c.l.b16 %v4027
        %v4921 = vunpack.c.h.b16 %v4027
        %v4922 = vunpack.c.l.b16 %v4028
        %v4923 = vunpack.c.l.b16 %v4029
        %v4924 = vunpack.c.h.b16 %v4029
        %v4925 = vunpack.c.l.b16 %v4030
        %v4926 = vunpack.c.l.b16 %v4031
        %v4927 = vunpack.c.h.b16 %v4031
        %v4928 = vunpack.c.l.b16 %v4032
        %v4929 = vunpack.c.l.b16 %v4033
        %v4930 = vunpack.c.h.b16 %v4033
        %v4931 = vunpack.c.l.b16 %v4034
        %v4932 = vunpack.c.l.b16 %v4035
        %v4933 = vunpack.c.h.b16 %v4035
        %v4934 = vunpack.c.l.b16 %v4036
        %v4935 = vunpack.c.l.b16 %v4037
        %v4936 = vunpack.c.h.b16 %v4037
        %v4937 = vunpack.c.l.b16 %v4038
        %v4938 = vunpack.c.l.b16 %v4039
        %v4939 = vunpack.c.h.b16 %v4039
        %v4940 = vunpack.c.l.b16 %v4040
        %v4941 = vunpack.c.l.b16 %v4041
        %v4942 = vunpack.c.h.b16 %v4041
        %v4943 = vunpack.c.l.b16 %v4042
        %v4944 = vunpack.c.l.b16 %v4043
        %v4945 = vunpack.c.h.b16 %v4043
        %v4946 = vunpack.c.l.b16 %v4044
        %v4947 = vunpack.c.l.b16 %v4045
        %v4948 = vunpack.c.h.b16 %v4045
        %v4949 = vunpack.c.l.b16 %v4046
        %v4950 = vunpack.c.l.b16 %v4047
        %v4951 = vunpack.c.h.b16 %v4047
        %v4952 = vunpack.c.l.b16 %v4048
        %v4953 = vunpack.c.l.b16 %v4049
        %v4954 = vunpack.c.h.b16 %v4049
        %v4955 = vunpack.c.l.b16 %v4050
        %v4956 = vunpack.c.l.b16 %v4051
        %v4957 = vunpack.c.h.b16 %v4051
        %v4958 = vunpack.c.l.b16 %v4052
        %v4959 = vunpack.c.l.b16 %v4053
        %v4960 = vunpack.c.h.b16 %v4053
        %v4961 = vunpack.c.l.b16 %v4054
        %v4962 = vunpack.c.l.b16 %v4055
        %v4963 = vunpack.c.h.b16 %v4055
        %v4964 = vunpack.c.l.b16 %v4056
        %v4965 = vunpack.c.l.b16 %v4057
        %v4966 = vunpack.c.h.b16 %v4057
        %v4967 = vunpack.c.l.b16 %v4058
        %v4968 = vunpack.c.l.b16 %v4059
        %v4969 = vunpack.c.h.b16 %v4059
        %v4970 = vunpack.c.l.b16 %v4060
        %v4971 = vunpack.c.l.b16 %v4061
        %v4972 = vunpack.c.h.b16 %v4061
        %v4973 = vunpack.c.l.b16 %v4062
        %v4974 = vunpack.c.l.b16 %v4063
        %v4975 = vunpack.c.h.b16 %v4063
        %v4976 = vunpack.c.l.b16 %v4064
        %v4977 = vunpack.c.l.b16 %v4065
        %v4978 = vunpack.c.h.b16 %v4065
        %v4979 = vunpack.c.l.b16 %v4066
        %v4980 = vunpack.c.l.b16 %v4067
        %v4981 = vunpack.c.h.b16 %v4067
        %v4982 = vunpack.c.l.b16 %v4068
        %v4983 = vunpack.c.l.b16 %v4069
        %v4984 = vunpack.c.h.b16 %v4069
        %v4985 = vunpack.c.l.b16 %v4070
        %v4986 = vunpack.c.l.b16 %v4071
        %v4987 = vunpack.c.h.b16 %v4071
        %v4988 = vunpack.c.l.b16 %v4072
        %v4989 = vunpack.c.l.b16 %v4073
        %v4990 = vunpack.c.h.b16 %v4073
        %v4991 = vunpack.c.l.b16 %v4074
        %v4992 = vunpack.c.l.b16 %v4075
        %v4993 = vunpack.c.h.b16 %v4075
        %v4994 = vunpack.c.l.b16 %v4076
        %v4995 = vunpack.c.l.b16 %v4077
        %v4996 = vunpack.c.h.b16 %v4077
        %v4997 = vunpack.c.l.b16 %v4078
        %v4998 = vunpack.c.l.b16 %v4079
        %v4999 = vunpack.c.h.b16 %v4079
        %v5000 = vunpack.c.l.b16 %v4080
        %v5001 = vunpack.c.l.b16 %v4081
        %v5002 = vunpack.c.h.b16 %v4081
        %v5003 = vunpack.c.l.b16 %v4082
        %v5004 = vunpack.c.l.b16 %v4083
        %v5005 = vunpack.c.h.b16 %v4083
        %v5006 = vunpack.c.l.b16 %v4084
        %v5007 = vunpack.c.l.b16 %v4085
        %v5008 = vunpack.c.h.b16 %v4085
        %v5009 = vunpack.c.l.b16 %v4086
        %v5010 = vunpack.c.l.b16 %v4087
        %v5011 = vunpack.c.h.b16 %v4087
        %v5012 = vunpack.c.l.b16 %v4088
        %v5013 = vunpack.c.l.b16 %v4089
        %v5014 = vunpack.c.h.b16 %v4089
        %v5015 = vunpack.c.l.b16 %v4090
        %v5016 = vunpack.c.l.b16 %v4091
        %v5017 = vunpack.c.h.b16 %v4091
        %v5018 = vunpack.c.l.b16 %v4092
        %v5019 = vunpack.c.l.b16 %v4093
        %v5020 = vunpack.c.h.b16 %v4093
        %v5021 = vunpack.c.l.b16 %v4094
        %v5022 = vunpack.c.l.b16 %v4095
        %v5023 = vunpack.c.h.b16 %v4095
        %v5024 = vunpack.c.l.b16 %v4096
        %v5025 = vunpack.c.l.b16 %v4097
        %v5026 = vunpack.c.h.b16 %v4097
        %v5027 = vunpack.c.l.b16 %v4098
        %v5028 = vunpack.c.l.b16 %v4099
        %v5029 = vunpack.c.h.b16 %v4099
        %v5030 = vunpack.c.l.b16 %v4100
        %v5031 = vunpack.c.l.b16 %v4101
        %v5032 = vunpack.c.h.b16 %v4101
        %v5033 = vunpack.c.l.b16 %v4102
        %v5034 = vunpack.c.l.b16 %v4103
        %v5035 = vunpack.c.h.b16 %v4103
        %v5036 = vunpack.c.l.b16 %v4104
        %v5037 = vunpack.c.l.b16 %v4105
        %v5038 = vunpack.c.h.b16 %v4105
        %v5039 = vunpack.c.l.b16 %v4106
        %v5040 = vunpack.c.l.b16 %v4107
        %v5041 = vunpack.c.h.b16 %v4107
        %v5042 = vunpack.c.l.b16 %v4108
        %v5043 = vunpack.c.l.b16 %v4109
        %v5044 = vunpack.c.h.b16 %v4109
        %v5045 = vunpack.c.l.b16 %v4110
        %v5046 = vunpack.c.l.b16 %v4111
        %v5047 = vunpack.c.h.b16 %v4111
        %v5048 = vunpack.c.l.b16 %v4112
        %v5049 = vunpack.c.l.b16 %v4113
        %v5050 = vunpack.c.h.b16 %v4113
        %v5051 = vunpack.c.l.b16 %v4114
        %v5052 = vunpack.c.l.b16 %v4115
        %v5053 = vunpack.c.h.b16 %v4115
        %v5054 = vunpack.c.l.b16 %v4116
        %v5055 = vunpack.c.l.b16 %v4117
        %v5056 = vunpack.c.h.b16 %v4117
        %v5057 = vunpack.c.l.b16 %v4118
        %v5058 = vunpack.c.l.b16 %v4119
        %v5059 = vunpack.c.h.b16 %v4119
        %v5060 = vunpack.c.l.b16 %v4120
        %v5061 = vunpack.c.l.b16 %v4121
        %v5062 = vunpack.c.h.b16 %v4121
        %v5063 = vunpack.c.l.b16 %v4122
        %v5064 = vunpack.c.l.b16 %v4123
        %v5065 = vunpack.c.h.b16 %v4123
        %v5066 = vunpack.c.l.b16 %v4124
        %v5067 = vunpack.c.l.b16 %v4125
        %v5068 = vunpack.c.h.b16 %v4125
        %v5069 = vunpack.c.l.b16 %v4126
        %v5070 = vunpack.c.l.b16 %v4127
        %v5071 = vunpack.c.h.b16 %v4127
        %v5072 = vunpack.c.l.b16 %v4128
        %v5073 = vunpack.c.l.b16 %v4129
        %v5074 = vunpack.c.h.b16 %v4129
        %v5075 = vunpack.c.l.b16 %v4130
        %v5076 = vunpack.c.l.b16 %v4131
        %v5077 = vunpack.c.h.b16 %v4131
        %v5078 = vunpack.c.l.b16 %v4132
        %v5079 = vunpack.c.l.b16 %v4133
        %v5080 = vunpack.c.h.b16 %v4133
        %v5081 = vunpack.c.l.b16 %v4134
        %v5082 = vunpack.c.l.b16 %v4135
        %v5083 = vunpack.c.h.b16 %v4135
        %v5084 = vunpack.c.l.b16 %v4136
        %v5085 = vunpack.c.l.b16 %v4137
        %v5086 = vunpack.c.h.b16 %v4137
        %v5087 = vunpack.c.l.b16 %v4138
        %v5088 = vunpack.c.l.b16 %v4139
        %v5089 = vunpack.c.h.b16 %v4139
        %v5090 = vunpack.c.l.b16 %v4140
        %v5091 = vunpack.c.l.b16 %v4141
        %v5092 = vunpack.c.h.b16 %v4141
        %v5093 = vunpack.c.l.b16 %v4142
        %v5094 = vunpack.c.l.b16 %v4143
        %v5095 = vunpack.c.h.b16 %v4143
        %v5096 = vunpack.c.l.b16 %v4144
        %v5097 = vunpack.c.l.b16 %v4145
        %v5098 = vunpack.c.h.b16 %v4145
        %v5099 = vunpack.c.l.b16 %v4146
        %v5100 = vunpack.c.l.b16 %v4147
        %v5101 = vunpack.c.h.b16 %v4147
        %v5102 = vunpack.c.l.b16 %v4148
        %v5103 = vunpack.c.l.b16 %v4149
        %v5104 = vunpack.c.h.b16 %v4149
        %v5105 = vunpack.c.l.b16 %v4150
        %v5106 = vunpack.c.l.b16 %v4151
        %v5107 = vunpack.c.h.b16 %v4151
        %v5108 = vunpack.c.l.b16 %v4152
        %v5109 = vunpack.c.l.b16 %v4153
        %v5110 = vunpack.c.h.b16 %v4153
        %v5111 = vunpack.c.l.b16 %v4154
        %v5112 = vunpack.c.l.b16 %v4155
        %v5113 = vunpack.c.h.b16 %v4155
        %v5114 = vunpack.c.l.b16 %v4156
        %v5115 = vunpack.c.l.b16 %v4157
        %v5116 = vunpack.c.h.b16 %v4157
        %v5117 = vunpack.c.l.b16 %v4158
        %v5118 = vunpack.c.l.b16 %v4159
        %v5119 = vunpack.c.h.b16 %v4159
        %v5120 = vunpack.c.l.b16 %v4160
        %v5121 = vunpack.c.l.b16 %v4161
        %v5122 = vunpack.c.h.b16 %v4161
        %v5123 = vunpack.c.l.b16 %v4162
        %v5124 = vunpack.c.l.b16 %v4163
        %v5125 = vunpack.c.h.b16 %v4163
        %v5126 = vunpack.c.l.b16 %v4164
        %v5127 = vunpack.c.l.b16 %v4165
        %v5128 = vunpack.c.h.b16 %v4165
        %v5129 = vunpack.c.l.b16 %v4166
        %v5130 = vunpack.c.l.b16 %v4167
        %v5131 = vunpack.c.h.b16 %v4167
        %v5132 = vunpack.c.l.b16 %v4168
        %v5133 = vunpack.c.l.b16 %v4169
        %v5134 = vunpack.c.h.b16 %v4169
        %v5135 = vunpack.c.l.b16 %v4170
        %v5136 = vunpack.c.l.b16 %v4171
        %v5137 = vunpack.c.h.b16 %v4171
        %v5138 = vunpack.c.l.b16 %v4172
        %v5139 = vunpack.c.l.b16 %v4173
        %v5140 = vunpack.c.h.b16 %v4173
        %v5141 = vunpack.c.l.b16 %v4174
        %v5142 = vunpack.c.l.b16 %v4175
        %v5143 = vunpack.c.h.b16 %v4175
        %v5144 = vunpack.c.l.b16 %v4176
        %v5145 = vunpack.c.l.b16 %v4177
        %v5146 = vunpack.c.h.b16 %v4177
        %v5147 = vunpack.c.l.b16 %v4178
        %v5148 = vunpack.c.l.b16 %v4179
        %v5149 = vunpack.c.h.b16 %v4179
        %v5150 = vunpack.c.l.b16 %v4180
        %v5151 = vunpack.c.l.b16 %v4181
        %v5152 = vunpack.c.h.b16 %v4181
        %v5153 = vunpack.c.l.b16 %v4182
        %v5154 = vunpack.c.l.b16 %v4183
        %v5155 = vunpack.c.h.b16 %v4183
        %v5156 = vunpack.c.l.b16 %v4184
        %v5157 = vunpack.c.l.b16 %v4185
        %v5158 = vunpack.c.h.b16 %v4185
        %v5159 = vunpack.c.l.b16 %v4186
        %v5160 = vunpack.c.l.b16 %v4187
        %v5161 = vunpack.c.h.b16 %v4187
        %v5162 = vunpack.c.l.b16 %v4188
        %v5163 = vunpack.c.l.b16 %v4189
        %v5164 = vunpack.c.h.b16 %v4189
        %v5165 = vunpack.c.l.b16 %v4190
        %v5166 = vunpack.c.l.b16 %v4191
        %v5167 = vunpack.c.h.b16 %v4191
        %v5168 = vunpack.c.l.b16 %v4192
        %v5169 = vunpack.c.l.b16 %v4193
        %v5170 = vunpack.c.h.b16 %v4193
        %v5171 = vunpack.c.l.b16 %v4194
        %v5172 = vpack.c.b16 %v4599, %v4596
        %v5173 = vpack.c.b16 %v4600, %v4597
        %v5174 = vpack.c.b16 %v4601, %v4598
        %v5175 = vpack.c.b16 %v4605, %v4602
        %v5176 = vpack.c.b16 %v4606, %v4603
        %v5177 = vpack.c.b16 %v4607, %v4604
        %v5178 = vpack.c.b16 %v4611, %v4608
        %v5179 = vpack.c.b16 %v4612, %v4609
        %v5180 = vpack.c.b16 %v4613, %v4610
        %v5181 = vpack.c.b16 %v4617, %v4614
        %v5182 = vpack.c.b16 %v4618, %v4615
        %v5183 = vpack.c.b16 %v4619, %v4616
        %v5184 = vpack.c.b16 %v4623, %v4620
        %v5185 = vpack.c.b16 %v4624, %v4621
        %v5186 = vpack.c.b16 %v4625, %v4622
        %v5187 = vpack.c.b16 %v4629, %v4626
        %v5188 = vpack.c.b16 %v4630, %v4627
        %v5189 = vpack.c.b16 %v4631, %v4628
        %v5190 = vpack.c.b16 %v4635, %v4632
        %v5191 = vpack.c.b16 %v4636, %v4633
        %v5192 = vpack.c.b16 %v4637, %v4634
        %v5193 = vpack.c.b16 %v4641, %v4638
        %v5194 = vpack.c.b16 %v4642, %v4639
        %v5195 = vpack.c.b16 %v4643, %v4640
        %v5196 = vpack.c.b16 %v4647, %v4644
        %v5197 = vpack.c.b16 %v4648, %v4645
        %v5198 = vpack.c.b16 %v4649, %v4646
        %v5199 = vpack.c.b16 %v4653, %v4650
        %v5200 = vpack.c.b16 %v4654, %v4651
        %v5201 = vpack.c.b16 %v4655, %v4652
        %v5202 = vpack.c.b16 %v4659, %v4656
        %v5203 = vpack.c.b16 %v4660, %v4657
        %v5204 = vpack.c.b16 %v4661, %v4658
        %v5205 = vpack.c.b16 %v4665, %v4662
        %v5206 = vpack.c.b16 %v4666, %v4663
        %v5207 = vpack.c.b16 %v4667, %v4664
        %v5208 = vpack.c.b16 %v4671, %v4668
        %v5209 = vpack.c.b16 %v4672, %v4669
        %v5210 = vpack.c.b16 %v4673, %v4670
        %v5211 = vpack.c.b16 %v4677, %v4674
        %v5212 = vpack.c.b16 %v4678, %v4675
        %v5213 = vpack.c.b16 %v4679, %v4676
        %v5214 = vpack.c.b16 %v4683, %v4680
        %v5215 = vpack.c.b16 %v4684, %v4681
        %v5216 = vpack.c.b16 %v4685, %v4682
        %v5217 = vpack.c.b16 %v4689, %v4686
        %v5218 = vpack.c.b16 %v4690, %v4687
        %v5219 = vpack.c.b16 %v4691, %v4688
        %v5220 = vpack.c.b16 %v4695, %v4692
        %v5221 = vpack.c.b16 %v4696, %v4693
        %v5222 = vpack.c.b16 %v4697, %v4694
        %v5223 = vpack.c.b16 %v4701, %v4698
        %v5224 = vpack.c.b16 %v4702, %v4699
        %v5225 = vpack.c.b16 %v4703, %v4700
        %v5226 = vpack.c.b16 %v4707, %v4704
        %v5227 = vpack.c.b16 %v4708, %v4705
        %v5228 = vpack.c.b16 %v4709, %v4706
        %v5229 = vpack.c.b16 %v4713, %v4710
        %v5230 = vpack.c.b16 %v4714, %v4711
        %v5231 = vpack.c.b16 %v4715, %v4712
        %v5232 = vpack.c.b16 %v4719, %v4716
        %v5233 = vpack.c.b16 %v4720, %v4717
        %v5234 = vpack.c.b16 %v4721, %v4718
        %v5235 = vpack.c.b16 %v4725, %v4722
        %v5236 = vpack.c.b16 %v4726, %v4723
        %v5237 = vpack.c.b16 %v4727, %v4724
        %v5238 = vpack.c.b16 %v4731, %v4728
        %v5239 = vpack.c.b16 %v4732, %v4729
        %v5240 = vpack.c.b16 %v4733, %v4730
        %v5241 = vpack.c.b16 %v4737, %v4734
        %v5242 = vpack.c.b16 %v4738, %v4735
        %v5243 = vpack.c.b16 %v4739, %v4736
        %v5244 = vpack.c.b16 %v4743, %v4740
        %v5245 = vpack.c.b16 %v4744, %v4741
        %v5246 = vpack.c.b16 %v4745, %v4742
        %v5247 = vpack.c.b16 %v4749, %v4746
        %v5248 = vpack.c.b16 %v4750, %v4747
        %v5249 = vpack.c.b16 %v4751, %v4748
        %v5250 = vpack.c.b16 %v4755, %v4752
        %v5251 = vpack.c.b16 %v4756, %v4753
        %v5252 = vpack.c.b16 %v4757, %v4754
        %v5253 = vpack.c.b16 %v4761, %v4758
        %v5254 = vpack.c.b16 %v4762, %v4759
        %v5255 = vpack.c.b16 %v4763, %v4760
        %v5256 = vpack.c.b16 %v4767, %v4764
        %v5257 = vpack.c.b16 %v4768, %v4765
        %v5258 = vpack.c.b16 %v4769, %v4766
        %v5259 = vpack.c.b16 %v4773, %v4770
        %v5260 = vpack.c.b16 %v4774, %v4771
        %v5261 = vpack.c.b16 %v4775, %v4772
        %v5262 = vpack.c.b16 %v4779, %v4776
        %v5263 = vpack.c.b16 %v4780, %v4777
        %v5264 = vpack.c.b16 %v4781, %v4778
        %v5265 = vpack.c.b16 %v4785, %v4782
        %v5266 = vpack.c.b16 %v4786, %v4783
        %v5267 = vpack.c.b16 %v4787, %v4784
        %v5268 = vpack.c.b16 %v4791, %v4788
        %v5269 = vpack.c.b16 %v4792, %v4789
        %v5270 = vpack.c.b16 %v4793, %v4790
        %v5271 = vpack.c.b16 %v4797, %v4794
        %v5272 = vpack.c.b16 %v4798, %v4795
        %v5273 = vpack.c.b16 %v4799, %v4796
        %v5274 = vpack.c.b16 %v4803, %v4800
        %v5275 = vpack.c.b16 %v4804, %v4801
        %v5276 = vpack.c.b16 %v4805, %v4802
        %v5277 = vpack.c.b16 %v4809, %v4806
        %v5278 = vpack.c.b16 %v4810, %v4807
        %v5279 = vpack.c.b16 %v4811, %v4808
        %v5280 = vpack.c.b16 %v4815, %v4812
        %v5281 = vpack.c.b16 %v4816, %v4813
        %v5282 = vpack.c.b16 %v4817, %v4814
        %v5283 = vpack.c.b16 %v4821, %v4818
        %v5284 = vpack.c.b16 %v4822, %v4819
        %v5285 = vpack.c.b16 %v4823, %v4820
        %v5286 = vpack.c.b16 %v4827, %v4824
        %v5287 = vpack.c.b16 %v4828, %v4825
        %v5288 = vpack.c.b16 %v4829, %v4826
        %v5289 = vpack.c.b16 %v4833, %v4830
        %v5290 = vpack.c.b16 %v4834, %v4831
        %v5291 = vpack.c.b16 %v4835, %v4832
        %v5292 = vpack.c.b16 %v4839, %v4836
        %v5293 = vpack.c.b16 %v4840, %v4837
        %v5294 = vpack.c.b16 %v4841, %v4838
        %v5295 = vpack.c.b16 %v4845, %v4842
        %v5296 = vpack.c.b16 %v4846, %v4843
        %v5297 = vpack.c.b16 %v4847, %v4844
        %v5298 = vpack.c.b16 %v4851, %v4848
        %v5299 = vpack.c.b16 %v4852, %v4849
        %v5300 = vpack.c.b16 %v4853, %v4850
        %v5301 = vpack.c.b16 %v4857, %v4854
        %v5302 = vpack.c.b16 %v4858, %v4855
        %v5303 = vpack.c.b16 %v4859, %v4856
        %v5304 = vpack.c.b16 %v4863, %v4860
        %v5305 = vpack.c.b16 %v4864, %v4861
        %v5306 = vpack.c.b16 %v4865, %v4862
        %v5307 = vpack.c.b16 %v4869, %v4866
        %v5308 = vpack.c.b16 %v4870, %v4867
        %v5309 = vpack.c.b16 %v4871, %v4868
        %v5310 = vpack.c.b16 %v4875, %v4872
        %v5311 = vpack.c.b16 %v4876, %v4873
        %v5312 = vpack.c.b16 %v4877, %v4874
        %v5313 = vpack.c.b16 %v4881, %v4878
        %v5314 = vpack.c.b16 %v4882, %v4879
        %v5315 = vpack.c.b16 %v4883, %v4880
        %v5316 = vpack.c.b16 %v4887, %v4884
        %v5317 = vpack.c.b16 %v4888, %v4885
        %v5318 = vpack.c.b16 %v4889, %v4886
        %v5319 = vpack.c.b16 %v4893, %v4890
        %v5320 = vpack.c.b16 %v4894, %v4891
        %v5321 = vpack.c.b16 %v4895, %v4892
        %v5322 = vpack.c.b16 %v4899, %v4896
        %v5323 = vpack.c.b16 %v4900, %v4897
        %v5324 = vpack.c.b16 %v4901, %v4898
        %v5325 = vpack.c.b16 %v4905, %v4902
        %v5326 = vpack.c.b16 %v4906, %v4903
        %v5327 = vpack.c.b16 %v4907, %v4904
        %v5328 = vpack.c.b16 %v4911, %v4908
        %v5329 = vpack.c.b16 %v4912, %v4909
        %v5330 = vpack.c.b16 %v4913, %v4910
        %v5331 = vpack.c.b16 %v4917, %v4914
        %v5332 = vpack.c.b16 %v4918, %v4915
        %v5333 = vpack.c.b16 %v4919, %v4916
        %v5334 = vpack.c.b16 %v4923, %v4920
        %v5335 = vpack.c.b16 %v4924, %v4921
        %v5336 = vpack.c.b16 %v4925, %v4922
        %v5337 = vpack.c.b16 %v4929, %v4926
        %v5338 = vpack.c.b16 %v4930, %v4927
        %v5339 = vpack.c.b16 %v4931, %v4928
        %v5340 = vpack.c.b16 %v4935, %v4932
        %v5341 = vpack.c.b16 %v4936, %v4933
        %v5342 = vpack.c.b16 %v4937, %v4934
        %v5343 = vpack.c.b16 %v4941, %v4938
        %v5344 = vpack.c.b16 %v4942, %v4939
        %v5345 = vpack.c.b16 %v4943, %v4940
        %v5346 = vpack.c.b16 %v4947, %v4944
        %v5347 = vpack.c.b16 %v4948, %v4945
        %v5348 = vpack.c.b16 %v4949, %v4946
        %v5349 = vpack.c.b16 %v4953, %v4950
        %v5350 = vpack.c.b16 %v4954, %v4951
        %v5351 = vpack.c.b16 %v4955, %v4952
        %v5352 = vpack.c.b16 %v4959, %v4956
        %v5353 = vpack.c.b16 %v4960, %v4957
        %v5354 = vpack.c.b16 %v4961, %v4958
        %v5355 = vpack.c.b16 %v4965, %v4962
        %v5356 = vpack.c.b16 %v4966, %v4963
        %v5357 = vpack.c.b16 %v4967, %v4964
        %v5358 = vpack.c.b16 %v4971, %v4968
        %v5359 = vpack.c.b16 %v4972, %v4969
        %v5360 = vpack.c.b16 %v4973, %v4970
        %v5361 = vpack.c.b16 %v4977, %v4974
        %v5362 = vpack.c.b16 %v4978, %v4975
        %v5363 = vpack.c.b16 %v4979, %v4976
        %v5364 = vpack.c.b16 %v4983, %v4980
        %v5365 = vpack.c.b16 %v4984, %v4981
        %v5366 = vpack.c.b16 %v4985, %v4982
        %v5367 = vpack.c.b16 %v4989, %v4986
        %v5368 = vpack.c.b16 %v4990, %v4987
        %v5369 = vpack.c.b16 %v4991, %v4988
        %v5370 = vpack.c.b16 %v4995, %v4992
        %v5371 = vpack.c.b16 %v4996, %v4993
        %v5372 = vpack.c.b16 %v4997, %v4994
        %v5373 = vpack.c.b16 %v5001, %v4998
        %v5374 = vpack.c.b16 %v5002, %v4999
        %v5375 = vpack.c.b16 %v5003, %v5000
        %v5376 = vpack.c.b16 %v5007, %v5004
        %v5377 = vpack.c.b16 %v5008, %v5005
        %v5378 = vpack.c.b16 %v5009, %v5006
        %v5379 = vpack.c.b16 %v5013, %v5010
        %v5380 = vpack.c.b16 %v5014, %v5011
        %v5381 = vpack.c.b16 %v5015, %v5012
        %v5382 = vpack.c.b16 %v5019, %v5016
        %v5383 = vpack.c.b16 %v5020, %v5017
        %v5384 = vpack.c.b16 %v5021, %v5018
        %v5385 = vpack.c.b16 %v5025, %v5022
        %v5386 = vpack.c.b16 %v5026, %v5023
        %v5387 = vpack.c.b16 %v5027, %v5024
        %v5388 = vpack.c.b16 %v5031, %v5028
        %v5389 = vpack.c.b16 %v5032, %v5029
        %v5390 = vpack.c.b16 %v5033, %v5030
        %v5391 = vpack.c.b16 %v5037, %v5034
        %v5392 = vpack.c.b16 %v5038, %v5035
        %v5393 = vpack.c.b16 %v5039, %v5036
        %v5394 = vpack.c.b16 %v5043, %v5040
        %v5395 = vpack.c.b16 %v5044, %v5041
        %v5396 = vpack.c.b16 %v5045, %v5042
        %v5397 = vpack.c.b16 %v5049, %v5046
        %v5398 = vpack.c.b16 %v5050, %v5047
        %v5399 = vpack.c.b16 %v5051, %v5048
        %v5400 = vpack.c.b16 %v5055, %v5052
        %v5401 = vpack.c.b16 %v5056, %v5053
        %v5402 = vpack.c.b16 %v5057, %v5054
        %v5403 = vpack.c.b16 %v5061, %v5058
        %v5404 = vpack.c.b16 %v5062, %v5059
        %v5405 = vpack.c.b16 %v5063, %v5060
        %v5406 = vpack.c.b16 %v5067, %v5064
        %v5407 = vpack.c.b16 %v5068, %v5065
        %v5408 = vpack.c.b16 %v5069, %v5066
        %v5409 = vpack.c.b16 %v5073, %v5070
        %v5410 = vpack.c.b16 %v5074, %v5071
        %v5411 = vpack.c.b16 %v5075, %v5072
        %v5412 = vpack.c.b16 %v5079, %v5076
        %v5413 = vpack.c.b16 %v5080, %v5077
        %v5414 = vpack.c.b16 %v5081, %v5078
        %v5415 = vpack.c.b16 %v5085, %v5082
        %v5416 = vpack.c.b16 %v5086, %v5083
        %v5417 = vpack.c.b16 %v5087, %v5084
        %v5418 = vpack.c.b16 %v5091, %v5088
        %v5419 = vpack.c.b16 %v5092, %v5089
        %v5420 = vpack.c.b16 %v5093, %v5090
        %v5421 = vpack.c.b16 %v5097, %v5094
        %v5422 = vpack.c.b16 %v5098, %v5095
        %v5423 = vpack.c.b16 %v5099, %v5096
        %v5424 = vpack.c.b16 %v5103, %v5100
        %v5425 = vpack.c.b16 %v5104, %v5101
        %v5426 = vpack.c.b16 %v5105, %v5102
        %v5427 = vpack.c.b16 %v5109, %v5106
        %v5428 = vpack.c.b16 %v5110, %v5107
        %v5429 = vpack.c.b16 %v5111, %v5108
        %v5430 = vpack.c.b16 %v5115, %v5112
        %v5431 = vpack.c.b16 %v5116, %v5113
        %v5432 = vpack.c.b16 %v5117, %v5114
        %v5433 = vpack.c.b16 %v5121, %v5118
        %v5434 = vpack.c.b16 %v5122, %v5119
        %v5435 = vpack.c.b16 %v5123, %v5120
        %v5436 = vpack.c.b16 %v5127, %v5124
        %v5437 = vpack.c.b16 %v5128, %v5125
        %v5438 = vpack.c.b16 %v5129, %v5126
        %v5439 = vpack.c.b16 %v5133, %v5130
        %v5440 = vpack.c.b16 %v5134, %v5131
        %v5441 = vpack.c.b16 %v5135, %v5132
        %v5442 = vpack.c.b16 %v5139, %v5136
        %v5443 = vpack.c.b16 %v5140, %v5137
        %v5444 = vpack.c.b16 %v5141, %v5138
        %v5445 = vpack.c.b16 %v5145, %v5142
        %v5446 = vpack.c.b16 %v5146, %v5143
        %v5447 = vpack.c.b16 %v5147, %v5144
        %v5448 = vpack.c.b16 %v5151, %v5148
        %v5449 = vpack.c.b16 %v5152, %v5149
        %v5450 = vpack.c.b16 %v5153, %v5150
        %v5451 = vpack.c.b16 %v5157, %v5154
        %v5452 = vpack.c.b16 %v5158, %v5155
        %v5453 = vpack.c.b16 %v5159, %v5156
        %v5454 = vpack.c.b16 %v5163, %v5160
        %v5455 = vpack.c.b16 %v5164, %v5161
        %v5456 = vpack.c.b16 %v5165, %v5162
        %v5457 = vpack.c.b16 %v5169, %v5166
        %v5458 = vpack.c.b16 %v5170, %v5167
        %v5459 = vpack.c.b16 %v5171, %v5168
        %5748 = vmatprep.subr.bf16.mxu0 %v5194
        %5749 = vmatpush1.bf16.msra.mxu0 %v5193
        %5750 = vmatprep.subr.bf16.mxu0 %v5191
        %5751 = vmatpush1.bf16.msra.mxu0 %v5190
        %5752 = vmatprep.subr.bf16.mxu0 %v5188
        %5753 = vmatpush1.bf16.msra.mxu0 %v5187
        %5754 = vmatprep.subr.bf16.mxu0 %v5185
        %5755 = vmatpush1.bf16.msra.mxu0 %v5184
        %5756 = vmatprep.subr.bf16.mxu0 %v5182
        %5757 = vmatpush1.bf16.msra.mxu0 %v5181
        %5758 = vmatprep.subr.bf16.mxu0 %v5179
        %5759 = vmatpush1.bf16.msra.mxu0 %v5178
        %5760 = vmatprep.subr.bf16.mxu0 %v5176
        %5761 = vmatpush1.bf16.msra.mxu0 %v5175
        %5762 = vmatprep.subr.bf16.mxu0 %v5173
        %5763 = vmatpush1.bf16.msra.mxu0 %v5172
        %5764 = vmatprep.subr.bf16.mxu0 %v5218
        %5765 = vmatpush2.bf16.msra.mxu0 %v5217
        %5766 = vmatprep.subr.bf16.mxu0 %v5215
        %5767 = vmatpush2.bf16.msra.mxu0 %v5214
        %5768 = vmatprep.subr.bf16.mxu0 %v5212
        %5769 = vmatpush2.bf16.msra.mxu0 %v5211
        %5770 = vmatprep.subr.bf16.mxu0 %v5209
        %5771 = vmatpush2.bf16.msra.mxu0 %v5208
        %5772 = vmatprep.subr.bf16.mxu0 %v5206
        %5773 = vmatpush2.bf16.msra.mxu0 %v5205
        %5774 = vmatprep.subr.bf16.mxu0 %v5203
        %5775 = vmatpush2.bf16.msra.mxu0 %v5202
        %5776 = vmatprep.subr.bf16.mxu0 %v5200
        %5777 = vmatpush2.bf16.msra.mxu0 %v5199
        %5778 = vmatprep.subr.bf16.mxu0 %v5197
        %5779 = vmatpush2.bf16.msra.mxu0 %v5196
        %5780 = vmatprep.mubr.bf16.mxu0 %v3716
        %5781 = vmatmul.mubr.bf16.gmra.mxu0 %v3715
        %v5782 = vpop.f32.mrf.mxu0
        %v5783 = vadd.f32 %v4200, %v5782
        %v5784 = vpop.f32.mrf.mxu0
        %v5785 = vadd.f32 %v4204, %v5784
        %v5786 = vpop.f32.mrf.mxu0
        %v5787 = vadd.f32 %v4200, %v5786
        %v5788 = vpop.f32.mrf.mxu0
        %v5789 = vadd.f32 %v4204, %v5788
        %5790 = vmatprep.mubr.bf16.mxu0 %v3728
        %5791 = vmatmul.mubr.bf16.gmra.mxu0 %v3727
        %v5792 = vpop.f32.mrf.mxu0
        %v5793 = vadd.f32 %v4200, %v5792
        %v5794 = vpop.f32.mrf.mxu0
        %v5795 = vadd.f32 %v4204, %v5794
        %v5796 = vpop.f32.mrf.mxu0
        %v5797 = vadd.f32 %v4200, %v5796
        %v5798 = vpop.f32.mrf.mxu0
        %v5799 = vadd.f32 %v4204, %v5798
        %5800 = vmatprep.mubr.bf16.mxu0 %v3740
        %5801 = vmatmul.mubr.bf16.gmra.mxu0 %v3739
        %v5802 = vpop.f32.mrf.mxu0
        %v5803 = vadd.f32 %v4200, %v5802
        %v5804 = vpop.f32.mrf.mxu0
        %v5805 = vadd.f32 %v4204, %v5804
        %v5806 = vpop.f32.mrf.mxu0
        %v5807 = vadd.f32 %v4200, %v5806
        %v5808 = vpop.f32.mrf.mxu0
        %v5809 = vadd.f32 %v4204, %v5808
        %5810 = vmatprep.mubr.bf16.mxu0 %v3752
        %5811 = vmatmul.mubr.bf16.gmra.mxu0 %v3751
        %v5812 = vpop.f32.mrf.mxu0
        %v5813 = vadd.f32 %v4200, %v5812
        %v5814 = vpop.f32.mrf.mxu0
        %v5815 = vadd.f32 %v4204, %v5814
        %v5816 = vpop.f32.mrf.mxu0
        %v5817 = vadd.f32 %v4200, %v5816
        %v5818 = vpop.f32.mrf.mxu0
        %v5819 = vadd.f32 %v4204, %v5818
        %5820 = vmatprep.mubr.bf16.mxu0 %v3764
        %5821 = vmatmul.mubr.bf16.gmra.mxu0 %v3763
        %v5822 = vpop.f32.mrf.mxu0
        %v5823 = vadd.f32 %v4200, %v5822
        %v5824 = vpop.f32.mrf.mxu0
        %v5825 = vadd.f32 %v4204, %v5824
        %v5826 = vpop.f32.mrf.mxu0
        %v5827 = vadd.f32 %v4200, %v5826
        %v5828 = vpop.f32.mrf.mxu0
        %v5829 = vadd.f32 %v4204, %v5828
        %5830 = vmatprep.mubr.bf16.mxu0 %v3776
        %5831 = vmatmul.mubr.bf16.gmra.mxu0 %v3775
        %v5832 = vpop.f32.mrf.mxu0
        %v5833 = vadd.f32 %v4200, %v5832
        %v5834 = vpop.f32.mrf.mxu0
        %v5835 = vadd.f32 %v4204, %v5834
        %v5836 = vpop.f32.mrf.mxu0
        %v5837 = vadd.f32 %v4200, %v5836
        %v5838 = vpop.f32.mrf.mxu0
        %v5839 = vadd.f32 %v4204, %v5838
        %5840 = vmatprep.mubr.bf16.mxu0 %v3788
        %5841 = vmatmul.mubr.bf16.gmra.mxu0 %v3787
        %v5842 = vpop.f32.mrf.mxu0
        %v5843 = vadd.f32 %v4200, %v5842
        %v5844 = vpop.f32.mrf.mxu0
        %v5845 = vadd.f32 %v4204, %v5844
        %v5846 = vpop.f32.mrf.mxu0
        %v5847 = vadd.f32 %v4200, %v5846
        %v5848 = vpop.f32.mrf.mxu0
        %v5849 = vadd.f32 %v4204, %v5848
        %5850 = vmatprep.mubr.bf16.mxu0 %v3800
        %5851 = vmatmul.mubr.bf16.gmra.mxu0 %v3799
        %v5852 = vpop.f32.mrf.mxu0
        %v5853 = vadd.f32 %v4200, %v5852
        %v5854 = vpop.f32.mrf.mxu0
        %v5855 = vadd.f32 %v4204, %v5854
        %v5856 = vpop.f32.mrf.mxu0
        %v5857 = vadd.f32 %v4200, %v5856
        %v5858 = vpop.f32.mrf.mxu0
        %v5859 = vadd.f32 %v4204, %v5858
        %5860 = vdwg.mxu0
        %5861 = vmatprep.subr.bf16.mxu0 %v5242
        %5862 = vmatpush1.bf16.msra.mxu0 %v5241
        %5863 = vmatprep.subr.bf16.mxu0 %v5239
        %5864 = vmatpush1.bf16.msra.mxu0 %v5238
        %5865 = vmatprep.subr.bf16.mxu0 %v5236
        %5866 = vmatpush1.bf16.msra.mxu0 %v5235
        %5867 = vmatprep.subr.bf16.mxu0 %v5233
        %5868 = vmatpush1.bf16.msra.mxu0 %v5232
        %5869 = vmatprep.subr.bf16.mxu0 %v5230
        %5870 = vmatpush1.bf16.msra.mxu0 %v5229
        %5871 = vmatprep.subr.bf16.mxu0 %v5227
        %5872 = vmatpush1.bf16.msra.mxu0 %v5226
        %5873 = vmatprep.subr.bf16.mxu0 %v5224
        %5874 = vmatpush1.bf16.msra.mxu0 %v5223
        %5875 = vmatprep.subr.bf16.mxu0 %v5221
        %5876 = vmatpush1.bf16.msra.mxu0 %v5220
        %5877 = vmatprep.subr.bf16.mxu0 %v5266
        %5878 = vmatpush2.bf16.msra.mxu0 %v5265
        %5879 = vmatprep.subr.bf16.mxu0 %v5263
        %5880 = vmatpush2.bf16.msra.mxu0 %v5262
        %5881 = vmatprep.subr.bf16.mxu0 %v5260
        %5882 = vmatpush2.bf16.msra.mxu0 %v5259
        %5883 = vmatprep.subr.bf16.mxu0 %v5257
        %5884 = vmatpush2.bf16.msra.mxu0 %v5256
        %5885 = vmatprep.subr.bf16.mxu0 %v5254
        %5886 = vmatpush2.bf16.msra.mxu0 %v5253
        %5887 = vmatprep.subr.bf16.mxu0 %v5251
        %5888 = vmatpush2.bf16.msra.mxu0 %v5250
        %5889 = vmatprep.subr.bf16.mxu0 %v5248
        %5890 = vmatpush2.bf16.msra.mxu0 %v5247
        %5891 = vmatprep.subr.bf16.mxu0 %v5245
        %5892 = vmatpush2.bf16.msra.mxu0 %v5244
        %5893 = vmatprep.mubr.bf16.mxu0 %v3718
        %5894 = vmatmul.mubr.bf16.gmra.mxu0 %v3717
        %v5895 = vpop.f32.mrf.mxu0
        %v5896 = vadd.f32 %v5783, %v5895
        %v5897 = vpop.f32.mrf.mxu0
        %v5898 = vadd.f32 %v5785, %v5897
        %v5899 = vpop.f32.mrf.mxu0
        %v5900 = vadd.f32 %v5787, %v5899
        %v5901 = vpop.f32.mrf.mxu0
        %v5902 = vadd.f32 %v5789, %v5901
        %5903 = vmatprep.mubr.bf16.mxu0 %v3730
        %5904 = vmatmul.mubr.bf16.gmra.mxu0 %v3729
        %v5905 = vpop.f32.mrf.mxu0
        %v5906 = vadd.f32 %v5793, %v5905
        %v5907 = vpop.f32.mrf.mxu0
        %v5908 = vadd.f32 %v5795, %v5907
        %v5909 = vpop.f32.mrf.mxu0
        %v5910 = vadd.f32 %v5797, %v5909
        %v5911 = vpop.f32.mrf.mxu0
        %v5912 = vadd.f32 %v5799, %v5911
        %5913 = vmatprep.mubr.bf16.mxu0 %v3742
        %5914 = vmatmul.mubr.bf16.gmra.mxu0 %v3741
        %v5915 = vpop.f32.mrf.mxu0
        %v5916 = vadd.f32 %v5803, %v5915
        %v5917 = vpop.f32.mrf.mxu0
        %v5918 = vadd.f32 %v5805, %v5917
        %v5919 = vpop.f32.mrf.mxu0
        %v5920 = vadd.f32 %v5807, %v5919
        %v5921 = vpop.f32.mrf.mxu0
        %v5922 = vadd.f32 %v5809, %v5921
        %5923 = vmatprep.mubr.bf16.mxu0 %v3754
        %5924 = vmatmul.mubr.bf16.gmra.mxu0 %v3753
        %v5925 = vpop.f32.mrf.mxu0
        %v5926 = vadd.f32 %v5813, %v5925
        %v5927 = vpop.f32.mrf.mxu0
        %v5928 = vadd.f32 %v5815, %v5927
        %v5929 = vpop.f32.mrf.mxu0
        %v5930 = vadd.f32 %v5817, %v5929
        %v5931 = vpop.f32.mrf.mxu0
        %v5932 = vadd.f32 %v5819, %v5931
        %5933 = vmatprep.mubr.bf16.mxu0 %v3766
        %5934 = vmatmul.mubr.bf16.gmra.mxu0 %v3765
        %v5935 = vpop.f32.mrf.mxu0
        %v5936 = vadd.f32 %v5823, %v5935
        %v5937 = vpop.f32.mrf.mxu0
        %v5938 = vadd.f32 %v5825, %v5937
        %v5939 = vpop.f32.mrf.mxu0
        %v5940 = vadd.f32 %v5827, %v5939
        %v5941 = vpop.f32.mrf.mxu0
        %v5942 = vadd.f32 %v5829, %v5941
        %5943 = vmatprep.mubr.bf16.mxu0 %v3778
        %5944 = vmatmul.mubr.bf16.gmra.mxu0 %v3777
        %v5945 = vpop.f32.mrf.mxu0
        %v5946 = vadd.f32 %v5833, %v5945
        %v5947 = vpop.f32.mrf.mxu0
        %v5948 = vadd.f32 %v5835, %v5947
        %v5949 = vpop.f32.mrf.mxu0
        %v5950 = vadd.f32 %v5837, %v5949
        %v5951 = vpop.f32.mrf.mxu0
        %v5952 = vadd.f32 %v5839, %v5951
        %5953 = vmatprep.mubr.bf16.mxu0 %v3790
        %5954 = vmatmul.mubr.bf16.gmra.mxu0 %v3789
        %v5955 = vpop.f32.mrf.mxu0
        %v5956 = vadd.f32 %v5843, %v5955
        %v5957 = vpop.f32.mrf.mxu0
        %v5958 = vadd.f32 %v5845, %v5957
        %v5959 = vpop.f32.mrf.mxu0
        %v5960 = vadd.f32 %v5847, %v5959
        %v5961 = vpop.f32.mrf.mxu0
        %v5962 = vadd.f32 %v5849, %v5961
        %5963 = vmatprep.mubr.bf16.mxu0 %v3802
        %5964 = vmatmul.mubr.bf16.gmra.mxu0 %v3801
        %v5965 = vpop.f32.mrf.mxu0
        %v5966 = vadd.f32 %v5853, %v5965
        %v5967 = vpop.f32.mrf.mxu0
        %v5968 = vadd.f32 %v5855, %v5967
        %v5969 = vpop.f32.mrf.mxu0
        %v5970 = vadd.f32 %v5857, %v5969
        %v5971 = vpop.f32.mrf.mxu0
        %v5972 = vadd.f32 %v5859, %v5971
        %5973 = vdwg.mxu0
        %5974 = vmatprep.subr.bf16.mxu0 %v5290
        %5975 = vmatpush1.bf16.msra.mxu0 %v5289
        %5976 = vmatprep.subr.bf16.mxu0 %v5287
        %5977 = vmatpush1.bf16.msra.mxu0 %v5286
        %5978 = vmatprep.subr.bf16.mxu0 %v5284
        %5979 = vmatpush1.bf16.msra.mxu0 %v5283
        %5980 = vmatprep.subr.bf16.mxu0 %v5281
        %5981 = vmatpush1.bf16.msra.mxu0 %v5280
        %5982 = vmatprep.subr.bf16.mxu0 %v5278
        %5983 = vmatpush1.bf16.msra.mxu0 %v5277
        %5984 = vmatprep.subr.bf16.mxu0 %v5275
        %5985 = vmatpush1.bf16.msra.mxu0 %v5274
        %5986 = vmatprep.subr.bf16.mxu0 %v5272
        %5987 = vmatpush1.bf16.msra.mxu0 %v5271
        %5988 = vmatprep.subr.bf16.mxu0 %v5269
        %5989 = vmatpush1.bf16.msra.mxu0 %v5268
        %5990 = vmatprep.subr.bf16.mxu0 %v5314
        %5991 = vmatpush2.bf16.msra.mxu0 %v5313
        %5992 = vmatprep.subr.bf16.mxu0 %v5311
        %5993 = vmatpush2.bf16.msra.mxu0 %v5310
        %5994 = vmatprep.subr.bf16.mxu0 %v5308
        %5995 = vmatpush2.bf16.msra.mxu0 %v5307
        %5996 = vmatprep.subr.bf16.mxu0 %v5305
        %5997 = vmatpush2.bf16.msra.mxu0 %v5304
        %5998 = vmatprep.subr.bf16.mxu0 %v5302
        %5999 = vmatpush2.bf16.msra.mxu0 %v5301
        %6000 = vmatprep.subr.bf16.mxu0 %v5299
        %6001 = vmatpush2.bf16.msra.mxu0 %v5298
        %6002 = vmatprep.subr.bf16.mxu0 %v5296
        %6003 = vmatpush2.bf16.msra.mxu0 %v5295
        %6004 = vmatprep.subr.bf16.mxu0 %v5293
        %6005 = vmatpush2.bf16.msra.mxu0 %v5292
        %6006 = vmatprep.mubr.bf16.mxu0 %v3720
        %6007 = vmatmul.mubr.bf16.gmra.mxu0 %v3719
        %v6008 = vpop.f32.mrf.mxu0
        %v6009 = vadd.f32 %v5896, %v6008
        %v6010 = vpop.f32.mrf.mxu0
        %v6011 = vadd.f32 %v5898, %v6010
        %v6012 = vpop.f32.mrf.mxu0
        %v6013 = vadd.f32 %v5900, %v6012
        %v6014 = vpop.f32.mrf.mxu0
        %v6015 = vadd.f32 %v5902, %v6014
        %6016 = vmatprep.mubr.bf16.mxu0 %v3732
        %6017 = vmatmul.mubr.bf16.gmra.mxu0 %v3731
        %v6018 = vpop.f32.mrf.mxu0
        %v6019 = vadd.f32 %v5906, %v6018
        %v6020 = vpop.f32.mrf.mxu0
        %v6021 = vadd.f32 %v5908, %v6020
        %v6022 = vpop.f32.mrf.mxu0
        %v6023 = vadd.f32 %v5910, %v6022
        %v6024 = vpop.f32.mrf.mxu0
        %v6025 = vadd.f32 %v5912, %v6024
        %6026 = vmatprep.mubr.bf16.mxu0 %v3744
        %6027 = vmatmul.mubr.bf16.gmra.mxu0 %v3743
        %v6028 = vpop.f32.mrf.mxu0
        %v6029 = vadd.f32 %v5916, %v6028
        %v6030 = vpop.f32.mrf.mxu0
        %v6031 = vadd.f32 %v5918, %v6030
        %v6032 = vpop.f32.mrf.mxu0
        %v6033 = vadd.f32 %v5920, %v6032
        %v6034 = vpop.f32.mrf.mxu0
        %v6035 = vadd.f32 %v5922, %v6034
        %6036 = vmatprep.mubr.bf16.mxu0 %v3756
        %6037 = vmatmul.mubr.bf16.gmra.mxu0 %v3755
        %v6038 = vpop.f32.mrf.mxu0
        %v6039 = vadd.f32 %v5926, %v6038
        %v6040 = vpop.f32.mrf.mxu0
        %v6041 = vadd.f32 %v5928, %v6040
        %v6042 = vpop.f32.mrf.mxu0
        %v6043 = vadd.f32 %v5930, %v6042
        %v6044 = vpop.f32.mrf.mxu0
        %v6045 = vadd.f32 %v5932, %v6044
        %6046 = vmatprep.mubr.bf16.mxu0 %v3768
        %6047 = vmatmul.mubr.bf16.gmra.mxu0 %v3767
        %v6048 = vpop.f32.mrf.mxu0
        %v6049 = vadd.f32 %v5936, %v6048
        %v6050 = vpop.f32.mrf.mxu0
        %v6051 = vadd.f32 %v5938, %v6050
        %v6052 = vpop.f32.mrf.mxu0
        %v6053 = vadd.f32 %v5940, %v6052
        %v6054 = vpop.f32.mrf.mxu0
        %v6055 = vadd.f32 %v5942, %v6054
        %6056 = vmatprep.mubr.bf16.mxu0 %v3780
        %6057 = vmatmul.mubr.bf16.gmra.mxu0 %v3779
        %v6058 = vpop.f32.mrf.mxu0
        %v6059 = vadd.f32 %v5946, %v6058
        %v6060 = vpop.f32.mrf.mxu0
        %v6061 = vadd.f32 %v5948, %v6060
        %v6062 = vpop.f32.mrf.mxu0
        %v6063 = vadd.f32 %v5950, %v6062
        %v6064 = vpop.f32.mrf.mxu0
        %v6065 = vadd.f32 %v5952, %v6064
        %6066 = vmatprep.mubr.bf16.mxu0 %v3792
        %6067 = vmatmul.mubr.bf16.gmra.mxu0 %v3791
        %v6068 = vpop.f32.mrf.mxu0
        %v6069 = vadd.f32 %v5956, %v6068
        %v6070 = vpop.f32.mrf.mxu0
        %v6071 = vadd.f32 %v5958, %v6070
        %v6072 = vpop.f32.mrf.mxu0
        %v6073 = vadd.f32 %v5960, %v6072
        %v6074 = vpop.f32.mrf.mxu0
        %v6075 = vadd.f32 %v5962, %v6074
        %6076 = vmatprep.mubr.bf16.mxu0 %v3804
        %6077 = vmatmul.mubr.bf16.gmra.mxu0 %v3803
        %v6078 = vpop.f32.mrf.mxu0
        %v6079 = vadd.f32 %v5966, %v6078
        %v6080 = vpop.f32.mrf.mxu0
        %v6081 = vadd.f32 %v5968, %v6080
        %v6082 = vpop.f32.mrf.mxu0
        %v6083 = vadd.f32 %v5970, %v6082
        %v6084 = vpop.f32.mrf.mxu0
        %v6085 = vadd.f32 %v5972, %v6084
        %6086 = vdwg.mxu0
        %6087 = vmatprep.subr.bf16.mxu0 %v5338
        %6088 = vmatpush1.bf16.msra.mxu0 %v5337
        %6089 = vmatprep.subr.bf16.mxu0 %v5335
        %6090 = vmatpush1.bf16.msra.mxu0 %v5334
        %6091 = vmatprep.subr.bf16.mxu0 %v5332
        %6092 = vmatpush1.bf16.msra.mxu0 %v5331
        %6093 = vmatprep.subr.bf16.mxu0 %v5329
        %6094 = vmatpush1.bf16.msra.mxu0 %v5328
        %6095 = vmatprep.subr.bf16.mxu0 %v5326
        %6096 = vmatpush1.bf16.msra.mxu0 %v5325
        %6097 = vmatprep.subr.bf16.mxu0 %v5323
        %6098 = vmatpush1.bf16.msra.mxu0 %v5322
        %6099 = vmatprep.subr.bf16.mxu0 %v5320
        %6100 = vmatpush1.bf16.msra.mxu0 %v5319
        %6101 = vmatprep.subr.bf16.mxu0 %v5317
        %6102 = vmatpush1.bf16.msra.mxu0 %v5316
        %6103 = vmatprep.subr.bf16.mxu0 %v5362
        %6104 = vmatpush2.bf16.msra.mxu0 %v5361
        %6105 = vmatprep.subr.bf16.mxu0 %v5359
        %6106 = vmatpush2.bf16.msra.mxu0 %v5358
        %6107 = vmatprep.subr.bf16.mxu0 %v5356
        %6108 = vmatpush2.bf16.msra.mxu0 %v5355
        %6109 = vmatprep.subr.bf16.mxu0 %v5353
        %6110 = vmatpush2.bf16.msra.mxu0 %v5352
        %6111 = vmatprep.subr.bf16.mxu0 %v5350
        %6112 = vmatpush2.bf16.msra.mxu0 %v5349
        %6113 = vmatprep.subr.bf16.mxu0 %v5347
        %6114 = vmatpush2.bf16.msra.mxu0 %v5346
        %6115 = vmatprep.subr.bf16.mxu0 %v5344
        %6116 = vmatpush2.bf16.msra.mxu0 %v5343
        %6117 = vmatprep.subr.bf16.mxu0 %v5341
        %6118 = vmatpush2.bf16.msra.mxu0 %v5340
        %6119 = vmatprep.mubr.bf16.mxu0 %v3722
        %6120 = vmatmul.mubr.bf16.gmra.mxu0 %v3721
        %v6121 = vpop.f32.mrf.mxu0
        %v6122 = vadd.f32 %v6009, %v6121
        %v6123 = vpop.f32.mrf.mxu0
        %v6124 = vadd.f32 %v6011, %v6123
        %v6125 = vpop.f32.mrf.mxu0
        %v6126 = vadd.f32 %v6013, %v6125
        %v6127 = vpop.f32.mrf.mxu0
        %v6128 = vadd.f32 %v6015, %v6127
        %6129 = vmatprep.mubr.bf16.mxu0 %v3734
        %6130 = vmatmul.mubr.bf16.gmra.mxu0 %v3733
        %v6131 = vpop.f32.mrf.mxu0
        %v6132 = vadd.f32 %v6019, %v6131
        %v6133 = vpop.f32.mrf.mxu0
        %v6134 = vadd.f32 %v6021, %v6133
        %v6135 = vpop.f32.mrf.mxu0
        %v6136 = vadd.f32 %v6023, %v6135
        %v6137 = vpop.f32.mrf.mxu0
        %v6138 = vadd.f32 %v6025, %v6137
        %6139 = vmatprep.mubr.bf16.mxu0 %v3746
        %6140 = vmatmul.mubr.bf16.gmra.mxu0 %v3745
        %v6141 = vpop.f32.mrf.mxu0
        %v6142 = vadd.f32 %v6029, %v6141
        %v6143 = vpop.f32.mrf.mxu0
        %v6144 = vadd.f32 %v6031, %v6143
        %v6145 = vpop.f32.mrf.mxu0
        %v6146 = vadd.f32 %v6033, %v6145
        %v6147 = vpop.f32.mrf.mxu0
        %v6148 = vadd.f32 %v6035, %v6147
        %6149 = vmatprep.mubr.bf16.mxu0 %v3758
        %6150 = vmatmul.mubr.bf16.gmra.mxu0 %v3757
        %v6151 = vpop.f32.mrf.mxu0
        %v6152 = vadd.f32 %v6039, %v6151
        %v6153 = vpop.f32.mrf.mxu0
        %v6154 = vadd.f32 %v6041, %v6153
        %v6155 = vpop.f32.mrf.mxu0
        %v6156 = vadd.f32 %v6043, %v6155
        %v6157 = vpop.f32.mrf.mxu0
        %v6158 = vadd.f32 %v6045, %v6157
        %6159 = vmatprep.mubr.bf16.mxu0 %v3770
        %6160 = vmatmul.mubr.bf16.gmra.mxu0 %v3769
        %v6161 = vpop.f32.mrf.mxu0
        %v6162 = vadd.f32 %v6049, %v6161
        %v6163 = vpop.f32.mrf.mxu0
        %v6164 = vadd.f32 %v6051, %v6163
        %v6165 = vpop.f32.mrf.mxu0
        %v6166 = vadd.f32 %v6053, %v6165
        %v6167 = vpop.f32.mrf.mxu0
        %v6168 = vadd.f32 %v6055, %v6167
        %6169 = vmatprep.mubr.bf16.mxu0 %v3782
        %6170 = vmatmul.mubr.bf16.gmra.mxu0 %v3781
        %v6171 = vpop.f32.mrf.mxu0
        %v6172 = vadd.f32 %v6059, %v6171
        %v6173 = vpop.f32.mrf.mxu0
        %v6174 = vadd.f32 %v6061, %v6173
        %v6175 = vpop.f32.mrf.mxu0
        %v6176 = vadd.f32 %v6063, %v6175
        %v6177 = vpop.f32.mrf.mxu0
        %v6178 = vadd.f32 %v6065, %v6177
        %6179 = vmatprep.mubr.bf16.mxu0 %v3794
        %6180 = vmatmul.mubr.bf16.gmra.mxu0 %v3793
        %v6181 = vpop.f32.mrf.mxu0
        %v6182 = vadd.f32 %v6069, %v6181
        %v6183 = vpop.f32.mrf.mxu0
        %v6184 = vadd.f32 %v6071, %v6183
        %v6185 = vpop.f32.mrf.mxu0
        %v6186 = vadd.f32 %v6073, %v6185
        %v6187 = vpop.f32.mrf.mxu0
        %v6188 = vadd.f32 %v6075, %v6187
        %6189 = vmatprep.mubr.bf16.mxu0 %v3806
        %6190 = vmatmul.mubr.bf16.gmra.mxu0 %v3805
        %v6191 = vpop.f32.mrf.mxu0
        %v6192 = vadd.f32 %v6079, %v6191
        %v6193 = vpop.f32.mrf.mxu0
        %v6194 = vadd.f32 %v6081, %v6193
        %v6195 = vpop.f32.mrf.mxu0
        %v6196 = vadd.f32 %v6083, %v6195
        %v6197 = vpop.f32.mrf.mxu0
        %v6198 = vadd.f32 %v6085, %v6197
        %6199 = vdwg.mxu0
        %6200 = vmatprep.subr.bf16.mxu0 %v5386
        %6201 = vmatpush1.bf16.msra.mxu0 %v5385
        %6202 = vmatprep.subr.bf16.mxu0 %v5383
        %6203 = vmatpush1.bf16.msra.mxu0 %v5382
        %6204 = vmatprep.subr.bf16.mxu0 %v5380
        %6205 = vmatpush1.bf16.msra.mxu0 %v5379
        %6206 = vmatprep.subr.bf16.mxu0 %v5377
        %6207 = vmatpush1.bf16.msra.mxu0 %v5376
        %6208 = vmatprep.subr.bf16.mxu0 %v5374
        %6209 = vmatpush1.bf16.msra.mxu0 %v5373
        %6210 = vmatprep.subr.bf16.mxu0 %v5371
        %6211 = vmatpush1.bf16.msra.mxu0 %v5370
        %6212 = vmatprep.subr.bf16.mxu0 %v5368
        %6213 = vmatpush1.bf16.msra.mxu0 %v5367
        %6214 = vmatprep.subr.bf16.mxu0 %v5365
        %6215 = vmatpush1.bf16.msra.mxu0 %v5364
        %6216 = vmatprep.subr.bf16.mxu0 %v5410
        %6217 = vmatpush2.bf16.msra.mxu0 %v5409
        %6218 = vmatprep.subr.bf16.mxu0 %v5407
        %6219 = vmatpush2.bf16.msra.mxu0 %v5406
        %6220 = vmatprep.subr.bf16.mxu0 %v5404
        %6221 = vmatpush2.bf16.msra.mxu0 %v5403
        %6222 = vmatprep.subr.bf16.mxu0 %v5401
        %6223 = vmatpush2.bf16.msra.mxu0 %v5400
        %6224 = vmatprep.subr.bf16.mxu0 %v5398
        %6225 = vmatpush2.bf16.msra.mxu0 %v5397
        %6226 = vmatprep.subr.bf16.mxu0 %v5395
        %6227 = vmatpush2.bf16.msra.mxu0 %v5394
        %6228 = vmatprep.subr.bf16.mxu0 %v5392
        %6229 = vmatpush2.bf16.msra.mxu0 %v5391
        %6230 = vmatprep.subr.bf16.mxu0 %v5389
        %6231 = vmatpush2.bf16.msra.mxu0 %v5388
        %6232 = vmatprep.mubr.bf16.mxu0 %v3724
        %6233 = vmatmul.mubr.bf16.gmra.mxu0 %v3723
        %v6234 = vpop.f32.mrf.mxu0
        %v6235 = vadd.f32 %v6122, %v6234
        %v6236 = vpop.f32.mrf.mxu0
        %v6237 = vadd.f32 %v6124, %v6236
        %v6238 = vpop.f32.mrf.mxu0
        %v6239 = vadd.f32 %v6126, %v6238
        %v6240 = vpop.f32.mrf.mxu0
        %v6241 = vadd.f32 %v6128, %v6240
        %6242 = vmatprep.mubr.bf16.mxu0 %v3736
        %6243 = vmatmul.mubr.bf16.gmra.mxu0 %v3735
        %v6244 = vpop.f32.mrf.mxu0
        %v6245 = vadd.f32 %v6132, %v6244
        %v6246 = vpop.f32.mrf.mxu0
        %v6247 = vadd.f32 %v6134, %v6246
        %v6248 = vpop.f32.mrf.mxu0
        %v6249 = vadd.f32 %v6136, %v6248
        %v6250 = vpop.f32.mrf.mxu0
        %v6251 = vadd.f32 %v6138, %v6250
        %6252 = vmatprep.mubr.bf16.mxu0 %v3748
        %6253 = vmatmul.mubr.bf16.gmra.mxu0 %v3747
        %v6254 = vpop.f32.mrf.mxu0
        %v6255 = vadd.f32 %v6142, %v6254
        %v6256 = vpop.f32.mrf.mxu0
        %v6257 = vadd.f32 %v6144, %v6256
        %v6258 = vpop.f32.mrf.mxu0
        %v6259 = vadd.f32 %v6146, %v6258
        %v6260 = vpop.f32.mrf.mxu0
        %v6261 = vadd.f32 %v6148, %v6260
        %6262 = vmatprep.mubr.bf16.mxu0 %v3760
        %6263 = vmatmul.mubr.bf16.gmra.mxu0 %v3759
        %v6264 = vpop.f32.mrf.mxu0
        %v6265 = vadd.f32 %v6152, %v6264
        %v6266 = vpop.f32.mrf.mxu0
        %v6267 = vadd.f32 %v6154, %v6266
        %v6268 = vpop.f32.mrf.mxu0
        %v6269 = vadd.f32 %v6156, %v6268
        %v6270 = vpop.f32.mrf.mxu0
        %v6271 = vadd.f32 %v6158, %v6270
        %6272 = vmatprep.mubr.bf16.mxu0 %v3772
        %6273 = vmatmul.mubr.bf16.gmra.mxu0 %v3771
        %v6274 = vpop.f32.mrf.mxu0
        %v6275 = vadd.f32 %v6162, %v6274
        %v6276 = vpop.f32.mrf.mxu0
        %v6277 = vadd.f32 %v6164, %v6276
        %v6278 = vpop.f32.mrf.mxu0
        %v6279 = vadd.f32 %v6166, %v6278
        %v6280 = vpop.f32.mrf.mxu0
        %v6281 = vadd.f32 %v6168, %v6280
        %6282 = vmatprep.mubr.bf16.mxu0 %v3784
        %6283 = vmatmul.mubr.bf16.gmra.mxu0 %v3783
        %v6284 = vpop.f32.mrf.mxu0
        %v6285 = vadd.f32 %v6172, %v6284
        %v6286 = vpop.f32.mrf.mxu0
        %v6287 = vadd.f32 %v6174, %v6286
        %v6288 = vpop.f32.mrf.mxu0
        %v6289 = vadd.f32 %v6176, %v6288
        %v6290 = vpop.f32.mrf.mxu0
        %v6291 = vadd.f32 %v6178, %v6290
        %6292 = vmatprep.mubr.bf16.mxu0 %v3796
        %6293 = vmatmul.mubr.bf16.gmra.mxu0 %v3795
        %v6294 = vpop.f32.mrf.mxu0
        %v6295 = vadd.f32 %v6182, %v6294
        %v6296 = vpop.f32.mrf.mxu0
        %v6297 = vadd.f32 %v6184, %v6296
        %v6298 = vpop.f32.mrf.mxu0
        %v6299 = vadd.f32 %v6186, %v6298
        %v6300 = vpop.f32.mrf.mxu0
        %v6301 = vadd.f32 %v6188, %v6300
        %6302 = vmatprep.mubr.bf16.mxu0 %v3808
        %6303 = vmatmul.mubr.bf16.gmra.mxu0 %v3807
        %v6304 = vpop.f32.mrf.mxu0
        %v6305 = vadd.f32 %v6192, %v6304
        %v6306 = vpop.f32.mrf.mxu0
        %v6307 = vadd.f32 %v6194, %v6306
        %v6308 = vpop.f32.mrf.mxu0
        %v6309 = vadd.f32 %v6196, %v6308
        %v6310 = vpop.f32.mrf.mxu0
        %v6311 = vadd.f32 %v6198, %v6310
        %6312 = vdwg.mxu0
        %6313 = vmatprep.subr.bf16.mxu0 %v5434
        %6314 = vmatpush1.bf16.msra.mxu0 %v5433
        %6315 = vmatprep.subr.bf16.mxu0 %v5431
        %6316 = vmatpush1.bf16.msra.mxu0 %v5430
        %6317 = vmatprep.subr.bf16.mxu0 %v5428
        %6318 = vmatpush1.bf16.msra.mxu0 %v5427
        %6319 = vmatprep.subr.bf16.mxu0 %v5425
        %6320 = vmatpush1.bf16.msra.mxu0 %v5424
        %6321 = vmatprep.subr.bf16.mxu0 %v5422
        %6322 = vmatpush1.bf16.msra.mxu0 %v5421
        %6323 = vmatprep.subr.bf16.mxu0 %v5419
        %6324 = vmatpush1.bf16.msra.mxu0 %v5418
        %6325 = vmatprep.subr.bf16.mxu0 %v5416
        %6326 = vmatpush1.bf16.msra.mxu0 %v5415
        %6327 = vmatprep.subr.bf16.mxu0 %v5413
        %6328 = vmatpush1.bf16.msra.mxu0 %v5412
        %6329 = vmatprep.subr.bf16.mxu0 %v5458
        %6330 = vmatpush2.bf16.msra.mxu0 %v5457
        %6331 = vmatprep.subr.bf16.mxu0 %v5455
        %6332 = vmatpush2.bf16.msra.mxu0 %v5454
        %6333 = vmatprep.subr.bf16.mxu0 %v5452
        %6334 = vmatpush2.bf16.msra.mxu0 %v5451
        %6335 = vmatprep.subr.bf16.mxu0 %v5449
        %6336 = vmatpush2.bf16.msra.mxu0 %v5448
        %6337 = vmatprep.subr.bf16.mxu0 %v5446
        %6338 = vmatpush2.bf16.msra.mxu0 %v5445
        %6339 = vmatprep.subr.bf16.mxu0 %v5443
        %6340 = vmatpush2.bf16.msra.mxu0 %v5442
        %6341 = vmatprep.subr.bf16.mxu0 %v5440
        %6342 = vmatpush2.bf16.msra.mxu0 %v5439
        %6343 = vmatprep.subr.bf16.mxu0 %v5437
        %6344 = vmatpush2.bf16.msra.mxu0 %v5436
        %6345 = vmatprep.mubr.bf16.mxu0 %v3726
        %6346 = vmatmul.mubr.bf16.gmra.mxu0 %v3725
        %v6347 = vpop.f32.mrf.mxu0
        %v6348 = vadd.f32 %v6235, %v6347
        %v6349 = vpop.f32.mrf.mxu0
        %v6350 = vadd.f32 %v6237, %v6349
        %v6351 = vpop.f32.mrf.mxu0
        %v6352 = vadd.f32 %v6239, %v6351
        %v6353 = vpop.f32.mrf.mxu0
        %v6354 = vadd.f32 %v6241, %v6353
        %6355 = vmatprep.mubr.bf16.mxu0 %v3738
        %6356 = vmatmul.mubr.bf16.gmra.mxu0 %v3737
        %v6357 = vpop.f32.mrf.mxu0
        %v6358 = vadd.f32 %v6245, %v6357
        %v6359 = vpop.f32.mrf.mxu0
        %v6360 = vadd.f32 %v6247, %v6359
        %v6361 = vpop.f32.mrf.mxu0
        %v6362 = vadd.f32 %v6249, %v6361
        %v6363 = vpop.f32.mrf.mxu0
        %v6364 = vadd.f32 %v6251, %v6363
        %6365 = vmatprep.mubr.bf16.mxu0 %v3750
        %6366 = vmatmul.mubr.bf16.gmra.mxu0 %v3749
        %v6367 = vpop.f32.mrf.mxu0
        %v6368 = vadd.f32 %v6255, %v6367
        %v6369 = vpop.f32.mrf.mxu0
        %v6370 = vadd.f32 %v6257, %v6369
        %v6371 = vpop.f32.mrf.mxu0
        %v6372 = vadd.f32 %v6259, %v6371
        %v6373 = vpop.f32.mrf.mxu0
        %v6374 = vadd.f32 %v6261, %v6373
        %6375 = vmatprep.mubr.bf16.mxu0 %v3762
        %6376 = vmatmul.mubr.bf16.gmra.mxu0 %v3761
        %v6377 = vpop.f32.mrf.mxu0
        %v6378 = vadd.f32 %v6265, %v6377
        %v6379 = vpop.f32.mrf.mxu0
        %v6380 = vadd.f32 %v6267, %v6379
        %v6381 = vpop.f32.mrf.mxu0
        %v6382 = vadd.f32 %v6269, %v6381
        %v6383 = vpop.f32.mrf.mxu0
        %v6384 = vadd.f32 %v6271, %v6383
        %6385 = vmatprep.mubr.bf16.mxu0 %v3774
        %6386 = vmatmul.mubr.bf16.gmra.mxu0 %v3773
        %v6387 = vpop.f32.mrf.mxu0
        %v6388 = vadd.f32 %v6275, %v6387
        %v6389 = vpop.f32.mrf.mxu0
        %v6390 = vadd.f32 %v6277, %v6389
        %v6391 = vpop.f32.mrf.mxu0
        %v6392 = vadd.f32 %v6279, %v6391
        %v6393 = vpop.f32.mrf.mxu0
        %v6394 = vadd.f32 %v6281, %v6393
        %6395 = vmatprep.mubr.bf16.mxu0 %v3786
        %6396 = vmatmul.mubr.bf16.gmra.mxu0 %v3785
        %v6397 = vpop.f32.mrf.mxu0
        %v6398 = vadd.f32 %v6285, %v6397
        %v6399 = vpop.f32.mrf.mxu0
        %v6400 = vadd.f32 %v6287, %v6399
        %v6401 = vpop.f32.mrf.mxu0
        %v6402 = vadd.f32 %v6289, %v6401
        %v6403 = vpop.f32.mrf.mxu0
        %v6404 = vadd.f32 %v6291, %v6403
        %6405 = vmatprep.mubr.bf16.mxu0 %v3798
        %6406 = vmatmul.mubr.bf16.gmra.mxu0 %v3797
        %v6407 = vpop.f32.mrf.mxu0
        %v6408 = vadd.f32 %v6295, %v6407
        %v6409 = vpop.f32.mrf.mxu0
        %v6410 = vadd.f32 %v6297, %v6409
        %v6411 = vpop.f32.mrf.mxu0
        %v6412 = vadd.f32 %v6299, %v6411
        %v6413 = vpop.f32.mrf.mxu0
        %v6414 = vadd.f32 %v6301, %v6413
        %6415 = vmatprep.mubr.bf16.mxu0 %v3810
        %6416 = vmatmul.mubr.bf16.gmra.mxu0 %v3809
        %v6417 = vpop.f32.mrf.mxu0
        %v6418 = vadd.f32 %v6305, %v6417
        %v6419 = vpop.f32.mrf.mxu0
        %v6420 = vadd.f32 %v6307, %v6419
        %v6421 = vpop.f32.mrf.mxu0
        %v6422 = vadd.f32 %v6309, %v6421
        %v6423 = vpop.f32.mrf.mxu0
        %v6424 = vadd.f32 %v6311, %v6423
        %6425 = vdwg.mxu0
        %6426 = vmatprep.subr.bf16.mxu0 0
        %6427 = vmatpush1.bf16.msra.mxu0 %v5195
        %6428 = vmatprep.subr.bf16.mxu0 0
        %6429 = vmatpush1.bf16.msra.mxu0 %v5192
        %6430 = vmatprep.subr.bf16.mxu0 0
        %6431 = vmatpush1.bf16.msra.mxu0 %v5189
        %6432 = vmatprep.subr.bf16.mxu0 0
        %6433 = vmatpush1.bf16.msra.mxu0 %v5186
        %6434 = vmatprep.subr.bf16.mxu0 0
        %6435 = vmatpush1.bf16.msra.mxu0 %v5183
        %6436 = vmatprep.subr.bf16.mxu0 0
        %6437 = vmatpush1.bf16.msra.mxu0 %v5180
        %6438 = vmatprep.subr.bf16.mxu0 0
        %6439 = vmatpush1.bf16.msra.mxu0 %v5177
        %6440 = vmatprep.subr.bf16.mxu0 0
        %6441 = vmatpush1.bf16.msra.mxu0 %v5174
        %6442 = vmatprep.subr.bf16.mxu0 0
        %6443 = vmatpush2.bf16.msra.mxu0 %v5219
        %6444 = vmatprep.subr.bf16.mxu0 0
        %6445 = vmatpush2.bf16.msra.mxu0 %v5216
        %6446 = vmatprep.subr.bf16.mxu0 0
        %6447 = vmatpush2.bf16.msra.mxu0 %v5213
        %6448 = vmatprep.subr.bf16.mxu0 0
        %6449 = vmatpush2.bf16.msra.mxu0 %v5210
        %6450 = vmatprep.subr.bf16.mxu0 0
        %6451 = vmatpush2.bf16.msra.mxu0 %v5207
        %6452 = vmatprep.subr.bf16.mxu0 0
        %6453 = vmatpush2.bf16.msra.mxu0 %v5204
        %6454 = vmatprep.subr.bf16.mxu0 0
        %6455 = vmatpush2.bf16.msra.mxu0 %v5201
        %6456 = vmatprep.subr.bf16.mxu0 0
        %6457 = vmatpush2.bf16.msra.mxu0 %v5198
        %6458 = vmatprep.mubr.bf16.mxu0 %v3716
        %6459 = vmatmul.mubr.bf16.gmra.mxu0 %v3715
        %v6460 = vpop.f32.mrf.mxu0
        %v6461 = vadd.f32 %v4208, %v6460
        %v6462 = vpop.f32.mrf.mxu0
        %v6463 = vpop.f32.mrf.mxu0
        %v6464 = vadd.f32 %v4208, %v6463
        %v6465 = vpop.f32.mrf.mxu0
        %6466 = vmatprep.mubr.bf16.mxu0 %v3728
        %6467 = vmatmul.mubr.bf16.gmra.mxu0 %v3727
        %v6468 = vpop.f32.mrf.mxu0
        %v6469 = vadd.f32 %v4208, %v6468
        %v6470 = vpop.f32.mrf.mxu0
        %v6471 = vpop.f32.mrf.mxu0
        %v6472 = vadd.f32 %v4208, %v6471
        %v6473 = vpop.f32.mrf.mxu0
        %6474 = vmatprep.mubr.bf16.mxu0 %v3740
        %6475 = vmatmul.mubr.bf16.gmra.mxu0 %v3739
        %v6476 = vpop.f32.mrf.mxu0
        %v6477 = vadd.f32 %v4208, %v6476
        %v6478 = vpop.f32.mrf.mxu0
        %v6479 = vpop.f32.mrf.mxu0
        %v6480 = vadd.f32 %v4208, %v6479
        %v6481 = vpop.f32.mrf.mxu0
        %6482 = vmatprep.mubr.bf16.mxu0 %v3752
        %6483 = vmatmul.mubr.bf16.gmra.mxu0 %v3751
        %v6484 = vpop.f32.mrf.mxu0
        %v6485 = vadd.f32 %v4208, %v6484
        %v6486 = vpop.f32.mrf.mxu0
        %v6487 = vpop.f32.mrf.mxu0
        %v6488 = vadd.f32 %v4208, %v6487
        %v6489 = vpop.f32.mrf.mxu0
        %6490 = vmatprep.mubr.bf16.mxu0 %v3764
        %6491 = vmatmul.mubr.bf16.gmra.mxu0 %v3763
        %v6492 = vpop.f32.mrf.mxu0
        %v6493 = vadd.f32 %v4208, %v6492
        %v6494 = vpop.f32.mrf.mxu0
        %v6495 = vpop.f32.mrf.mxu0
        %v6496 = vadd.f32 %v4208, %v6495
        %v6497 = vpop.f32.mrf.mxu0
        %6498 = vmatprep.mubr.bf16.mxu0 %v3776
        %6499 = vmatmul.mubr.bf16.gmra.mxu0 %v3775
        %v6500 = vpop.f32.mrf.mxu0
        %v6501 = vadd.f32 %v4208, %v6500
        %v6502 = vpop.f32.mrf.mxu0
        %v6503 = vpop.f32.mrf.mxu0
        %v6504 = vadd.f32 %v4208, %v6503
        %v6505 = vpop.f32.mrf.mxu0
        %6506 = vmatprep.mubr.bf16.mxu0 %v3788
        %6507 = vmatmul.mubr.bf16.gmra.mxu0 %v3787
        %v6508 = vpop.f32.mrf.mxu0
        %v6509 = vadd.f32 %v4208, %v6508
        %v6510 = vpop.f32.mrf.mxu0
        %v6511 = vpop.f32.mrf.mxu0
        %v6512 = vadd.f32 %v4208, %v6511
        %v6513 = vpop.f32.mrf.mxu0
        %6514 = vmatprep.mubr.bf16.mxu0 %v3800
        %6515 = vmatmul.mubr.bf16.gmra.mxu0 %v3799
        %v6516 = vpop.f32.mrf.mxu0
        %v6517 = vadd.f32 %v4208, %v6516
        %v6518 = vpop.f32.mrf.mxu0
        %v6519 = vpop.f32.mrf.mxu0
        %v6520 = vadd.f32 %v4208, %v6519
        %v6521 = vpop.f32.mrf.mxu0
        %6522 = vdwg.mxu0
        %6523 = vmatprep.subr.bf16.mxu0 0
        %6524 = vmatpush1.bf16.msra.mxu0 %v5243
        %6525 = vmatprep.subr.bf16.mxu0 0
        %6526 = vmatpush1.bf16.msra.mxu0 %v5240
        %6527 = vmatprep.subr.bf16.mxu0 0
        %6528 = vmatpush1.bf16.msra.mxu0 %v5237
        %6529 = vmatprep.subr.bf16.mxu0 0
        %6530 = vmatpush1.bf16.msra.mxu0 %v5234
        %6531 = vmatprep.subr.bf16.mxu0 0
        %6532 = vmatpush1.bf16.msra.mxu0 %v5231
        %6533 = vmatprep.subr.bf16.mxu0 0
        %6534 = vmatpush1.bf16.msra.mxu0 %v5228
        %6535 = vmatprep.subr.bf16.mxu0 0
        %6536 = vmatpush1.bf16.msra.mxu0 %v5225
        %6537 = vmatprep.subr.bf16.mxu0 0
        %6538 = vmatpush1.bf16.msra.mxu0 %v5222
        %6539 = vmatprep.subr.bf16.mxu0 0
        %6540 = vmatpush2.bf16.msra.mxu0 %v5267
        %6541 = vmatprep.subr.bf16.mxu0 0
        %6542 = vmatpush2.bf16.msra.mxu0 %v5264
        %6543 = vmatprep.subr.bf16.mxu0 0
        %6544 = vmatpush2.bf16.msra.mxu0 %v5261
        %6545 = vmatprep.subr.bf16.mxu0 0
        %6546 = vmatpush2.bf16.msra.mxu0 %v5258
        %6547 = vmatprep.subr.bf16.mxu0 0
        %6548 = vmatpush2.bf16.msra.mxu0 %v5255
        %6549 = vmatprep.subr.bf16.mxu0 0
        %6550 = vmatpush2.bf16.msra.mxu0 %v5252
        %6551 = vmatprep.subr.bf16.mxu0 0
        %6552 = vmatpush2.bf16.msra.mxu0 %v5249
        %6553 = vmatprep.subr.bf16.mxu0 0
        %6554 = vmatpush2.bf16.msra.mxu0 %v5246
        %6555 = vmatprep.mubr.bf16.mxu0 %v3718
        %6556 = vmatmul.mubr.bf16.gmra.mxu0 %v3717
        %v6557 = vpop.f32.mrf.mxu0
        %v6558 = vadd.f32 %v6461, %v6557
        %v6559 = vpop.f32.mrf.mxu0
        %v6560 = vpop.f32.mrf.mxu0
        %v6561 = vadd.f32 %v6464, %v6560
        %v6562 = vpop.f32.mrf.mxu0
        %6563 = vmatprep.mubr.bf16.mxu0 %v3730
        %6564 = vmatmul.mubr.bf16.gmra.mxu0 %v3729
        %v6565 = vpop.f32.mrf.mxu0
        %v6566 = vadd.f32 %v6469, %v6565
        %v6567 = vpop.f32.mrf.mxu0
        %v6568 = vpop.f32.mrf.mxu0
        %v6569 = vadd.f32 %v6472, %v6568
        %v6570 = vpop.f32.mrf.mxu0
        %6571 = vmatprep.mubr.bf16.mxu0 %v3742
        %6572 = vmatmul.mubr.bf16.gmra.mxu0 %v3741
        %v6573 = vpop.f32.mrf.mxu0
        %v6574 = vadd.f32 %v6477, %v6573
        %v6575 = vpop.f32.mrf.mxu0
        %v6576 = vpop.f32.mrf.mxu0
        %v6577 = vadd.f32 %v6480, %v6576
        %v6578 = vpop.f32.mrf.mxu0
        %6579 = vmatprep.mubr.bf16.mxu0 %v3754
        %6580 = vmatmul.mubr.bf16.gmra.mxu0 %v3753
        %v6581 = vpop.f32.mrf.mxu0
        %v6582 = vadd.f32 %v6485, %v6581
        %v6583 = vpop.f32.mrf.mxu0
        %v6584 = vpop.f32.mrf.mxu0
        %v6585 = vadd.f32 %v6488, %v6584
        %v6586 = vpop.f32.mrf.mxu0
        %6587 = vmatprep.mubr.bf16.mxu0 %v3766
        %6588 = vmatmul.mubr.bf16.gmra.mxu0 %v3765
        %v6589 = vpop.f32.mrf.mxu0
        %v6590 = vadd.f32 %v6493, %v6589
        %v6591 = vpop.f32.mrf.mxu0
        %v6592 = vpop.f32.mrf.mxu0
        %v6593 = vadd.f32 %v6496, %v6592
        %v6594 = vpop.f32.mrf.mxu0
        %6595 = vmatprep.mubr.bf16.mxu0 %v3778
        %6596 = vmatmul.mubr.bf16.gmra.mxu0 %v3777
        %v6597 = vpop.f32.mrf.mxu0
        %v6598 = vadd.f32 %v6501, %v6597
        %v6599 = vpop.f32.mrf.mxu0
        %v6600 = vpop.f32.mrf.mxu0
        %v6601 = vadd.f32 %v6504, %v6600
        %v6602 = vpop.f32.mrf.mxu0
        %6603 = vmatprep.mubr.bf16.mxu0 %v3790
        %6604 = vmatmul.mubr.bf16.gmra.mxu0 %v3789
        %v6605 = vpop.f32.mrf.mxu0
        %v6606 = vadd.f32 %v6509, %v6605
        %v6607 = vpop.f32.mrf.mxu0
        %v6608 = vpop.f32.mrf.mxu0
        %v6609 = vadd.f32 %v6512, %v6608
        %v6610 = vpop.f32.mrf.mxu0
        %6611 = vmatprep.mubr.bf16.mxu0 %v3802
        %6612 = vmatmul.mubr.bf16.gmra.mxu0 %v3801
        %v6613 = vpop.f32.mrf.mxu0
        %v6614 = vadd.f32 %v6517, %v6613
        %v6615 = vpop.f32.mrf.mxu0
        %v6616 = vpop.f32.mrf.mxu0
        %v6617 = vadd.f32 %v6520, %v6616
        %v6618 = vpop.f32.mrf.mxu0
        %6619 = vdwg.mxu0
        %6620 = vmatprep.subr.bf16.mxu0 0
        %6621 = vmatpush1.bf16.msra.mxu0 %v5291
        %6622 = vmatprep.subr.bf16.mxu0 0
        %6623 = vmatpush1.bf16.msra.mxu0 %v5288
        %6624 = vmatprep.subr.bf16.mxu0 0
        %6625 = vmatpush1.bf16.msra.mxu0 %v5285
        %6626 = vmatprep.subr.bf16.mxu0 0
        %6627 = vmatpush1.bf16.msra.mxu0 %v5282
        %6628 = vmatprep.subr.bf16.mxu0 0
        %6629 = vmatpush1.bf16.msra.mxu0 %v5279
        %6630 = vmatprep.subr.bf16.mxu0 0
        %6631 = vmatpush1.bf16.msra.mxu0 %v5276
        %6632 = vmatprep.subr.bf16.mxu0 0
        %6633 = vmatpush1.bf16.msra.mxu0 %v5273
        %6634 = vmatprep.subr.bf16.mxu0 0
        %6635 = vmatpush1.bf16.msra.mxu0 %v5270
        %6636 = vmatprep.subr.bf16.mxu0 0
        %6637 = vmatpush2.bf16.msra.mxu0 %v5315
        %6638 = vmatprep.subr.bf16.mxu0 0
        %6639 = vmatpush2.bf16.msra.mxu0 %v5312
        %6640 = vmatprep.subr.bf16.mxu0 0
        %6641 = vmatpush2.bf16.msra.mxu0 %v5309
        %6642 = vmatprep.subr.bf16.mxu0 0
        %6643 = vmatpush2.bf16.msra.mxu0 %v5306
        %6644 = vmatprep.subr.bf16.mxu0 0
        %6645 = vmatpush2.bf16.msra.mxu0 %v5303
        %6646 = vmatprep.subr.bf16.mxu0 0
        %6647 = vmatpush2.bf16.msra.mxu0 %v5300
        %6648 = vmatprep.subr.bf16.mxu0 0
        %6649 = vmatpush2.bf16.msra.mxu0 %v5297
        %6650 = vmatprep.subr.bf16.mxu0 0
        %6651 = vmatpush2.bf16.msra.mxu0 %v5294
        %6652 = vmatprep.mubr.bf16.mxu0 %v3720
        %6653 = vmatmul.mubr.bf16.gmra.mxu0 %v3719
        %v6654 = vpop.f32.mrf.mxu0
        %v6655 = vadd.f32 %v6558, %v6654
        %v6656 = vpop.f32.mrf.mxu0
        %v6657 = vpop.f32.mrf.mxu0
        %v6658 = vadd.f32 %v6561, %v6657
        %v6659 = vpop.f32.mrf.mxu0
        %6660 = vmatprep.mubr.bf16.mxu0 %v3732
        %6661 = vmatmul.mubr.bf16.gmra.mxu0 %v3731
        %v6662 = vpop.f32.mrf.mxu0
        %v6663 = vadd.f32 %v6566, %v6662
        %v6664 = vpop.f32.mrf.mxu0
        %v6665 = vpop.f32.mrf.mxu0
        %v6666 = vadd.f32 %v6569, %v6665
        %v6667 = vpop.f32.mrf.mxu0
        %6668 = vmatprep.mubr.bf16.mxu0 %v3744
        %6669 = vmatmul.mubr.bf16.gmra.mxu0 %v3743
        %v6670 = vpop.f32.mrf.mxu0
        %v6671 = vadd.f32 %v6574, %v6670
        %v6672 = vpop.f32.mrf.mxu0
        %v6673 = vpop.f32.mrf.mxu0
        %v6674 = vadd.f32 %v6577, %v6673
        %v6675 = vpop.f32.mrf.mxu0
        %6676 = vmatprep.mubr.bf16.mxu0 %v3756
        %6677 = vmatmul.mubr.bf16.gmra.mxu0 %v3755
        %v6678 = vpop.f32.mrf.mxu0
        %v6679 = vadd.f32 %v6582, %v6678
        %v6680 = vpop.f32.mrf.mxu0
        %v6681 = vpop.f32.mrf.mxu0
        %v6682 = vadd.f32 %v6585, %v6681
        %v6683 = vpop.f32.mrf.mxu0
        %6684 = vmatprep.mubr.bf16.mxu0 %v3768
        %6685 = vmatmul.mubr.bf16.gmra.mxu0 %v3767
        %v6686 = vpop.f32.mrf.mxu0
        %v6687 = vadd.f32 %v6590, %v6686
        %v6688 = vpop.f32.mrf.mxu0
        %v6689 = vpop.f32.mrf.mxu0
        %v6690 = vadd.f32 %v6593, %v6689
        %v6691 = vpop.f32.mrf.mxu0
        %6692 = vmatprep.mubr.bf16.mxu0 %v3780
        %6693 = vmatmul.mubr.bf16.gmra.mxu0 %v3779
        %v6694 = vpop.f32.mrf.mxu0
        %v6695 = vadd.f32 %v6598, %v6694
        %v6696 = vpop.f32.mrf.mxu0
        %v6697 = vpop.f32.mrf.mxu0
        %v6698 = vadd.f32 %v6601, %v6697
        %v6699 = vpop.f32.mrf.mxu0
        %6700 = vmatprep.mubr.bf16.mxu0 %v3792
        %6701 = vmatmul.mubr.bf16.gmra.mxu0 %v3791
        %v6702 = vpop.f32.mrf.mxu0
        %v6703 = vadd.f32 %v6606, %v6702
        %v6704 = vpop.f32.mrf.mxu0
        %v6705 = vpop.f32.mrf.mxu0
        %v6706 = vadd.f32 %v6609, %v6705
        %v6707 = vpop.f32.mrf.mxu0
        %6708 = vmatprep.mubr.bf16.mxu0 %v3804
        %6709 = vmatmul.mubr.bf16.gmra.mxu0 %v3803
        %v6710 = vpop.f32.mrf.mxu0
        %v6711 = vadd.f32 %v6614, %v6710
        %v6712 = vpop.f32.mrf.mxu0
        %v6713 = vpop.f32.mrf.mxu0
        %v6714 = vadd.f32 %v6617, %v6713
        %v6715 = vpop.f32.mrf.mxu0
        %6716 = vdwg.mxu0
        %6717 = vmatprep.subr.bf16.mxu0 0
        %6718 = vmatpush1.bf16.msra.mxu0 %v5339
        %6719 = vmatprep.subr.bf16.mxu0 0
        %6720 = vmatpush1.bf16.msra.mxu0 %v5336
        %6721 = vmatprep.subr.bf16.mxu0 0
        %6722 = vmatpush1.bf16.msra.mxu0 %v5333
        %6723 = vmatprep.subr.bf16.mxu0 0
        %6724 = vmatpush1.bf16.msra.mxu0 %v5330
        %6725 = vmatprep.subr.bf16.mxu0 0
        %6726 = vmatpush1.bf16.msra.mxu0 %v5327
        %6727 = vmatprep.subr.bf16.mxu0 0
        %6728 = vmatpush1.bf16.msra.mxu0 %v5324
        %6729 = vmatprep.subr.bf16.mxu0 0
        %6730 = vmatpush1.bf16.msra.mxu0 %v5321
        %6731 = vmatprep.subr.bf16.mxu0 0
        %6732 = vmatpush1.bf16.msra.mxu0 %v5318
        %6733 = vmatprep.subr.bf16.mxu0 0
        %6734 = vmatpush2.bf16.msra.mxu0 %v5363
        %6735 = vmatprep.subr.bf16.mxu0 0
        %6736 = vmatpush2.bf16.msra.mxu0 %v5360
        %6737 = vmatprep.subr.bf16.mxu0 0
        %6738 = vmatpush2.bf16.msra.mxu0 %v5357
        %6739 = vmatprep.subr.bf16.mxu0 0
        %6740 = vmatpush2.bf16.msra.mxu0 %v5354
        %6741 = vmatprep.subr.bf16.mxu0 0
        %6742 = vmatpush2.bf16.msra.mxu0 %v5351
        %6743 = vmatprep.subr.bf16.mxu0 0
        %6744 = vmatpush2.bf16.msra.mxu0 %v5348
        %6745 = vmatprep.subr.bf16.mxu0 0
        %6746 = vmatpush2.bf16.msra.mxu0 %v5345
        %6747 = vmatprep.subr.bf16.mxu0 0
        %6748 = vmatpush2.bf16.msra.mxu0 %v5342
        %6749 = vmatprep.mubr.bf16.mxu0 %v3722
        %6750 = vmatmul.mubr.bf16.gmra.mxu0 %v3721
        %v6751 = vpop.f32.mrf.mxu0
        %v6752 = vadd.f32 %v6655, %v6751
        %v6753 = vpop.f32.mrf.mxu0
        %v6754 = vpop.f32.mrf.mxu0
        %v6755 = vadd.f32 %v6658, %v6754
        %v6756 = vpop.f32.mrf.mxu0
        %6757 = vmatprep.mubr.bf16.mxu0 %v3734
        %6758 = vmatmul.mubr.bf16.gmra.mxu0 %v3733
        %v6759 = vpop.f32.mrf.mxu0
        %v6760 = vadd.f32 %v6663, %v6759
        %v6761 = vpop.f32.mrf.mxu0
        %v6762 = vpop.f32.mrf.mxu0
        %v6763 = vadd.f32 %v6666, %v6762
        %v6764 = vpop.f32.mrf.mxu0
        %6765 = vmatprep.mubr.bf16.mxu0 %v3746
        %6766 = vmatmul.mubr.bf16.gmra.mxu0 %v3745
        %v6767 = vpop.f32.mrf.mxu0
        %v6768 = vadd.f32 %v6671, %v6767
        %v6769 = vpop.f32.mrf.mxu0
        %v6770 = vpop.f32.mrf.mxu0
        %v6771 = vadd.f32 %v6674, %v6770
        %v6772 = vpop.f32.mrf.mxu0
        %6773 = vmatprep.mubr.bf16.mxu0 %v3758
        %6774 = vmatmul.mubr.bf16.gmra.mxu0 %v3757
        %v6775 = vpop.f32.mrf.mxu0
        %v6776 = vadd.f32 %v6679, %v6775
        %v6777 = vpop.f32.mrf.mxu0
        %v6778 = vpop.f32.mrf.mxu0
        %v6779 = vadd.f32 %v6682, %v6778
        %v6780 = vpop.f32.mrf.mxu0
        %6781 = vmatprep.mubr.bf16.mxu0 %v3770
        %6782 = vmatmul.mubr.bf16.gmra.mxu0 %v3769
        %v6783 = vpop.f32.mrf.mxu0
        %v6784 = vadd.f32 %v6687, %v6783
        %v6785 = vpop.f32.mrf.mxu0
        %v6786 = vpop.f32.mrf.mxu0
        %v6787 = vadd.f32 %v6690, %v6786
        %v6788 = vpop.f32.mrf.mxu0
        %6789 = vmatprep.mubr.bf16.mxu0 %v3782
        %6790 = vmatmul.mubr.bf16.gmra.mxu0 %v3781
        %v6791 = vpop.f32.mrf.mxu0
        %v6792 = vadd.f32 %v6695, %v6791
        %v6793 = vpop.f32.mrf.mxu0
        %v6794 = vpop.f32.mrf.mxu0
        %v6795 = vadd.f32 %v6698, %v6794
        %v6796 = vpop.f32.mrf.mxu0
        %6797 = vmatprep.mubr.bf16.mxu0 %v3794
        %6798 = vmatmul.mubr.bf16.gmra.mxu0 %v3793
        %v6799 = vpop.f32.mrf.mxu0
        %v6800 = vadd.f32 %v6703, %v6799
        %v6801 = vpop.f32.mrf.mxu0
        %v6802 = vpop.f32.mrf.mxu0
        %v6803 = vadd.f32 %v6706, %v6802
        %v6804 = vpop.f32.mrf.mxu0
        %6805 = vmatprep.mubr.bf16.mxu0 %v3806
        %6806 = vmatmul.mubr.bf16.gmra.mxu0 %v3805
        %v6807 = vpop.f32.mrf.mxu0
        %v6808 = vadd.f32 %v6711, %v6807
        %v6809 = vpop.f32.mrf.mxu0
        %v6810 = vpop.f32.mrf.mxu0
        %v6811 = vadd.f32 %v6714, %v6810
        %v6812 = vpop.f32.mrf.mxu0
        %6813 = vdwg.mxu0
        %6814 = vmatprep.subr.bf16.mxu0 0
        %6815 = vmatpush1.bf16.msra.mxu0 %v5387
        %6816 = vmatprep.subr.bf16.mxu0 0
        %6817 = vmatpush1.bf16.msra.mxu0 %v5384
        %6818 = vmatprep.subr.bf16.mxu0 0
        %6819 = vmatpush1.bf16.msra.mxu0 %v5381
        %6820 = vmatprep.subr.bf16.mxu0 0
        %6821 = vmatpush1.bf16.msra.mxu0 %v5378
        %6822 = vmatprep.subr.bf16.mxu0 0
        %6823 = vmatpush1.bf16.msra.mxu0 %v5375
        %6824 = vmatprep.subr.bf16.mxu0 0
        %6825 = vmatpush1.bf16.msra.mxu0 %v5372
        %6826 = vmatprep.subr.bf16.mxu0 0
        %6827 = vmatpush1.bf16.msra.mxu0 %v5369
        %6828 = vmatprep.subr.bf16.mxu0 0
        %6829 = vmatpush1.bf16.msra.mxu0 %v5366
        %6830 = vmatprep.subr.bf16.mxu0 0
        %6831 = vmatpush2.bf16.msra.mxu0 %v5411
        %6832 = vmatprep.subr.bf16.mxu0 0
        %6833 = vmatpush2.bf16.msra.mxu0 %v5408
        %6834 = vmatprep.subr.bf16.mxu0 0
        %6835 = vmatpush2.bf16.msra.mxu0 %v5405
        %6836 = vmatprep.subr.bf16.mxu0 0
        %6837 = vmatpush2.bf16.msra.mxu0 %v5402
        %6838 = vmatprep.subr.bf16.mxu0 0
        %6839 = vmatpush2.bf16.msra.mxu0 %v5399
        %6840 = vmatprep.subr.bf16.mxu0 0
        %6841 = vmatpush2.bf16.msra.mxu0 %v5396
        %6842 = vmatprep.subr.bf16.mxu0 0
        %6843 = vmatpush2.bf16.msra.mxu0 %v5393
        %6844 = vmatprep.subr.bf16.mxu0 0
        %6845 = vmatpush2.bf16.msra.mxu0 %v5390
        %6846 = vmatprep.mubr.bf16.mxu0 %v3724
        %6847 = vmatmul.mubr.bf16.gmra.mxu0 %v3723
        %v6848 = vpop.f32.mrf.mxu0
        %v6849 = vadd.f32 %v6752, %v6848
        %v6850 = vpop.f32.mrf.mxu0
        %v6851 = vpop.f32.mrf.mxu0
        %v6852 = vadd.f32 %v6755, %v6851
        %v6853 = vpop.f32.mrf.mxu0
        %6854 = vmatprep.mubr.bf16.mxu0 %v3736
        %6855 = vmatmul.mubr.bf16.gmra.mxu0 %v3735
        %v6856 = vpop.f32.mrf.mxu0
        %v6857 = vadd.f32 %v6760, %v6856
        %v6858 = vpop.f32.mrf.mxu0
        %v6859 = vpop.f32.mrf.mxu0
        %v6860 = vadd.f32 %v6763, %v6859
        %v6861 = vpop.f32.mrf.mxu0
        %6862 = vmatprep.mubr.bf16.mxu0 %v3748
        %6863 = vmatmul.mubr.bf16.gmra.mxu0 %v3747
        %v6864 = vpop.f32.mrf.mxu0
        %v6865 = vadd.f32 %v6768, %v6864
        %v6866 = vpop.f32.mrf.mxu0
        %v6867 = vpop.f32.mrf.mxu0
        %v6868 = vadd.f32 %v6771, %v6867
        %v6869 = vpop.f32.mrf.mxu0
        %6870 = vmatprep.mubr.bf16.mxu0 %v3760
        %6871 = vmatmul.mubr.bf16.gmra.mxu0 %v3759
        %v6872 = vpop.f32.mrf.mxu0
        %v6873 = vadd.f32 %v6776, %v6872
        %v6874 = vpop.f32.mrf.mxu0
        %v6875 = vpop.f32.mrf.mxu0
        %v6876 = vadd.f32 %v6779, %v6875
        %v6877 = vpop.f32.mrf.mxu0
        %6878 = vmatprep.mubr.bf16.mxu0 %v3772
        %6879 = vmatmul.mubr.bf16.gmra.mxu0 %v3771
        %v6880 = vpop.f32.mrf.mxu0
        %v6881 = vadd.f32 %v6784, %v6880
        %v6882 = vpop.f32.mrf.mxu0
        %v6883 = vpop.f32.mrf.mxu0
        %v6884 = vadd.f32 %v6787, %v6883
        %v6885 = vpop.f32.mrf.mxu0
        %6886 = vmatprep.mubr.bf16.mxu0 %v3784
        %6887 = vmatmul.mubr.bf16.gmra.mxu0 %v3783
        %v6888 = vpop.f32.mrf.mxu0
        %v6889 = vadd.f32 %v6792, %v6888
        %v6890 = vpop.f32.mrf.mxu0
        %v6891 = vpop.f32.mrf.mxu0
        %v6892 = vadd.f32 %v6795, %v6891
        %v6893 = vpop.f32.mrf.mxu0
        %6894 = vmatprep.mubr.bf16.mxu0 %v3796
        %6895 = vmatmul.mubr.bf16.gmra.mxu0 %v3795
        %v6896 = vpop.f32.mrf.mxu0
        %v6897 = vadd.f32 %v6800, %v6896
        %v6898 = vpop.f32.mrf.mxu0
        %v6899 = vpop.f32.mrf.mxu0
        %v6900 = vadd.f32 %v6803, %v6899
        %v6901 = vpop.f32.mrf.mxu0
        %6902 = vmatprep.mubr.bf16.mxu0 %v3808
        %6903 = vmatmul.mubr.bf16.gmra.mxu0 %v3807
        %v6904 = vpop.f32.mrf.mxu0
        %v6905 = vadd.f32 %v6808, %v6904
        %v6906 = vpop.f32.mrf.mxu0
        %v6907 = vpop.f32.mrf.mxu0
        %v6908 = vadd.f32 %v6811, %v6907
        %v6909 = vpop.f32.mrf.mxu0
        %6910 = vdwg.mxu0
        %6911 = vmatprep.subr.bf16.mxu0 0
        %6912 = vmatpush1.bf16.msra.mxu0 %v5435
        %6913 = vmatprep.subr.bf16.mxu0 0
        %6914 = vmatpush1.bf16.msra.mxu0 %v5432
        %6915 = vmatprep.subr.bf16.mxu0 0
        %6916 = vmatpush1.bf16.msra.mxu0 %v5429
        %6917 = vmatprep.subr.bf16.mxu0 0
        %6918 = vmatpush1.bf16.msra.mxu0 %v5426
        %6919 = vmatprep.subr.bf16.mxu0 0
        %6920 = vmatpush1.bf16.msra.mxu0 %v5423
        %6921 = vmatprep.subr.bf16.mxu0 0
        %6922 = vmatpush1.bf16.msra.mxu0 %v5420
        %6923 = vmatprep.subr.bf16.mxu0 0
        %6924 = vmatpush1.bf16.msra.mxu0 %v5417
        %6925 = vmatprep.subr.bf16.mxu0 0
        %6926 = vmatpush1.bf16.msra.mxu0 %v5414
        %6927 = vmatprep.subr.bf16.mxu0 0
        %6928 = vmatpush2.bf16.msra.mxu0 %v5459
        %6929 = vmatprep.subr.bf16.mxu0 0
        %6930 = vmatpush2.bf16.msra.mxu0 %v5456
        %6931 = vmatprep.subr.bf16.mxu0 0
        %6932 = vmatpush2.bf16.msra.mxu0 %v5453
        %6933 = vmatprep.subr.bf16.mxu0 0
        %6934 = vmatpush2.bf16.msra.mxu0 %v5450
        %6935 = vmatprep.subr.bf16.mxu0 0
        %6936 = vmatpush2.bf16.msra.mxu0 %v5447
        %6937 = vmatprep.subr.bf16.mxu0 0
        %6938 = vmatpush2.bf16.msra.mxu0 %v5444
        %6939 = vmatprep.subr.bf16.mxu0 0
        %6940 = vmatpush2.bf16.msra.mxu0 %v5441
        %6941 = vmatprep.subr.bf16.mxu0 0
        %6942 = vmatpush2.bf16.msra.mxu0 %v5438
        %6943 = vmatprep.mubr.bf16.mxu0 %v3726
        %6944 = vmatmul.mubr.bf16.gmra.mxu0 %v3725
        %v6945 = vpop.f32.mrf.mxu0
        %v6946 = vadd.f32 %v6849, %v6945
        %v6947 = vpop.f32.mrf.mxu0
        %v6948 = vpop.f32.mrf.mxu0
        %v6949 = vadd.f32 %v6852, %v6948
        %v6950 = vpop.f32.mrf.mxu0
        %6951 = vmatprep.mubr.bf16.mxu0 %v3738
        %6952 = vmatmul.mubr.bf16.gmra.mxu0 %v3737
        %v6953 = vpop.f32.mrf.mxu0
        %v6954 = vadd.f32 %v6857, %v6953
        %v6955 = vpop.f32.mrf.mxu0
        %v6956 = vpop.f32.mrf.mxu0
        %v6957 = vadd.f32 %v6860, %v6956
        %v6958 = vpop.f32.mrf.mxu0
        %6959 = vmatprep.mubr.bf16.mxu0 %v3750
        %6960 = vmatmul.mubr.bf16.gmra.mxu0 %v3749
        %v6961 = vpop.f32.mrf.mxu0
        %v6962 = vadd.f32 %v6865, %v6961
        %v6963 = vpop.f32.mrf.mxu0
        %v6964 = vpop.f32.mrf.mxu0
        %v6965 = vadd.f32 %v6868, %v6964
        %v6966 = vpop.f32.mrf.mxu0
        %6967 = vmatprep.mubr.bf16.mxu0 %v3762
        %6968 = vmatmul.mubr.bf16.gmra.mxu0 %v3761
        %v6969 = vpop.f32.mrf.mxu0
        %v6970 = vadd.f32 %v6873, %v6969
        %v6971 = vpop.f32.mrf.mxu0
        %v6972 = vpop.f32.mrf.mxu0
        %v6973 = vadd.f32 %v6876, %v6972
        %v6974 = vpop.f32.mrf.mxu0
        %6975 = vmatprep.mubr.bf16.mxu0 %v3774
        %6976 = vmatmul.mubr.bf16.gmra.mxu0 %v3773
        %v6977 = vpop.f32.mrf.mxu0
        %v6978 = vadd.f32 %v6881, %v6977
        %v6979 = vpop.f32.mrf.mxu0
        %v6980 = vpop.f32.mrf.mxu0
        %v6981 = vadd.f32 %v6884, %v6980
        %v6982 = vpop.f32.mrf.mxu0
        %6983 = vmatprep.mubr.bf16.mxu0 %v3786
        %6984 = vmatmul.mubr.bf16.gmra.mxu0 %v3785
        %v6985 = vpop.f32.mrf.mxu0
        %v6986 = vadd.f32 %v6889, %v6985
        %v6987 = vpop.f32.mrf.mxu0
        %v6988 = vpop.f32.mrf.mxu0
        %v6989 = vadd.f32 %v6892, %v6988
        %v6990 = vpop.f32.mrf.mxu0
        %6991 = vmatprep.mubr.bf16.mxu0 %v3798
        %6992 = vmatmul.mubr.bf16.gmra.mxu0 %v3797
        %v6993 = vpop.f32.mrf.mxu0
        %v6994 = vadd.f32 %v6897, %v6993
        %v6995 = vpop.f32.mrf.mxu0
        %v6996 = vpop.f32.mrf.mxu0
        %v6997 = vadd.f32 %v6900, %v6996
        %v6998 = vpop.f32.mrf.mxu0
        %6999 = vmatprep.mubr.bf16.mxu0 %v3810
        %7000 = vmatmul.mubr.bf16.gmra.mxu0 %v3809
        %v7001 = vpop.f32.mrf.mxu0
        %v7002 = vadd.f32 %v6905, %v7001
        %v7003 = vpop.f32.mrf.mxu0
        %v7004 = vpop.f32.mrf.mxu0
        %v7005 = vadd.f32 %v6908, %v7004
        %v7006 = vpop.f32.mrf.mxu0
        %7007 = vdwg.mxu0
        %7008 = vst [vmem:[%s299] sm:$0xff] %v6348
        %7009 = vst [vmem:[%s299 + $0x8] sm:$0xff] %v6350
        %7010 = vst [vmem:[%s299 + $0x10] sm:$0xff] %v6946
        %7011 = vst [vmem:[%s299 + $0x18] sm:$0xff] %v6352
        %7012 = vst [vmem:[%s299 + $0x20] sm:$0xff] %v6354
        %7013 = vst [vmem:[%s299 + $0x28] sm:$0xff] %v6949
        %7014 = vst [vmem:[%s299 + $0x30] sm:$0xff] %v6358
        %7015 = vst [vmem:[%s299 + $0x38] sm:$0xff] %v6360
        %7016 = vst [vmem:[%s299 + $0x40] sm:$0xff] %v6954
        %7017 = vst [vmem:[%s299 + $0x48] sm:$0xff] %v6362
        %7018 = vst [vmem:[%s299 + $0x50] sm:$0xff] %v6364
        %7019 = vst [vmem:[%s299 + $0x58] sm:$0xff] %v6957
        %7020 = vst [vmem:[%s299 + $0x60] sm:$0xff] %v6368
        %7021 = vst [vmem:[%s299 + $0x68] sm:$0xff] %v6370
        %7022 = vst [vmem:[%s299 + $0x70] sm:$0xff] %v6962
        %7023 = vst [vmem:[%s299 + $0x78] sm:$0xff] %v6372
        %7024 = vst [vmem:[%s299 + $0x80] sm:$0xff] %v6374
        %7025 = vst [vmem:[%s299 + $0x88] sm:$0xff] %v6965
        %7026 = vst [vmem:[%s299 + $0x90] sm:$0xff] %v6378
        %7027 = vst [vmem:[%s299 + $0x98] sm:$0xff] %v6380
        %7028 = vst [vmem:[%s299 + $0xa0] sm:$0xff] %v6970
        %7029 = vst [vmem:[%s299 + $0xa8] sm:$0xff] %v6382
        %7030 = vst [vmem:[%s299 + $0xb0] sm:$0xff] %v6384
        %7031 = vst [vmem:[%s299 + $0xb8] sm:$0xff] %v6973
        %7032 = vst [vmem:[%s299 + $0xc0] sm:$0xff] %v6388
        %7033 = vst [vmem:[%s299 + $0xc8] sm:$0xff] %v6390
        %7034 = vst [vmem:[%s299 + $0xd0] sm:$0xff] %v6978
        %7035 = vst [vmem:[%s299 + $0xd8] sm:$0xff] %v6392
        %7036 = vst [vmem:[%s299 + $0xe0] sm:$0xff] %v6394
        %7037 = vst [vmem:[%s299 + $0xe8] sm:$0xff] %v6981
        %7038 = vst [vmem:[%s299 + $0xf0] sm:$0xff] %v6398
        %7039 = vst [vmem:[%s299 + $0xf8] sm:$0xff] %v6400
        %7040 = vst [vmem:[%s299 + $0x100] sm:$0xff] %v6986
        %7041 = vst [vmem:[%s299 + $0x108] sm:$0xff] %v6402
        %7042 = vst [vmem:[%s299 + $0x110] sm:$0xff] %v6404
        %7043 = vst [vmem:[%s299 + $0x118] sm:$0xff] %v6989
        %7044 = vst [vmem:[%s299 + $0x120] sm:$0xff] %v6408
        %7045 = vst [vmem:[%s299 + $0x128] sm:$0xff] %v6410
        %7046 = vst [vmem:[%s299 + $0x130] sm:$0xff] %v6994
        %7047 = vst [vmem:[%s299 + $0x138] sm:$0xff] %v6412
        %7048 = vst [vmem:[%s299 + $0x140] sm:$0xff] %v6414
        %7049 = vst [vmem:[%s299 + $0x148] sm:$0xff] %v6997
        %7050 = vst [vmem:[%s299 + $0x150] sm:$0xff] %v6418
        %7051 = vst [vmem:[%s299 + $0x158] sm:$0xff] %v6420
        %7052 = vst [vmem:[%s299 + $0x160] sm:$0xff] %v7002
        %7053 = vst [vmem:[%s299 + $0x168] sm:$0xff] %v6422
        %7054 = vst [vmem:[%s299 + $0x170] sm:$0xff] %v6424
        %7055 = vst [vmem:[%s299 + $0x178] sm:$0xff] %v7005
        %s7056 = sand.u32 %s144, 1
        %s7057 = scalar_lea.sflag [#allocation6], %s7056
        %s7058 = sand.u32 %s144, 1
        %s7059 = smul.addr %s7058, 384
        %s7060 = scalar_lea.vmem [#allocation13], %s7059
        // Predicated region
        $region61: #{feed_forward.1} parent=39 // pred_check
          %p7061 = pneg %p154
        $region62: #{feed_forward.1} parent=39 // pred_check_branch
          %7063 = sbr.rel (%p7061) target = $region64
        $region63: #{feed_forward.1} parent=39 // pred_region
          %s7064 = smul.u32 16, %s26
          %s7066 = ssub.s32 6144, 6144
          %7067 = vsyncadd %s7057, %s7066
          %s7068 = smul.addr %s7064, 3
          %s7069 = smul.addr %s7068, 128
          %s7070 = scalar_lea.hbm %s6, %s7069
          %s7071 = sshll.u32 %s7060, 4
          %s7072 = int_to_ptr.vmem [resolvable:$true] %s7071
          %7077 = dma.vmem_to_hbm [thread:$0]  %s7072, 6144, %s7070, %s7057, 384, 384, 24
        $region64: #{feed_forward.1} parent=39 // pred_fallthru
          _
      $region40: #{feed_forward.1} parent=5 // pred_fallthru
        _
      %p7078 = scmp.le.s32.totalorder 2, %s21
      // Predicated region
      $region65: #{feed_forward.1} parent=5 // pred_check
        %p7079 = pneg %p7078
      $region66: #{feed_forward.1} parent=5 // pred_check_branch
        %7081 = sbr.rel (%p7079) target = $region68
      $region67: #{feed_forward.1} parent=5 // pred_region
        %s7082 = ssub.s32 %s21, 2
        // Predicated region
        $region69: #{feed_forward.1} parent=67 // pred_check
          %p7083 = pneg %p160
        $region70: #{feed_forward.1} parent=67 // pred_check_branch
          %7085 = sbr.rel (%p7083) target = $region72
        $region71: #{feed_forward.1} parent=67 // pred_region
          %s7086 = sand.u32 %s145, 1
          %s7087 = scalar_lea.sflag [#allocation6], %s7086
          %s7088 = sand.u32 %s145, 1
          %s7089 = smul.addr %s7088, 384
          %s7090 = scalar_lea.vmem [#allocation13], %s7089
          %7091 = dma.done %s7087, 6144
        $region72: #{feed_forward.1} parent=67 // pred_fallthru
          _
      $region68: #{feed_forward.1} parent=5 // pred_fallthru
        _
    $region6: #{feed_forward.1} parent=1 // loop_footer
      %s25 = sadd.s32 1, %s21
    $region7: #{feed_forward.1} parent=1 // loop_footer_branch
      %20 = sbr.rel target = $region3
    $region8: #{feed_forward.1} parent=1 // loop_exit
      _
    %7092 = vsyncpa [#allocation5], 1
    %s7093 = scalar_lea.sflag [#allocation5], 1
    %7094 = vsyncpa %s7093, 1
    %7095 = vsyncpa [#allocation8], 1
    %7096 = vsyncpa [#allocation11], 1
    %7097 = vsyncpa [#allocation6], 1
    %s7098 = scalar_lea.sflag [#allocation6], 1
    %7099 = vsyncpa %s7098, 1

</llo_original>
